<compile_context>
chip_gen: v5e
topology: v5e:2x2
jax: 0.10.0
libtpu: 0.0.40
codegen_flags: <defaults>
</compile_context>

<pallas_src>
import jax
import jax.numpy as jnp
from jax.experimental import pallas as pl
from jax.experimental.pallas import tpu as pltpu

LANE = 128


def _round_up(n, m):
    return ((n + m - 1) // m) * m


def _cdiv(a, b):
    return -(-a // b)


def _default_grid_steps():
    """>=2 grid steps on chips whose 2 TensorCores share the parallel axis."""
    try:
        kind = jax.devices()[0].device_kind.lower()
    except Exception:
        return 1
    if any(tag in kind for tag in ("v7", "7x", "v4", "v5p")):
        return 2
    return 1


def mlp_kernel(x_ref, w1_ref, b1_ref, w2_ref, b2_ref, w3_ref, b3_ref, o_ref):
    # ---- fc1 + tanh -------------------------------------------------------
    # K == input_size (2) is tiny: do it on the VPU as broadcast FMAs instead
    # of paying an MXU push/pop for a K=2 matmul.
    x = x_ref[...]                                   # (tb, in) f32
    in_size = w1_ref.shape[0]
    acc = x[:, 0:1] * w1_ref[0:1, :]                 # (tb,1)*(1,512) -> (tb,512)
    for k in range(1, in_size):                      # static, tiny loop
        acc = acc + x[:, k:k + 1] * w1_ref[k:k + 1, :]
    h1 = jnp.tanh(acc + b1_ref[...])                 # f32 activations (v5e-safe)

    # ---- ln + relu --------------------------------------------------------
    # bf16 MXU matmul, f32 accumulation; relu/bias in f32.
    h2 = jnp.dot(h1.astype(jnp.bfloat16), w2_ref[...],
                 preferred_element_type=jnp.float32)
    h2 = jnp.maximum(h2 + b2_ref[...], 0.0)

    # ---- fc2 ---------------------------------------------------------------
    # (tb, 128) MXU result, transposed on the (idle) XLU so the real outputs
    # land lane-dense with the batch on lanes; only an (8, tb) slab is stored
    # instead of (tb, 128) -> 16x less HBM write traffic.
    out = jnp.dot(h2.astype(jnp.bfloat16), w3_ref[...],
                  preferred_element_type=jnp.float32)
    out = out + b3_ref[...]                          # (tb, 128) f32
    out_t = jnp.transpose(out)                       # (128, tb) via XLU vxpose
    o_ref[...] = out_t[:o_ref.shape[0], :].astype(o_ref.dtype)


def net_forward(x, params, *, output_size=1, tb_max=1024, grid_steps=None):
    """x: (B, input_size) float32. params: padded/bf16 params from prepare_params."""
    w1, b1, w2, b2, w3, b3 = (params["w1"], params["b1"], params["w2"],
                              params["b2"], params["w3"], params["b3"])
    B, in_size = x.shape
    out_pad = w3.shape[1]                            # padded fc2 lanes (128)
    assert output_size <= out_pad

    if grid_steps is None:
        grid_steps = _default_grid_steps()

    # Batch tile: multiple of 128 (lane-dense transposed output), as large as
    # possible (fewest grid steps), but split so every TensorCore gets work.
    tb = min(tb_max, max(LANE, _round_up(_cdiv(B, max(1, grid_steps)), LANE)))
    b_pad = _round_up(B, tb)
    if b_pad != B:                                   # only pads when misaligned
        x = jnp.pad(x, ((0, b_pad - B), (0, 0)))
    grid = (b_pad // tb,)

    out_rows = _round_up(max(output_size, 1), 8)     # sublane-aligned output rows

    def const_spec(shape):
        # Weights/biases: same block every grid step -> fetched once, stay
        # VMEM-resident across all steps.
        return pl.BlockSpec(shape, lambda i: (0, 0))

    out_t = pl.pallas_call(
        mlp_kernel,
        out_shape=jax.ShapeDtypeStruct((out_rows, b_pad), jnp.float32),
        grid_spec=pltpu.PrefetchScalarGridSpec(
            num_scalar_prefetch=0,
            grid=grid,
            in_specs=[
                pl.BlockSpec((tb, in_size), lambda i: (i, 0)),   # x streams
                const_spec(w1.shape), const_spec(b1.shape),
                const_spec(w2.shape), const_spec(b2.shape),
                const_spec(w3.shape), const_spec(b3.shape),
            ],
            # batch on LANES: each step writes a lane-dense (out_rows, tb) slab
            out_specs=pl.BlockSpec((out_rows, tb), lambda i: (0, i)),
        ),
        compiler_params=pltpu.CompilerParams(
            dimension_semantics=("parallel",)),      # shards batch over TCs on v7x
    )(x, w1, b1, w2, b2, w3, b3)

    # Tiny slice/transpose: only ~B*output_size*4 bytes touched here.
    return jnp.transpose(out_t[:output_size, :B])


def init_params(key, input_size=2, hidden_size=500, output_size=1):
    """PyTorch nn.Linear-style init: U(-1/sqrt(fan_in), 1/sqrt(fan_in)).
    Weights stored pre-transposed as (in, out), f32, unpadded."""
    ks = jax.random.split(key, 6)

    def lin(kw, kb, fan_in, fan_out):
        bound = 1.0 / jnp.sqrt(jnp.float32(fan_in))
        w = jax.random.uniform(kw, (fan_in, fan_out), jnp.float32, -bound, bound)
        b = jax.random.uniform(kb, (1, fan_out), jnp.float32, -bound, bound)
        return w, b

    w1, b1 = lin(ks[0], ks[1], input_size, hidden_size)
    w2, b2 = lin(ks[2], ks[3], hidden_size, hidden_size)
    w3, b3 = lin(ks[4], ks[5], hidden_size, output_size)
    return dict(w1=w1, b1=b1, w2=w2, b2=b2, w3=w3, b3=b3)


def prepare_params(p):
    """Zero-pad hidden 500->512 and output 1->128; cast MXU-side weights to bf16.
    Zero padding preserves semantics exactly (tanh(0)=0, relu(0)=0)."""
    hid = p["w1"].shape[1]
    out = p["w3"].shape[1]
    hp = _round_up(hid, LANE)
    op = _round_up(out, LANE)

    def pad2(a, rows, cols):
        return jnp.pad(a, ((0, rows - a.shape[0]), (0, cols - a.shape[1])))

    return dict(
        w1=pad2(p["w1"], p["w1"].shape[0], hp),                 # f32 (VPU path)
        b1=pad2(p["b1"], 1, hp),
        w2=pad2(p["w2"], hp, hp).astype(jnp.bfloat16),
        b2=pad2(p["b2"], 1, hp),
        w3=pad2(p["w3"], hp, op).astype(jnp.bfloat16),
        b3=pad2(p["b3"], 1, op),
    )


def net_forward_ref(x, p):
    """Pure-JAX f32 reference on the ORIGINAL (unpadded, f32) params."""
    h1 = jnp.tanh(x @ p["w1"] + p["b1"])
    h2 = jnp.maximum(h1 @ p["w2"] + p["b2"], 0.0)
    return h2 @ p["w3"] + p["b3"]


if __name__ == "__main__":
    key = jax.random.PRNGKey(0)
    k_param, k_x = jax.random.split(key)

    batch, input_size, hidden_size, output_size = 256, 2, 500, 1
    raw_params = init_params(k_param, input_size, hidden_size, output_size)
    params = prepare_params(raw_params)
    x = jax.random.normal(k_x, (batch, input_size), jnp.float32)

    out = net_forward(x, params, output_size=output_size)
    out = jax.block_until_ready(out)

    ref = net_forward_ref(x, raw_params)
    assert out.shape == (batch, output_size), out.shape
    # bf16 weights in the ln/fc2 matmuls -> relaxed tolerance vs. full-f32 ref.
    assert jnp.allclose(out, ref, atol=2e-2, rtol=2e-2), \
        float(jnp.max(jnp.abs(out - ref)))

    # TODO(synk): Dropout/Sigmoid/ELU/Hardshrink exist in __init__ but are not
    # used in forward(), so they are intentionally not implemented.
    print("KERNEL_OK")
</pallas_src>

<mosaic_0001>
module attributes {stable_mosaic.version = 11 : i64} {
  func.func @mlp_kernel(%arg0: i32, %arg1: memref<256x2xf32, #tpu.memory_space<vmem>>, %arg2: memref<2x512xf32, #tpu.memory_space<vmem>>, %arg3: memref<1x512xf32, #tpu.memory_space<vmem>>, %arg4: memref<512x512xbf16, #tpu.memory_space<vmem>>, %arg5: memref<1x512xf32, #tpu.memory_space<vmem>>, %arg6: memref<512x128xbf16, #tpu.memory_space<vmem>>, %arg7: memref<1x128xf32, #tpu.memory_space<vmem>>, %arg8: memref<8x256xf32, #tpu.memory_space<vmem>>) attributes {dimension_semantics = [#tpu.dimension_semantics<parallel>], iteration_bounds = array<i64: 1>, scalar_prefetch = 0 : i64, scratch_operands = 0 : i64, tpu.core_type = #tpu.core_type<tc>, window_params = [{transform_indices = @transform_0, window_bounds = array<i64: 256, 2>}, {pipeline_mode = #tpu.pipeline_mode<synchronous>, transform_indices = @transform_1, window_bounds = array<i64: 2, 512>}, {pipeline_mode = #tpu.pipeline_mode<synchronous>, transform_indices = @transform_2, window_bounds = array<i64: 1, 512>}, {pipeline_mode = #tpu.pipeline_mode<synchronous>, transform_indices = @transform_3, window_bounds = array<i64: 512, 512>}, {pipeline_mode = #tpu.pipeline_mode<synchronous>, transform_indices = @transform_4, window_bounds = array<i64: 1, 512>}, {pipeline_mode = #tpu.pipeline_mode<synchronous>, transform_indices = @transform_5, window_bounds = array<i64: 512, 128>}, {pipeline_mode = #tpu.pipeline_mode<synchronous>, transform_indices = @transform_6, window_bounds = array<i64: 1, 128>}, {transform_indices = @transform_7, window_bounds = array<i64: 8, 256>}]} {
    %c0 = arith.constant 0 : index
    %c0_0 = arith.constant 0 : index
    %0 = vector.load %arg1[%c0, %c0_0] : memref<256x2xf32, #tpu.memory_space<vmem>>, vector<256x2xf32>
    %1 = vector.extract_strided_slice %0 {offsets = [0, 0], sizes = [256, 1], strides = [1, 1]} : vector<256x2xf32> to vector<256x1xf32>
    %c0_1 = arith.constant 0 : index
    %c0_2 = arith.constant 0 : index
    %2 = vector.load %arg2[%c0_1, %c0_2] : memref<2x512xf32, #tpu.memory_space<vmem>>, vector<1x512xf32>
    %3 = vector.broadcast %1 : vector<256x1xf32> to vector<256x512xf32>
    %4 = vector.broadcast %2 : vector<1x512xf32> to vector<256x512xf32>
    %5 = arith.mulf %3, %4 : vector<256x512xf32>
    %6 = vector.extract_strided_slice %0 {offsets = [0, 1], sizes = [256, 1], strides = [1, 1]} : vector<256x2xf32> to vector<256x1xf32>
    %c1 = arith.constant 1 : index
    %c0_3 = arith.constant 0 : index
    %7 = vector.load %arg2[%c1, %c0_3] : memref<2x512xf32, #tpu.memory_space<vmem>>, vector<1x512xf32>
    %8 = vector.broadcast %6 : vector<256x1xf32> to vector<256x512xf32>
    %9 = vector.broadcast %7 : vector<1x512xf32> to vector<256x512xf32>
    %10 = arith.mulf %8, %9 : vector<256x512xf32>
    %11 = arith.addf %5, %10 : vector<256x512xf32>
    %c0_4 = arith.constant 0 : index
    %c0_5 = arith.constant 0 : index
    %12 = vector.load %arg3[%c0_4, %c0_5] : memref<1x512xf32, #tpu.memory_space<vmem>>, vector<1x512xf32>
    %13 = vector.broadcast %12 : vector<1x512xf32> to vector<256x512xf32>
    %14 = arith.addf %11, %13 : vector<256x512xf32>
    %15 = math.tanh %14 : vector<256x512xf32>
    %16 = arith.truncf %15 : vector<256x512xf32> to vector<256x512xbf16>
    %c0_6 = arith.constant 0 : index
    %c0_7 = arith.constant 0 : index
    %17 = vector.load %arg4[%c0_6, %c0_7] : memref<512x512xbf16, #tpu.memory_space<vmem>>, vector<512x512xbf16>
    %cst = arith.constant dense<0.000000e+00> : vector<256x512xf32>
    %18 = tpu.matmul %16, %17, %cst {dimension_numbers = #tpu.dot_dimension_numbers<[1], [0], [0], [1], [0, 0, 1, 1], [], []>} : vector<256x512xbf16>, vector<512x512xbf16>, vector<256x512xf32> -> vector<256x512xf32>
    %c0_8 = arith.constant 0 : index
    %c0_9 = arith.constant 0 : index
    %19 = vector.load %arg5[%c0_8, %c0_9] : memref<1x512xf32, #tpu.memory_space<vmem>>, vector<1x512xf32>
    %20 = vector.broadcast %19 : vector<1x512xf32> to vector<256x512xf32>
    %21 = arith.addf %18, %20 : vector<256x512xf32>
    %cst_10 = arith.constant 0.000000e+00 : f32
    %22 = vector.broadcast %cst_10 : f32 to vector<256x512xf32>
    %23 = arith.maximumf %21, %22 : vector<256x512xf32>
    %24 = arith.truncf %23 : vector<256x512xf32> to vector<256x512xbf16>
    %c0_11 = arith.constant 0 : index
    %c0_12 = arith.constant 0 : index
    %25 = vector.load %arg6[%c0_11, %c0_12] : memref<512x128xbf16, #tpu.memory_space<vmem>>, vector<512x128xbf16>
    %cst_13 = arith.constant dense<0.000000e+00> : vector<256x128xf32>
    %26 = tpu.matmul %24, %25, %cst_13 {dimension_numbers = #tpu.dot_dimension_numbers<[1], [0], [0], [1], [0, 0, 1, 1], [], []>} : vector<256x512xbf16>, vector<512x128xbf16>, vector<256x128xf32> -> vector<256x128xf32>
    %c0_14 = arith.constant 0 : index
    %c0_15 = arith.constant 0 : index
    %27 = vector.load %arg7[%c0_14, %c0_15] : memref<1x128xf32, #tpu.memory_space<vmem>>, vector<1x128xf32>
    %28 = vector.broadcast %27 : vector<1x128xf32> to vector<256x128xf32>
    %29 = arith.addf %26, %28 : vector<256x128xf32>
    %30 = tpu.transpose %29, [1, 0] : vector<256x128xf32> -> vector<128x256xf32>
    %31 = vector.extract_strided_slice %30 {offsets = [0, 0], sizes = [8, 256], strides = [1, 1]} : vector<128x256xf32> to vector<8x256xf32>
    %c0_16 = arith.constant 0 : index
    %c0_17 = arith.constant 0 : index
    %32 = vector.load %arg8[%c0_16, %c0_17] : memref<8x256xf32, #tpu.memory_space<vmem>>, vector<8x256xf32>
    tpu.vector_store %arg8[%c0_16, %c0_17], %31 {strides = array<i32>} : memref<8x256xf32, #tpu.memory_space<vmem>>, vector<8x256xf32>,
    return
  }
  func.func @transform_0(%arg0: i32) -> (i32, i32) {
    %c0_i32 = arith.constant 0 : i32
    %c0_i32_0 = arith.constant 0 : i32
    return %arg0, %c0_i32 : i32, i32
  }
  func.func @transform_1(%arg0: i32) -> (i32, i32) {
    %c0_i32 = arith.constant 0 : i32
    %c0_i32_0 = arith.constant 0 : i32
    %c0_i32_1 = arith.constant 0 : i32
    return %c0_i32, %c0_i32_0 : i32, i32
  }
  func.func @transform_2(%arg0: i32) -> (i32, i32) {
    %c0_i32 = arith.constant 0 : i32
    %c0_i32_0 = arith.constant 0 : i32
    %c0_i32_1 = arith.constant 0 : i32
    return %c0_i32, %c0_i32_0 : i32, i32
  }
  func.func @transform_3(%arg0: i32) -> (i32, i32) {
    %c0_i32 = arith.constant 0 : i32
    %c0_i32_0 = arith.constant 0 : i32
    %c0_i32_1 = arith.constant 0 : i32
    return %c0_i32, %c0_i32_0 : i32, i32
  }
  func.func @transform_4(%arg0: i32) -> (i32, i32) {
    %c0_i32 = arith.constant 0 : i32
    %c0_i32_0 = arith.constant 0 : i32
    %c0_i32_1 = arith.constant 0 : i32
    return %c0_i32, %c0_i32_0 : i32, i32
  }
  func.func @transform_5(%arg0: i32) -> (i32, i32) {
    %c0_i32 = arith.constant 0 : i32
    %c0_i32_0 = arith.constant 0 : i32
    %c0_i32_1 = arith.constant 0 : i32
    return %c0_i32, %c0_i32_0 : i32, i32
  }
  func.func @transform_6(%arg0: i32) -> (i32, i32) {
    %c0_i32 = arith.constant 0 : i32
    %c0_i32_0 = arith.constant 0 : i32
    %c0_i32_1 = arith.constant 0 : i32
    return %c0_i32, %c0_i32_0 : i32, i32
  }
  func.func @transform_7(%arg0: i32) -> (i32, i32) {
    %c0_i32 = arith.constant 0 : i32
    %c0_i32_0 = arith.constant 0 : i32
    return %c0_i32, %arg0 : i32, i32
  }
}

</mosaic_0001>

<llo_original>
// kernel: tpu_custom_call.1
$region0: #{tpu_custom_call.1}
  #allocation0 [shape = 'u32[]', space=smem, size = 0x4, offset = 0x4, fixed_abs, tag = 'smem constant byte address 0x4 - core index']
  #allocation1 [shape = 'u32[72,128]{1,0:T(1,128)}', space=vmem, size = 0x9000, scoped, tag = 'internal scratch']
  %s0 = inlined_call_operand.vmem [shape: f32[256,2], index: 0, kind: input, shape index: {}]
  %s1 = inlined_call_operand.vmem [shape: f32[2,512], index: 1, kind: input, shape index: {}]
  %s2 = inlined_call_operand.hbm [shape: f32[1,512], index: 2, kind: input, shape index: {}]
  %s3 = inlined_call_operand.hbm [shape: bf16[512,512], index: 3, kind: input, shape index: {}]
  %s4 = inlined_call_operand.hbm [shape: f32[1,512], index: 4, kind: input, shape index: {}]
  %s5 = inlined_call_operand.vmem [shape: bf16[512,128], index: 5, kind: input, shape index: {}]
  %s6 = inlined_call_operand.vmem [shape: f32[1,128], index: 6, kind: input, shape index: {}]
  %s7 = inlined_call_operand.hbm [shape: f32[8,256], index: 7, kind: output, shape index: {}]
  %s8 = sld [smem:[#allocation0]]
  $region50: #{tpu_custom_call.1} parent=0
    _
  %s10 = ssub.s32 1, %s8
  %s11 = scalar_select 0, %s10, %s8
  $region1: #{tpu_custom_call.1} parent=0
    #allocation2 [shape = 'u8[2048]{0}', space=vmem, size = 0x800, scoped, tag = 'input window, operand 2, single buffered']
    #allocation3 [shape = 's32[1]{0}', space=sflag, size = 0x4, scoped, tag = 'scoped memory for tpu_custom_call.1']
    #allocation4 [shape = 's32[1]{0}', space=sflag, size = 0x4, scoped, tag = 'scoped memory for tpu_custom_call.1']
    #allocation5 [shape = 'u8[524288]{0}', space=vmem, size = 0x80000, scoped, tag = 'input window, operand 3, single buffered']
    #allocation6 [shape = 's32[1]{0}', space=sflag, size = 0x4, scoped, tag = 'scoped memory for tpu_custom_call.1']
    #allocation7 [shape = 'u8[2048]{0}', space=vmem, size = 0x800, scoped, tag = 'input window, operand 4, single buffered']
    #allocation8 [shape = 'u8[8192]{0}', space=vmem, size = 0x2000, scoped, tag = 'output window, operand 0, single buffered']
    %12 = vsyncpa [#allocation3], 0
    %13 = vsyncpa [#allocation6], 0
    %14 = vsyncpa [#allocation4], 0
    // Predicated region
    $region2: #{tpu_custom_call.1} parent=1 // pred_check
      _
    $region3: #{tpu_custom_call.1} parent=1 // pred_check_branch
      %16 = sbr.rel (0) target = $region5
    $region4: #{tpu_custom_call.1} parent=1 // pred_region
      _
    $region5: #{tpu_custom_call.1} parent=1 // pred_fallthru
      _
    // Predicated region
    $region6: #{tpu_custom_call.1} parent=1 // pred_check
      _
    $region7: #{tpu_custom_call.1} parent=1 // pred_check_branch
      %18 = sbr.rel (0) target = $region9
    $region8: #{tpu_custom_call.1} parent=1 // pred_region
      _
    $region9: #{tpu_custom_call.1} parent=1 // pred_fallthru
      _
    // Predicated region
    $region10: #{tpu_custom_call.1} parent=1 // pred_check
      _
    $region11: #{tpu_custom_call.1} parent=1 // pred_check_branch
      %20 = sbr.rel (0) target = $region13
    $region12: #{tpu_custom_call.1} parent=1 // pred_region
      %22 = vsyncadd [#allocation3], 0
      %s24 = sshll.u32 %s2, 4
      %s25 = int_to_ptr.hbm [resolvable:$true] %s24
      %s26 = sshll.u32 [#allocation2], 4
      %s27 = int_to_ptr.vmem [resolvable:$true] %s26
      %29 = dma.hbm_to_vmem [thread:$0]  %s25, 64, %s27, [#allocation3]
    $region13: #{tpu_custom_call.1} parent=1 // pred_fallthru
      _
    // Predicated region
    $region14: #{tpu_custom_call.1} parent=1 // pred_check
      _
    $region15: #{tpu_custom_call.1} parent=1 // pred_check_branch
      %31 = sbr.rel (0) target = $region17
    $region16: #{tpu_custom_call.1} parent=1 // pred_region
      %33 = vsyncadd [#allocation6], 0
      %s34 = sshll.u32 %s3, 4
      %s35 = int_to_ptr.hbm [resolvable:$true] %s34
      %s36 = sshll.u32 [#allocation5], 4
      %s37 = int_to_ptr.vmem [resolvable:$true] %s36
      %42 = dma.hbm_to_vmem [thread:$0]  %s35, 16384, %s37, [#allocation6], 256, 256, 16
    $region17: #{tpu_custom_call.1} parent=1 // pred_fallthru
      _
    // Predicated region
    $region18: #{tpu_custom_call.1} parent=1 // pred_check
      _
    $region19: #{tpu_custom_call.1} parent=1 // pred_check_branch
      %44 = sbr.rel (0) target = $region21
    $region20: #{tpu_custom_call.1} parent=1 // pred_region
      %46 = vsyncadd [#allocation6], 0
      %s48 = sshll.u32 %s4, 4
      %s49 = int_to_ptr.hbm [resolvable:$true] %s48
      %s50 = sshll.u32 [#allocation7], 4
      %s51 = int_to_ptr.vmem [resolvable:$true] %s50
      %53 = dma.hbm_to_vmem [thread:$0]  %s49, 64, %s51, [#allocation6]
    $region21: #{tpu_custom_call.1} parent=1 // pred_fallthru
      _
    // Predicated region
    $region22: #{tpu_custom_call.1} parent=1 // pred_check
      _
    $region23: #{tpu_custom_call.1} parent=1 // pred_check_branch
      %55 = sbr.rel (0) target = $region25
    $region24: #{tpu_custom_call.1} parent=1 // pred_region
      _
    $region25: #{tpu_custom_call.1} parent=1 // pred_fallthru
      _
    // Predicated region
    $region26: #{tpu_custom_call.1} parent=1 // pred_check
      _
    $region27: #{tpu_custom_call.1} parent=1 // pred_check_branch
      %57 = sbr.rel (0) target = $region29
    $region28: #{tpu_custom_call.1} parent=1 // pred_region
      _
    $region29: #{tpu_custom_call.1} parent=1 // pred_fallthru
      _
    // Predicated region
    $region30: #{tpu_custom_call.1} parent=1 // pred_check
      _
    $region31: #{tpu_custom_call.1} parent=1 // pred_check_branch
      %59 = sbr.rel (0) target = $region33
    $region32: #{tpu_custom_call.1} parent=1 // pred_region
      %61 = dma.done [#allocation3], 64
    $region33: #{tpu_custom_call.1} parent=1 // pred_fallthru
      _
    // Predicated region
    $region34: #{tpu_custom_call.1} parent=1 // pred_check
      _
    $region35: #{tpu_custom_call.1} parent=1 // pred_check_branch
      %63 = sbr.rel (0) target = $region37
    $region36: #{tpu_custom_call.1} parent=1 // pred_region
      %65 = dma.done [#allocation6], 16384
    $region37: #{tpu_custom_call.1} parent=1 // pred_fallthru
      _
    // Predicated region
    $region38: #{tpu_custom_call.1} parent=1 // pred_check
      _
    $region39: #{tpu_custom_call.1} parent=1 // pred_check_branch
      %67 = sbr.rel (0) target = $region41
    $region40: #{tpu_custom_call.1} parent=1 // pred_region
      %69 = dma.done [#allocation6], 64
    $region41: #{tpu_custom_call.1} parent=1 // pred_fallthru
      _
    %v70 = vld [vmem:[%s0] sm:$0xff]
    %v71 = vld [vmem:[%s0 + $0x8] sm:$0xff]
    %v72 = vld [vmem:[%s0 + $0x10] sm:$0xff]
    %v73 = vld [vmem:[%s0 + $0x18] sm:$0xff]
    %v74 = vld [vmem:[%s0 + $0x20] sm:$0xff]
    %v75 = vld [vmem:[%s0 + $0x28] sm:$0xff]
    %v76 = vld [vmem:[%s0 + $0x30] sm:$0xff]
    %v77 = vld [vmem:[%s0 + $0x38] sm:$0xff]
    %v78 = vld [vmem:[%s0 + $0x40] sm:$0xff]
    %v79 = vld [vmem:[%s0 + $0x48] sm:$0xff]
    %v80 = vld [vmem:[%s0 + $0x50] sm:$0xff]
    %v81 = vld [vmem:[%s0 + $0x58] sm:$0xff]
    %v82 = vld [vmem:[%s0 + $0x60] sm:$0xff]
    %v83 = vld [vmem:[%s0 + $0x68] sm:$0xff]
    %v84 = vld [vmem:[%s0 + $0x70] sm:$0xff]
    %v85 = vld [vmem:[%s0 + $0x78] sm:$0xff]
    %v86 = vld [vmem:[%s0 + $0x80] sm:$0xff]
    %v87 = vld [vmem:[%s0 + $0x88] sm:$0xff]
    %v88 = vld [vmem:[%s0 + $0x90] sm:$0xff]
    %v89 = vld [vmem:[%s0 + $0x98] sm:$0xff]
    %v90 = vld [vmem:[%s0 + $0xa0] sm:$0xff]
    %v91 = vld [vmem:[%s0 + $0xa8] sm:$0xff]
    %v92 = vld [vmem:[%s0 + $0xb0] sm:$0xff]
    %v93 = vld [vmem:[%s0 + $0xb8] sm:$0xff]
    %v94 = vld [vmem:[%s0 + $0xc0] sm:$0xff]
    %v95 = vld [vmem:[%s0 + $0xc8] sm:$0xff]
    %v96 = vld [vmem:[%s0 + $0xd0] sm:$0xff]
    %v97 = vld [vmem:[%s0 + $0xd8] sm:$0xff]
    %v98 = vld [vmem:[%s0 + $0xe0] sm:$0xff]
    %v99 = vld [vmem:[%s0 + $0xe8] sm:$0xff]
    %v100 = vld [vmem:[%s0 + $0xf0] sm:$0xff]
    %v101 = vld [vmem:[%s0 + $0xf8] sm:$0xff]
    %v102 = vld [vmem:[%s1] ss:$2 sm:$0xf]
    %104 = vset.pattern.permute.xlu0 0
    %105 = vperm.xlu0 %104, %v70
    %v106 = vpop.permute.xlu0 %105
    %109 = vset.pattern.permute.xlu0 0
    %110 = vperm.xlu0 %109, %v71
    %v111 = vpop.permute.xlu0 %110
    %114 = vset.pattern.permute.xlu0 0
    %115 = vperm.xlu0 %114, %v72
    %v116 = vpop.permute.xlu0 %115
    %119 = vset.pattern.permute.xlu0 0
    %120 = vperm.xlu0 %119, %v73
    %v121 = vpop.permute.xlu0 %120
    %124 = vset.pattern.permute.xlu0 0
    %125 = vperm.xlu0 %124, %v74
    %v126 = vpop.permute.xlu0 %125
    %129 = vset.pattern.permute.xlu0 0
    %130 = vperm.xlu0 %129, %v75
    %v131 = vpop.permute.xlu0 %130
    %134 = vset.pattern.permute.xlu0 0
    %135 = vperm.xlu0 %134, %v76
    %v136 = vpop.permute.xlu0 %135
    %139 = vset.pattern.permute.xlu0 0
    %140 = vperm.xlu0 %139, %v77
    %v141 = vpop.permute.xlu0 %140
    %144 = vset.pattern.permute.xlu0 0
    %145 = vperm.xlu0 %144, %v78
    %v146 = vpop.permute.xlu0 %145
    %149 = vset.pattern.permute.xlu0 0
    %150 = vperm.xlu0 %149, %v79
    %v151 = vpop.permute.xlu0 %150
    %154 = vset.pattern.permute.xlu0 0
    %155 = vperm.xlu0 %154, %v80
    %v156 = vpop.permute.xlu0 %155
    %159 = vset.pattern.permute.xlu0 0
    %160 = vperm.xlu0 %159, %v81
    %v161 = vpop.permute.xlu0 %160
    %164 = vset.pattern.permute.xlu0 0
    %165 = vperm.xlu0 %164, %v82
    %v166 = vpop.permute.xlu0 %165
    %169 = vset.pattern.permute.xlu0 0
    %170 = vperm.xlu0 %169, %v83
    %v171 = vpop.permute.xlu0 %170
    %174 = vset.pattern.permute.xlu0 0
    %175 = vperm.xlu0 %174, %v84
    %v176 = vpop.permute.xlu0 %175
    %179 = vset.pattern.permute.xlu0 0
    %180 = vperm.xlu0 %179, %v85
    %v181 = vpop.permute.xlu0 %180
    %184 = vset.pattern.permute.xlu0 0
    %185 = vperm.xlu0 %184, %v86
    %v186 = vpop.permute.xlu0 %185
    %189 = vset.pattern.permute.xlu0 0
    %190 = vperm.xlu0 %189, %v87
    %v191 = vpop.permute.xlu0 %190
    %194 = vset.pattern.permute.xlu0 0
    %195 = vperm.xlu0 %194, %v88
    %v196 = vpop.permute.xlu0 %195
    %199 = vset.pattern.permute.xlu0 0
    %200 = vperm.xlu0 %199, %v89
    %v201 = vpop.permute.xlu0 %200
    %204 = vset.pattern.permute.xlu0 0
    %205 = vperm.xlu0 %204, %v90
    %v206 = vpop.permute.xlu0 %205
    %209 = vset.pattern.permute.xlu0 0
    %210 = vperm.xlu0 %209, %v91
    %v211 = vpop.permute.xlu0 %210
    %214 = vset.pattern.permute.xlu0 0
    %215 = vperm.xlu0 %214, %v92
    %v216 = vpop.permute.xlu0 %215
    %219 = vset.pattern.permute.xlu0 0
    %220 = vperm.xlu0 %219, %v93
    %v221 = vpop.permute.xlu0 %220
    %224 = vset.pattern.permute.xlu0 0
    %225 = vperm.xlu0 %224, %v94
    %v226 = vpop.permute.xlu0 %225
    %229 = vset.pattern.permute.xlu0 0
    %230 = vperm.xlu0 %229, %v95
    %v231 = vpop.permute.xlu0 %230
    %234 = vset.pattern.permute.xlu0 0
    %235 = vperm.xlu0 %234, %v96
    %v236 = vpop.permute.xlu0 %235
    %239 = vset.pattern.permute.xlu0 0
    %240 = vperm.xlu0 %239, %v97
    %v241 = vpop.permute.xlu0 %240
    %244 = vset.pattern.permute.xlu0 0
    %245 = vperm.xlu0 %244, %v98
    %v246 = vpop.permute.xlu0 %245
    %249 = vset.pattern.permute.xlu0 0
    %250 = vperm.xlu0 %249, %v99
    %v251 = vpop.permute.xlu0 %250
    %254 = vset.pattern.permute.xlu0 0
    %255 = vperm.xlu0 %254, %v100
    %v256 = vpop.permute.xlu0 %255
    %259 = vset.pattern.permute.xlu0 0
    %260 = vperm.xlu0 %259, %v101
    %v261 = vpop.permute.xlu0 %260
    %v264 = vperm.slane %v102, 0
    %v265 = vperm.slane %v102, 1
    %v266 = vperm.slane %v102, 2
    %v267 = vperm.slane %v102, 3
    %v272 = vmul.f32 %v106, %v264
    %v273 = vmul.f32 %v106, %v265
    %v274 = vmul.f32 %v106, %v266
    %v275 = vmul.f32 %v106, %v267
    %v276 = vmul.f32 %v111, %v264
    %v277 = vmul.f32 %v111, %v265
    %v278 = vmul.f32 %v111, %v266
    %v279 = vmul.f32 %v111, %v267
    %v280 = vmul.f32 %v116, %v264
    %v281 = vmul.f32 %v116, %v265
    %v282 = vmul.f32 %v116, %v266
    %v283 = vmul.f32 %v116, %v267
    %v284 = vmul.f32 %v121, %v264
    %v285 = vmul.f32 %v121, %v265
    %v286 = vmul.f32 %v121, %v266
    %v287 = vmul.f32 %v121, %v267
    %v288 = vmul.f32 %v126, %v264
    %v289 = vmul.f32 %v126, %v265
    %v290 = vmul.f32 %v126, %v266
    %v291 = vmul.f32 %v126, %v267
    %v292 = vmul.f32 %v131, %v264
    %v293 = vmul.f32 %v131, %v265
    %v294 = vmul.f32 %v131, %v266
    %v295 = vmul.f32 %v131, %v267
    %v296 = vmul.f32 %v136, %v264
    %v297 = vmul.f32 %v136, %v265
    %v298 = vmul.f32 %v136, %v266
    %v299 = vmul.f32 %v136, %v267
    %v300 = vmul.f32 %v141, %v264
    %v301 = vmul.f32 %v141, %v265
    %v302 = vmul.f32 %v141, %v266
    %v303 = vmul.f32 %v141, %v267
    %v304 = vmul.f32 %v146, %v264
    %v305 = vmul.f32 %v146, %v265
    %v306 = vmul.f32 %v146, %v266
    %v307 = vmul.f32 %v146, %v267
    %v308 = vmul.f32 %v151, %v264
    %v309 = vmul.f32 %v151, %v265
    %v310 = vmul.f32 %v151, %v266
    %v311 = vmul.f32 %v151, %v267
    %v312 = vmul.f32 %v156, %v264
    %v313 = vmul.f32 %v156, %v265
    %v314 = vmul.f32 %v156, %v266
    %v315 = vmul.f32 %v156, %v267
    %v316 = vmul.f32 %v161, %v264
    %v317 = vmul.f32 %v161, %v265
    %v318 = vmul.f32 %v161, %v266
    %v319 = vmul.f32 %v161, %v267
    %v320 = vmul.f32 %v166, %v264
    %v321 = vmul.f32 %v166, %v265
    %v322 = vmul.f32 %v166, %v266
    %v323 = vmul.f32 %v166, %v267
    %v324 = vmul.f32 %v171, %v264
    %v325 = vmul.f32 %v171, %v265
    %v326 = vmul.f32 %v171, %v266
    %v327 = vmul.f32 %v171, %v267
    %v328 = vmul.f32 %v176, %v264
    %v329 = vmul.f32 %v176, %v265
    %v330 = vmul.f32 %v176, %v266
    %v331 = vmul.f32 %v176, %v267
    %v332 = vmul.f32 %v181, %v264
    %v333 = vmul.f32 %v181, %v265
    %v334 = vmul.f32 %v181, %v266
    %v335 = vmul.f32 %v181, %v267
    %v336 = vmul.f32 %v186, %v264
    %v337 = vmul.f32 %v186, %v265
    %v338 = vmul.f32 %v186, %v266
    %v339 = vmul.f32 %v186, %v267
    %v340 = vmul.f32 %v191, %v264
    %v341 = vmul.f32 %v191, %v265
    %v342 = vmul.f32 %v191, %v266
    %v343 = vmul.f32 %v191, %v267
    %v344 = vmul.f32 %v196, %v264
    %v345 = vmul.f32 %v196, %v265
    %v346 = vmul.f32 %v196, %v266
    %v347 = vmul.f32 %v196, %v267
    %v348 = vmul.f32 %v201, %v264
    %v349 = vmul.f32 %v201, %v265
    %v350 = vmul.f32 %v201, %v266
    %v351 = vmul.f32 %v201, %v267
    %v352 = vmul.f32 %v206, %v264
    %v353 = vmul.f32 %v206, %v265
    %v354 = vmul.f32 %v206, %v266
    %v355 = vmul.f32 %v206, %v267
    %v356 = vmul.f32 %v211, %v264
    %v357 = vmul.f32 %v211, %v265
    %v358 = vmul.f32 %v211, %v266
    %v359 = vmul.f32 %v211, %v267
    %v360 = vmul.f32 %v216, %v264
    %v361 = vmul.f32 %v216, %v265
    %v362 = vmul.f32 %v216, %v266
    %v363 = vmul.f32 %v216, %v267
    %v364 = vmul.f32 %v221, %v264
    %v365 = vmul.f32 %v221, %v265
    %v366 = vmul.f32 %v221, %v266
    %v367 = vmul.f32 %v221, %v267
    %v368 = vmul.f32 %v226, %v264
    %v369 = vmul.f32 %v226, %v265
    %v370 = vmul.f32 %v226, %v266
    %v371 = vmul.f32 %v226, %v267
    %v372 = vmul.f32 %v231, %v264
    %v373 = vmul.f32 %v231, %v265
    %v374 = vmul.f32 %v231, %v266
    %v375 = vmul.f32 %v231, %v267
    %v376 = vmul.f32 %v236, %v264
    %v377 = vmul.f32 %v236, %v265
    %v378 = vmul.f32 %v236, %v266
    %v379 = vmul.f32 %v236, %v267
    %v380 = vmul.f32 %v241, %v264
    %v381 = vmul.f32 %v241, %v265
    %v382 = vmul.f32 %v241, %v266
    %v383 = vmul.f32 %v241, %v267
    %v384 = vmul.f32 %v246, %v264
    %v385 = vmul.f32 %v246, %v265
    %v386 = vmul.f32 %v246, %v266
    %v387 = vmul.f32 %v246, %v267
    %v388 = vmul.f32 %v251, %v264
    %v389 = vmul.f32 %v251, %v265
    %v390 = vmul.f32 %v251, %v266
    %v391 = vmul.f32 %v251, %v267
    %v392 = vmul.f32 %v256, %v264
    %v393 = vmul.f32 %v256, %v265
    %v394 = vmul.f32 %v256, %v266
    %v395 = vmul.f32 %v256, %v267
    %v396 = vmul.f32 %v261, %v264
    %v397 = vmul.f32 %v261, %v265
    %v398 = vmul.f32 %v261, %v266
    %v399 = vmul.f32 %v261, %v267
    %s400 = scalar_lea.vmem %s1, 1
    %v401 = vld [vmem:[%s400] ss:$2 sm:$0xf]
    %402 = vset.pattern.permute.xlu0 1
    %403 = vperm.xlu0 %402, %v70
    %v404 = vpop.permute.xlu0 %403
    %406 = vset.pattern.permute.xlu0 1
    %407 = vperm.xlu0 %406, %v71
    %v408 = vpop.permute.xlu0 %407
    %410 = vset.pattern.permute.xlu0 1
    %411 = vperm.xlu0 %410, %v72
    %v412 = vpop.permute.xlu0 %411
    %414 = vset.pattern.permute.xlu0 1
    %415 = vperm.xlu0 %414, %v73
    %v416 = vpop.permute.xlu0 %415
    %418 = vset.pattern.permute.xlu0 1
    %419 = vperm.xlu0 %418, %v74
    %v420 = vpop.permute.xlu0 %419
    %422 = vset.pattern.permute.xlu0 1
    %423 = vperm.xlu0 %422, %v75
    %v424 = vpop.permute.xlu0 %423
    %426 = vset.pattern.permute.xlu0 1
    %427 = vperm.xlu0 %426, %v76
    %v428 = vpop.permute.xlu0 %427
    %430 = vset.pattern.permute.xlu0 1
    %431 = vperm.xlu0 %430, %v77
    %v432 = vpop.permute.xlu0 %431
    %434 = vset.pattern.permute.xlu0 1
    %435 = vperm.xlu0 %434, %v78
    %v436 = vpop.permute.xlu0 %435
    %438 = vset.pattern.permute.xlu0 1
    %439 = vperm.xlu0 %438, %v79
    %v440 = vpop.permute.xlu0 %439
    %442 = vset.pattern.permute.xlu0 1
    %443 = vperm.xlu0 %442, %v80
    %v444 = vpop.permute.xlu0 %443
    %446 = vset.pattern.permute.xlu0 1
    %447 = vperm.xlu0 %446, %v81
    %v448 = vpop.permute.xlu0 %447
    %450 = vset.pattern.permute.xlu0 1
    %451 = vperm.xlu0 %450, %v82
    %v452 = vpop.permute.xlu0 %451
    %454 = vset.pattern.permute.xlu0 1
    %455 = vperm.xlu0 %454, %v83
    %v456 = vpop.permute.xlu0 %455
    %458 = vset.pattern.permute.xlu0 1
    %459 = vperm.xlu0 %458, %v84
    %v460 = vpop.permute.xlu0 %459
    %462 = vset.pattern.permute.xlu0 1
    %463 = vperm.xlu0 %462, %v85
    %v464 = vpop.permute.xlu0 %463
    %466 = vset.pattern.permute.xlu0 1
    %467 = vperm.xlu0 %466, %v86
    %v468 = vpop.permute.xlu0 %467
    %470 = vset.pattern.permute.xlu0 1
    %471 = vperm.xlu0 %470, %v87
    %v472 = vpop.permute.xlu0 %471
    %474 = vset.pattern.permute.xlu0 1
    %475 = vperm.xlu0 %474, %v88
    %v476 = vpop.permute.xlu0 %475
    %478 = vset.pattern.permute.xlu0 1
    %479 = vperm.xlu0 %478, %v89
    %v480 = vpop.permute.xlu0 %479
    %482 = vset.pattern.permute.xlu0 1
    %483 = vperm.xlu0 %482, %v90
    %v484 = vpop.permute.xlu0 %483
    %486 = vset.pattern.permute.xlu0 1
    %487 = vperm.xlu0 %486, %v91
    %v488 = vpop.permute.xlu0 %487
    %490 = vset.pattern.permute.xlu0 1
    %491 = vperm.xlu0 %490, %v92
    %v492 = vpop.permute.xlu0 %491
    %494 = vset.pattern.permute.xlu0 1
    %495 = vperm.xlu0 %494, %v93
    %v496 = vpop.permute.xlu0 %495
    %498 = vset.pattern.permute.xlu0 1
    %499 = vperm.xlu0 %498, %v94
    %v500 = vpop.permute.xlu0 %499
    %502 = vset.pattern.permute.xlu0 1
    %503 = vperm.xlu0 %502, %v95
    %v504 = vpop.permute.xlu0 %503
    %506 = vset.pattern.permute.xlu0 1
    %507 = vperm.xlu0 %506, %v96
    %v508 = vpop.permute.xlu0 %507
    %510 = vset.pattern.permute.xlu0 1
    %511 = vperm.xlu0 %510, %v97
    %v512 = vpop.permute.xlu0 %511
    %514 = vset.pattern.permute.xlu0 1
    %515 = vperm.xlu0 %514, %v98
    %v516 = vpop.permute.xlu0 %515
    %518 = vset.pattern.permute.xlu0 1
    %519 = vperm.xlu0 %518, %v99
    %v520 = vpop.permute.xlu0 %519
    %522 = vset.pattern.permute.xlu0 1
    %523 = vperm.xlu0 %522, %v100
    %v524 = vpop.permute.xlu0 %523
    %526 = vset.pattern.permute.xlu0 1
    %527 = vperm.xlu0 %526, %v101
    %v528 = vpop.permute.xlu0 %527
    %v531 = vperm.slane %v401, 0
    %v532 = vperm.slane %v401, 1
    %v533 = vperm.slane %v401, 2
    %v534 = vperm.slane %v401, 3
    %v539 = vmul.f32 %v404, %v531
    %v540 = vmul.f32 %v404, %v532
    %v541 = vmul.f32 %v404, %v533
    %v542 = vmul.f32 %v404, %v534
    %v543 = vmul.f32 %v408, %v531
    %v544 = vmul.f32 %v408, %v532
    %v545 = vmul.f32 %v408, %v533
    %v546 = vmul.f32 %v408, %v534
    %v547 = vmul.f32 %v412, %v531
    %v548 = vmul.f32 %v412, %v532
    %v549 = vmul.f32 %v412, %v533
    %v550 = vmul.f32 %v412, %v534
    %v551 = vmul.f32 %v416, %v531
    %v552 = vmul.f32 %v416, %v532
    %v553 = vmul.f32 %v416, %v533
    %v554 = vmul.f32 %v416, %v534
    %v555 = vmul.f32 %v420, %v531
    %v556 = vmul.f32 %v420, %v532
    %v557 = vmul.f32 %v420, %v533
    %v558 = vmul.f32 %v420, %v534
    %v559 = vmul.f32 %v424, %v531
    %v560 = vmul.f32 %v424, %v532
    %v561 = vmul.f32 %v424, %v533
    %v562 = vmul.f32 %v424, %v534
    %v563 = vmul.f32 %v428, %v531
    %v564 = vmul.f32 %v428, %v532
    %v565 = vmul.f32 %v428, %v533
    %v566 = vmul.f32 %v428, %v534
    %v567 = vmul.f32 %v432, %v531
    %v568 = vmul.f32 %v432, %v532
    %v569 = vmul.f32 %v432, %v533
    %v570 = vmul.f32 %v432, %v534
    %v571 = vmul.f32 %v436, %v531
    %v572 = vmul.f32 %v436, %v532
    %v573 = vmul.f32 %v436, %v533
    %v574 = vmul.f32 %v436, %v534
    %v575 = vmul.f32 %v440, %v531
    %v576 = vmul.f32 %v440, %v532
    %v577 = vmul.f32 %v440, %v533
    %v578 = vmul.f32 %v440, %v534
    %v579 = vmul.f32 %v444, %v531
    %v580 = vmul.f32 %v444, %v532
    %v581 = vmul.f32 %v444, %v533
    %v582 = vmul.f32 %v444, %v534
    %v583 = vmul.f32 %v448, %v531
    %v584 = vmul.f32 %v448, %v532
    %v585 = vmul.f32 %v448, %v533
    %v586 = vmul.f32 %v448, %v534
    %v587 = vmul.f32 %v452, %v531
    %v588 = vmul.f32 %v452, %v532
    %v589 = vmul.f32 %v452, %v533
    %v590 = vmul.f32 %v452, %v534
    %v591 = vmul.f32 %v456, %v531
    %v592 = vmul.f32 %v456, %v532
    %v593 = vmul.f32 %v456, %v533
    %v594 = vmul.f32 %v456, %v534
    %v595 = vmul.f32 %v460, %v531
    %v596 = vmul.f32 %v460, %v532
    %v597 = vmul.f32 %v460, %v533
    %v598 = vmul.f32 %v460, %v534
    %v599 = vmul.f32 %v464, %v531
    %v600 = vmul.f32 %v464, %v532
    %v601 = vmul.f32 %v464, %v533
    %v602 = vmul.f32 %v464, %v534
    %v603 = vmul.f32 %v468, %v531
    %v604 = vmul.f32 %v468, %v532
    %v605 = vmul.f32 %v468, %v533
    %v606 = vmul.f32 %v468, %v534
    %v607 = vmul.f32 %v472, %v531
    %v608 = vmul.f32 %v472, %v532
    %v609 = vmul.f32 %v472, %v533
    %v610 = vmul.f32 %v472, %v534
    %v611 = vmul.f32 %v476, %v531
    %v612 = vmul.f32 %v476, %v532
    %v613 = vmul.f32 %v476, %v533
    %v614 = vmul.f32 %v476, %v534
    %v615 = vmul.f32 %v480, %v531
    %v616 = vmul.f32 %v480, %v532
    %v617 = vmul.f32 %v480, %v533
    %v618 = vmul.f32 %v480, %v534
    %v619 = vmul.f32 %v484, %v531
    %v620 = vmul.f32 %v484, %v532
    %v621 = vmul.f32 %v484, %v533
    %v622 = vmul.f32 %v484, %v534
    %v623 = vmul.f32 %v488, %v531
    %v624 = vmul.f32 %v488, %v532
    %v625 = vmul.f32 %v488, %v533
    %v626 = vmul.f32 %v488, %v534
    %v627 = vmul.f32 %v492, %v531
    %v628 = vmul.f32 %v492, %v532
    %v629 = vmul.f32 %v492, %v533
    %v630 = vmul.f32 %v492, %v534
    %v631 = vmul.f32 %v496, %v531
    %v632 = vmul.f32 %v496, %v532
    %v633 = vmul.f32 %v496, %v533
    %v634 = vmul.f32 %v496, %v534
    %v635 = vmul.f32 %v500, %v531
    %v636 = vmul.f32 %v500, %v532
    %v637 = vmul.f32 %v500, %v533
    %v638 = vmul.f32 %v500, %v534
    %v639 = vmul.f32 %v504, %v531
    %v640 = vmul.f32 %v504, %v532
    %v641 = vmul.f32 %v504, %v533
    %v642 = vmul.f32 %v504, %v534
    %v643 = vmul.f32 %v508, %v531
    %v644 = vmul.f32 %v508, %v532
    %v645 = vmul.f32 %v508, %v533
    %v646 = vmul.f32 %v508, %v534
    %v647 = vmul.f32 %v512, %v531
    %v648 = vmul.f32 %v512, %v532
    %v649 = vmul.f32 %v512, %v533
    %v650 = vmul.f32 %v512, %v534
    %v651 = vmul.f32 %v516, %v531
    %v652 = vmul.f32 %v516, %v532
    %v653 = vmul.f32 %v516, %v533
    %v654 = vmul.f32 %v516, %v534
    %v655 = vmul.f32 %v520, %v531
    %v656 = vmul.f32 %v520, %v532
    %v657 = vmul.f32 %v520, %v533
    %v658 = vmul.f32 %v520, %v534
    %v659 = vmul.f32 %v524, %v531
    %v660 = vmul.f32 %v524, %v532
    %v661 = vmul.f32 %v524, %v533
    %v662 = vmul.f32 %v524, %v534
    %v663 = vmul.f32 %v528, %v531
    %v664 = vmul.f32 %v528, %v532
    %v665 = vmul.f32 %v528, %v533
    %v666 = vmul.f32 %v528, %v534
    %v667 = vadd.f32 %v272, %v539
    %v668 = vadd.f32 %v273, %v540
    %v669 = vadd.f32 %v274, %v541
    %v670 = vadd.f32 %v275, %v542
    %v671 = vadd.f32 %v276, %v543
    %v672 = vadd.f32 %v277, %v544
    %v673 = vadd.f32 %v278, %v545
    %v674 = vadd.f32 %v279, %v546
    %v675 = vadd.f32 %v280, %v547
    %v676 = vadd.f32 %v281, %v548
    %v677 = vadd.f32 %v282, %v549
    %v678 = vadd.f32 %v283, %v550
    %v679 = vadd.f32 %v284, %v551
    %v680 = vadd.f32 %v285, %v552
    %v681 = vadd.f32 %v286, %v553
    %v682 = vadd.f32 %v287, %v554
    %v683 = vadd.f32 %v288, %v555
    %v684 = vadd.f32 %v289, %v556
    %v685 = vadd.f32 %v290, %v557
    %v686 = vadd.f32 %v291, %v558
    %v687 = vadd.f32 %v292, %v559
    %v688 = vadd.f32 %v293, %v560
    %v689 = vadd.f32 %v294, %v561
    %v690 = vadd.f32 %v295, %v562
    %v691 = vadd.f32 %v296, %v563
    %v692 = vadd.f32 %v297, %v564
    %v693 = vadd.f32 %v298, %v565
    %v694 = vadd.f32 %v299, %v566
    %v695 = vadd.f32 %v300, %v567
    %v696 = vadd.f32 %v301, %v568
    %v697 = vadd.f32 %v302, %v569
    %v698 = vadd.f32 %v303, %v570
    %v699 = vadd.f32 %v304, %v571
    %v700 = vadd.f32 %v305, %v572
    %v701 = vadd.f32 %v306, %v573
    %v702 = vadd.f32 %v307, %v574
    %v703 = vadd.f32 %v308, %v575
    %v704 = vadd.f32 %v309, %v576
    %v705 = vadd.f32 %v310, %v577
    %v706 = vadd.f32 %v311, %v578
    %v707 = vadd.f32 %v312, %v579
    %v708 = vadd.f32 %v313, %v580
    %v709 = vadd.f32 %v314, %v581
    %v710 = vadd.f32 %v315, %v582
    %v711 = vadd.f32 %v316, %v583
    %v712 = vadd.f32 %v317, %v584
    %v713 = vadd.f32 %v318, %v585
    %v714 = vadd.f32 %v319, %v586
    %v715 = vadd.f32 %v320, %v587
    %v716 = vadd.f32 %v321, %v588
    %v717 = vadd.f32 %v322, %v589
    %v718 = vadd.f32 %v323, %v590
    %v719 = vadd.f32 %v324, %v591
    %v720 = vadd.f32 %v325, %v592
    %v721 = vadd.f32 %v326, %v593
    %v722 = vadd.f32 %v327, %v594
    %v723 = vadd.f32 %v328, %v595
    %v724 = vadd.f32 %v329, %v596
    %v725 = vadd.f32 %v330, %v597
    %v726 = vadd.f32 %v331, %v598
    %v727 = vadd.f32 %v332, %v599
    %v728 = vadd.f32 %v333, %v600
    %v729 = vadd.f32 %v334, %v601
    %v730 = vadd.f32 %v335, %v602
    %v731 = vadd.f32 %v336, %v603
    %v732 = vadd.f32 %v337, %v604
    %v733 = vadd.f32 %v338, %v605
    %v734 = vadd.f32 %v339, %v606
    %v735 = vadd.f32 %v340, %v607
    %v736 = vadd.f32 %v341, %v608
    %v737 = vadd.f32 %v342, %v609
    %v738 = vadd.f32 %v343, %v610
    %v739 = vadd.f32 %v344, %v611
    %v740 = vadd.f32 %v345, %v612
    %v741 = vadd.f32 %v346, %v613
    %v742 = vadd.f32 %v347, %v614
    %v743 = vadd.f32 %v348, %v615
    %v744 = vadd.f32 %v349, %v616
    %v745 = vadd.f32 %v350, %v617
    %v746 = vadd.f32 %v351, %v618
    %v747 = vadd.f32 %v352, %v619
    %v748 = vadd.f32 %v353, %v620
    %v749 = vadd.f32 %v354, %v621
    %v750 = vadd.f32 %v355, %v622
    %v751 = vadd.f32 %v356, %v623
    %v752 = vadd.f32 %v357, %v624
    %v753 = vadd.f32 %v358, %v625
    %v754 = vadd.f32 %v359, %v626
    %v755 = vadd.f32 %v360, %v627
    %v756 = vadd.f32 %v361, %v628
    %v757 = vadd.f32 %v362, %v629
    %v758 = vadd.f32 %v363, %v630
    %v759 = vadd.f32 %v364, %v631
    %v760 = vadd.f32 %v365, %v632
    %v761 = vadd.f32 %v366, %v633
    %v762 = vadd.f32 %v367, %v634
    %v763 = vadd.f32 %v368, %v635
    %v764 = vadd.f32 %v369, %v636
    %v765 = vadd.f32 %v370, %v637
    %v766 = vadd.f32 %v371, %v638
    %v767 = vadd.f32 %v372, %v639
    %v768 = vadd.f32 %v373, %v640
    %v769 = vadd.f32 %v374, %v641
    %v770 = vadd.f32 %v375, %v642
    %v771 = vadd.f32 %v376, %v643
    %v772 = vadd.f32 %v377, %v644
    %v773 = vadd.f32 %v378, %v645
    %v774 = vadd.f32 %v379, %v646
    %v775 = vadd.f32 %v380, %v647
    %v776 = vadd.f32 %v381, %v648
    %v777 = vadd.f32 %v382, %v649
    %v778 = vadd.f32 %v383, %v650
    %v779 = vadd.f32 %v384, %v651
    %v780 = vadd.f32 %v385, %v652
    %v781 = vadd.f32 %v386, %v653
    %v782 = vadd.f32 %v387, %v654
    %v783 = vadd.f32 %v388, %v655
    %v784 = vadd.f32 %v389, %v656
    %v785 = vadd.f32 %v390, %v657
    %v786 = vadd.f32 %v391, %v658
    %v787 = vadd.f32 %v392, %v659
    %v788 = vadd.f32 %v393, %v660
    %v789 = vadd.f32 %v394, %v661
    %v790 = vadd.f32 %v395, %v662
    %v791 = vadd.f32 %v396, %v663
    %v792 = vadd.f32 %v397, %v664
    %v793 = vadd.f32 %v398, %v665
    %v794 = vadd.f32 %v399, %v666
    %v795 = vld [vmem:[#allocation2] sm:$0xf]
    %v797 = vperm.slane %v795, 0
    %v798 = vperm.slane %v795, 1
    %v799 = vperm.slane %v795, 2
    %v800 = vperm.slane %v795, 3
    %v805 = vadd.f32 %v667, %v797
    %v806 = vadd.f32 %v668, %v798
    %v807 = vadd.f32 %v669, %v799
    %v808 = vadd.f32 %v670, %v800
    %v809 = vadd.f32 %v671, %v797
    %v810 = vadd.f32 %v672, %v798
    %v811 = vadd.f32 %v673, %v799
    %v812 = vadd.f32 %v674, %v800
    %v813 = vadd.f32 %v675, %v797
    %v814 = vadd.f32 %v676, %v798
    %v815 = vadd.f32 %v677, %v799
    %v816 = vadd.f32 %v678, %v800
    %v817 = vadd.f32 %v679, %v797
    %v818 = vadd.f32 %v680, %v798
    %v819 = vadd.f32 %v681, %v799
    %v820 = vadd.f32 %v682, %v800
    %v821 = vadd.f32 %v683, %v797
    %v822 = vadd.f32 %v684, %v798
    %v823 = vadd.f32 %v685, %v799
    %v824 = vadd.f32 %v686, %v800
    %v825 = vadd.f32 %v687, %v797
    %v826 = vadd.f32 %v688, %v798
    %v827 = vadd.f32 %v689, %v799
    %v828 = vadd.f32 %v690, %v800
    %v829 = vadd.f32 %v691, %v797
    %v830 = vadd.f32 %v692, %v798
    %v831 = vadd.f32 %v693, %v799
    %v832 = vadd.f32 %v694, %v800
    %v833 = vadd.f32 %v695, %v797
    %v834 = vadd.f32 %v696, %v798
    %v835 = vadd.f32 %v697, %v799
    %v836 = vadd.f32 %v698, %v800
    %v837 = vadd.f32 %v699, %v797
    %v838 = vadd.f32 %v700, %v798
    %v839 = vadd.f32 %v701, %v799
    %v840 = vadd.f32 %v702, %v800
    %v841 = vadd.f32 %v703, %v797
    %v842 = vadd.f32 %v704, %v798
    %v843 = vadd.f32 %v705, %v799
    %v844 = vadd.f32 %v706, %v800
    %v845 = vadd.f32 %v707, %v797
    %v846 = vadd.f32 %v708, %v798
    %v847 = vadd.f32 %v709, %v799
    %v848 = vadd.f32 %v710, %v800
    %v849 = vadd.f32 %v711, %v797
    %v850 = vadd.f32 %v712, %v798
    %v851 = vadd.f32 %v713, %v799
    %v852 = vadd.f32 %v714, %v800
    %v853 = vadd.f32 %v715, %v797
    %v854 = vadd.f32 %v716, %v798
    %v855 = vadd.f32 %v717, %v799
    %v856 = vadd.f32 %v718, %v800
    %v857 = vadd.f32 %v719, %v797
    %v858 = vadd.f32 %v720, %v798
    %v859 = vadd.f32 %v721, %v799
    %v860 = vadd.f32 %v722, %v800
    %v861 = vadd.f32 %v723, %v797
    %v862 = vadd.f32 %v724, %v798
    %v863 = vadd.f32 %v725, %v799
    %v864 = vadd.f32 %v726, %v800
    %v865 = vadd.f32 %v727, %v797
    %v866 = vadd.f32 %v728, %v798
    %v867 = vadd.f32 %v729, %v799
    %v868 = vadd.f32 %v730, %v800
    %v869 = vadd.f32 %v731, %v797
    %v870 = vadd.f32 %v732, %v798
    %v871 = vadd.f32 %v733, %v799
    %v872 = vadd.f32 %v734, %v800
    %v873 = vadd.f32 %v735, %v797
    %v874 = vadd.f32 %v736, %v798
    %v875 = vadd.f32 %v737, %v799
    %v876 = vadd.f32 %v738, %v800
    %v877 = vadd.f32 %v739, %v797
    %v878 = vadd.f32 %v740, %v798
    %v879 = vadd.f32 %v741, %v799
    %v880 = vadd.f32 %v742, %v800
    %v881 = vadd.f32 %v743, %v797
    %v882 = vadd.f32 %v744, %v798
    %v883 = vadd.f32 %v745, %v799
    %v884 = vadd.f32 %v746, %v800
    %v885 = vadd.f32 %v747, %v797
    %v886 = vadd.f32 %v748, %v798
    %v887 = vadd.f32 %v749, %v799
    %v888 = vadd.f32 %v750, %v800
    %v889 = vadd.f32 %v751, %v797
    %v890 = vadd.f32 %v752, %v798
    %v891 = vadd.f32 %v753, %v799
    %v892 = vadd.f32 %v754, %v800
    %v893 = vadd.f32 %v755, %v797
    %v894 = vadd.f32 %v756, %v798
    %v895 = vadd.f32 %v757, %v799
    %v896 = vadd.f32 %v758, %v800
    %v897 = vadd.f32 %v759, %v797
    %v898 = vadd.f32 %v760, %v798
    %v899 = vadd.f32 %v761, %v799
    %v900 = vadd.f32 %v762, %v800
    %v901 = vadd.f32 %v763, %v797
    %v902 = vadd.f32 %v764, %v798
    %v903 = vadd.f32 %v765, %v799
    %v904 = vadd.f32 %v766, %v800
    %v905 = vadd.f32 %v767, %v797
    %v906 = vadd.f32 %v768, %v798
    %v907 = vadd.f32 %v769, %v799
    %v908 = vadd.f32 %v770, %v800
    %v909 = vadd.f32 %v771, %v797
    %v910 = vadd.f32 %v772, %v798
    %v911 = vadd.f32 %v773, %v799
    %v912 = vadd.f32 %v774, %v800
    %v913 = vadd.f32 %v775, %v797
    %v914 = vadd.f32 %v776, %v798
    %v915 = vadd.f32 %v777, %v799
    %v916 = vadd.f32 %v778, %v800
    %v917 = vadd.f32 %v779, %v797
    %v918 = vadd.f32 %v780, %v798
    %v919 = vadd.f32 %v781, %v799
    %v920 = vadd.f32 %v782, %v800
    %v921 = vadd.f32 %v783, %v797
    %v922 = vadd.f32 %v784, %v798
    %v923 = vadd.f32 %v785, %v799
    %v924 = vadd.f32 %v786, %v800
    %v925 = vadd.f32 %v787, %v797
    %v926 = vadd.f32 %v788, %v798
    %v927 = vadd.f32 %v789, %v799
    %v928 = vadd.f32 %v790, %v800
    %v929 = vadd.f32 %v791, %v797
    %v930 = vadd.f32 %v792, %v798
    %v931 = vadd.f32 %v793, %v799
    %v932 = vadd.f32 %v794, %v800
    %v933 = vtanh.pop %v805
    %v934 = vtanh.pop %v806
    %v935 = vtanh.pop %v807
    %v936 = vtanh.pop %v808
    %v937 = vtanh.pop %v809
    %v938 = vtanh.pop %v810
    %v939 = vtanh.pop %v811
    %v940 = vtanh.pop %v812
    %v941 = vtanh.pop %v813
    %v942 = vtanh.pop %v814
    %v943 = vtanh.pop %v815
    %v944 = vtanh.pop %v816
    %v945 = vtanh.pop %v817
    %v946 = vtanh.pop %v818
    %v947 = vtanh.pop %v819
    %v948 = vtanh.pop %v820
    %v949 = vtanh.pop %v821
    %v950 = vtanh.pop %v822
    %v951 = vtanh.pop %v823
    %v952 = vtanh.pop %v824
    %v953 = vtanh.pop %v825
    %v954 = vtanh.pop %v826
    %v955 = vtanh.pop %v827
    %v956 = vtanh.pop %v828
    %v957 = vtanh.pop %v829
    %v958 = vtanh.pop %v830
    %v959 = vtanh.pop %v831
    %v960 = vtanh.pop %v832
    %v961 = vtanh.pop %v833
    %v962 = vtanh.pop %v834
    %v963 = vtanh.pop %v835
    %v964 = vtanh.pop %v836
    %v965 = vtanh.pop %v837
    %v966 = vtanh.pop %v838
    %v967 = vtanh.pop %v839
    %v968 = vtanh.pop %v840
    %v969 = vtanh.pop %v841
    %v970 = vtanh.pop %v842
    %v971 = vtanh.pop %v843
    %v972 = vtanh.pop %v844
    %v973 = vtanh.pop %v845
    %v974 = vtanh.pop %v846
    %v975 = vtanh.pop %v847
    %v976 = vtanh.pop %v848
    %v977 = vtanh.pop %v849
    %v978 = vtanh.pop %v850
    %v979 = vtanh.pop %v851
    %v980 = vtanh.pop %v852
    %v981 = vtanh.pop %v853
    %v982 = vtanh.pop %v854
    %v983 = vtanh.pop %v855
    %v984 = vtanh.pop %v856
    %v985 = vtanh.pop %v857
    %v986 = vtanh.pop %v858
    %v987 = vtanh.pop %v859
    %v988 = vtanh.pop %v860
    %v989 = vtanh.pop %v861
    %v990 = vtanh.pop %v862
    %v991 = vtanh.pop %v863
    %v992 = vtanh.pop %v864
    %v993 = vtanh.pop %v865
    %v994 = vtanh.pop %v866
    %v995 = vtanh.pop %v867
    %v996 = vtanh.pop %v868
    %v997 = vtanh.pop %v869
    %v998 = vtanh.pop %v870
    %v999 = vtanh.pop %v871
    %v1000 = vtanh.pop %v872
    %v1001 = vtanh.pop %v873
    %v1002 = vtanh.pop %v874
    %v1003 = vtanh.pop %v875
    %v1004 = vtanh.pop %v876
    %v1005 = vtanh.pop %v877
    %v1006 = vtanh.pop %v878
    %v1007 = vtanh.pop %v879
    %v1008 = vtanh.pop %v880
    %v1009 = vtanh.pop %v881
    %v1010 = vtanh.pop %v882
    %v1011 = vtanh.pop %v883
    %v1012 = vtanh.pop %v884
    %v1013 = vtanh.pop %v885
    %v1014 = vtanh.pop %v886
    %v1015 = vtanh.pop %v887
    %v1016 = vtanh.pop %v888
    %v1017 = vtanh.pop %v889
    %v1018 = vtanh.pop %v890
    %v1019 = vtanh.pop %v891
    %v1020 = vtanh.pop %v892
    %v1021 = vtanh.pop %v893
    %v1022 = vtanh.pop %v894
    %v1023 = vtanh.pop %v895
    %v1024 = vtanh.pop %v896
    %v1025 = vtanh.pop %v897
    %v1026 = vtanh.pop %v898
    %v1027 = vtanh.pop %v899
    %v1028 = vtanh.pop %v900
    %v1029 = vtanh.pop %v901
    %v1030 = vtanh.pop %v902
    %v1031 = vtanh.pop %v903
    %v1032 = vtanh.pop %v904
    %v1033 = vtanh.pop %v905
    %v1034 = vtanh.pop %v906
    %v1035 = vtanh.pop %v907
    %v1036 = vtanh.pop %v908
    %v1037 = vtanh.pop %v909
    %v1038 = vtanh.pop %v910
    %v1039 = vtanh.pop %v911
    %v1040 = vtanh.pop %v912
    %v1041 = vtanh.pop %v913
    %v1042 = vtanh.pop %v914
    %v1043 = vtanh.pop %v915
    %v1044 = vtanh.pop %v916
    %v1045 = vtanh.pop %v917
    %v1046 = vtanh.pop %v918
    %v1047 = vtanh.pop %v919
    %v1048 = vtanh.pop %v920
    %v1049 = vtanh.pop %v921
    %v1050 = vtanh.pop %v922
    %v1051 = vtanh.pop %v923
    %v1052 = vtanh.pop %v924
    %v1053 = vtanh.pop %v925
    %v1054 = vtanh.pop %v926
    %v1055 = vtanh.pop %v927
    %v1056 = vtanh.pop %v928
    %v1057 = vtanh.pop %v929
    %v1058 = vtanh.pop %v930
    %v1059 = vtanh.pop %v931
    %v1060 = vtanh.pop %v932
    %v1061 = vpack.c.bf16 %v937, %v933
    %v1062 = vpack.c.bf16 %v938, %v934
    %v1063 = vpack.c.bf16 %v939, %v935
    %v1064 = vpack.c.bf16 %v940, %v936
    %v1065 = vpack.c.bf16 %v945, %v941
    %v1066 = vpack.c.bf16 %v946, %v942
    %v1067 = vpack.c.bf16 %v947, %v943
    %v1068 = vpack.c.bf16 %v948, %v944
    %v1069 = vpack.c.bf16 %v953, %v949
    %v1070 = vpack.c.bf16 %v954, %v950
    %v1071 = vpack.c.bf16 %v955, %v951
    %v1072 = vpack.c.bf16 %v956, %v952
    %v1073 = vpack.c.bf16 %v961, %v957
    %v1074 = vpack.c.bf16 %v962, %v958
    %v1075 = vpack.c.bf16 %v963, %v959
    %v1076 = vpack.c.bf16 %v964, %v960
    %v1077 = vpack.c.bf16 %v969, %v965
    %v1078 = vpack.c.bf16 %v970, %v966
    %v1079 = vpack.c.bf16 %v971, %v967
    %v1080 = vpack.c.bf16 %v972, %v968
    %v1081 = vpack.c.bf16 %v977, %v973
    %v1082 = vpack.c.bf16 %v978, %v974
    %v1083 = vpack.c.bf16 %v979, %v975
    %v1084 = vpack.c.bf16 %v980, %v976
    %v1085 = vpack.c.bf16 %v985, %v981
    %v1086 = vpack.c.bf16 %v986, %v982
    %v1087 = vpack.c.bf16 %v987, %v983
    %v1088 = vpack.c.bf16 %v988, %v984
    %v1089 = vpack.c.bf16 %v993, %v989
    %v1090 = vpack.c.bf16 %v994, %v990
    %v1091 = vpack.c.bf16 %v995, %v991
    %v1092 = vpack.c.bf16 %v996, %v992
    %v1093 = vpack.c.bf16 %v1001, %v997
    %v1094 = vpack.c.bf16 %v1002, %v998
    %v1095 = vpack.c.bf16 %v1003, %v999
    %v1096 = vpack.c.bf16 %v1004, %v1000
    %v1097 = vpack.c.bf16 %v1009, %v1005
    %v1098 = vpack.c.bf16 %v1010, %v1006
    %v1099 = vpack.c.bf16 %v1011, %v1007
    %v1100 = vpack.c.bf16 %v1012, %v1008
    %v1101 = vpack.c.bf16 %v1017, %v1013
    %v1102 = vpack.c.bf16 %v1018, %v1014
    %v1103 = vpack.c.bf16 %v1019, %v1015
    %v1104 = vpack.c.bf16 %v1020, %v1016
    %v1105 = vpack.c.bf16 %v1025, %v1021
    %v1106 = vpack.c.bf16 %v1026, %v1022
    %v1107 = vpack.c.bf16 %v1027, %v1023
    %v1108 = vpack.c.bf16 %v1028, %v1024
    %v1109 = vpack.c.bf16 %v1033, %v1029
    %v1110 = vpack.c.bf16 %v1034, %v1030
    %v1111 = vpack.c.bf16 %v1035, %v1031
    %v1112 = vpack.c.bf16 %v1036, %v1032
    %v1113 = vpack.c.bf16 %v1041, %v1037
    %v1114 = vpack.c.bf16 %v1042, %v1038
    %v1115 = vpack.c.bf16 %v1043, %v1039
    %v1116 = vpack.c.bf16 %v1044, %v1040
    %v1117 = vpack.c.bf16 %v1049, %v1045
    %v1118 = vpack.c.bf16 %v1050, %v1046
    %v1119 = vpack.c.bf16 %v1051, %v1047
    %v1120 = vpack.c.bf16 %v1052, %v1048
    %v1121 = vpack.c.bf16 %v1057, %v1053
    %v1122 = vpack.c.bf16 %v1058, %v1054
    %v1123 = vpack.c.bf16 %v1059, %v1055
    %v1124 = vpack.c.bf16 %v1060, %v1056
    %v1125 = vld [vmem:[#allocation5] sm:$0xff]
    %v1126 = vld [vmem:[#allocation5 + $0x8] sm:$0xff]
    %v1127 = vld [vmem:[#allocation5 + $0x10] sm:$0xff]
    %v1128 = vld [vmem:[#allocation5 + $0x18] sm:$0xff]
    %v1129 = vld [vmem:[#allocation5 + $0x20] sm:$0xff]
    %v1130 = vld [vmem:[#allocation5 + $0x28] sm:$0xff]
    %v1131 = vld [vmem:[#allocation5 + $0x30] sm:$0xff]
    %v1132 = vld [vmem:[#allocation5 + $0x38] sm:$0xff]
    %v1133 = vld [vmem:[#allocation5 + $0x40] sm:$0xff]
    %v1134 = vld [vmem:[#allocation5 + $0x48] sm:$0xff]
    %v1135 = vld [vmem:[#allocation5 + $0x50] sm:$0xff]
    %v1136 = vld [vmem:[#allocation5 + $0x58] sm:$0xff]
    %v1137 = vld [vmem:[#allocation5 + $0x60] sm:$0xff]
    %v1138 = vld [vmem:[#allocation5 + $0x68] sm:$0xff]
    %v1139 = vld [vmem:[#allocation5 + $0x70] sm:$0xff]
    %v1140 = vld [vmem:[#allocation5 + $0x78] sm:$0xff]
    %v1141 = vld [vmem:[#allocation5 + $0x80] sm:$0xff]
    %v1142 = vld [vmem:[#allocation5 + $0x88] sm:$0xff]
    %v1143 = vld [vmem:[#allocation5 + $0x90] sm:$0xff]
    %v1144 = vld [vmem:[#allocation5 + $0x98] sm:$0xff]
    %v1145 = vld [vmem:[#allocation5 + $0xa0] sm:$0xff]
    %v1146 = vld [vmem:[#allocation5 + $0xa8] sm:$0xff]
    %v1147 = vld [vmem:[#allocation5 + $0xb0] sm:$0xff]
    %v1148 = vld [vmem:[#allocation5 + $0xb8] sm:$0xff]
    %v1149 = vld [vmem:[#allocation5 + $0xc0] sm:$0xff]
    %v1150 = vld [vmem:[#allocation5 + $0xc8] sm:$0xff]
    %v1151 = vld [vmem:[#allocation5 + $0xd0] sm:$0xff]
    %v1152 = vld [vmem:[#allocation5 + $0xd8] sm:$0xff]
    %v1153 = vld [vmem:[#allocation5 + $0xe0] sm:$0xff]
    %v1154 = vld [vmem:[#allocation5 + $0xe8] sm:$0xff]
    %v1155 = vld [vmem:[#allocation5 + $0xf0] sm:$0xff]
    %v1156 = vld [vmem:[#allocation5 + $0xf8] sm:$0xff]
    %v1157 = vld [vmem:[#allocation5 + $0x100] sm:$0xff]
    %v1158 = vld [vmem:[#allocation5 + $0x108] sm:$0xff]
    %v1159 = vld [vmem:[#allocation5 + $0x110] sm:$0xff]
    %v1160 = vld [vmem:[#allocation5 + $0x118] sm:$0xff]
    %v1161 = vld [vmem:[#allocation5 + $0x120] sm:$0xff]
    %v1162 = vld [vmem:[#allocation5 + $0x128] sm:$0xff]
    %v1163 = vld [vmem:[#allocation5 + $0x130] sm:$0xff]
    %v1164 = vld [vmem:[#allocation5 + $0x138] sm:$0xff]
    %v1165 = vld [vmem:[#allocation5 + $0x140] sm:$0xff]
    %v1166 = vld [vmem:[#allocation5 + $0x148] sm:$0xff]
    %v1167 = vld [vmem:[#allocation5 + $0x150] sm:$0xff]
    %v1168 = vld [vmem:[#allocation5 + $0x158] sm:$0xff]
    %v1169 = vld [vmem:[#allocation5 + $0x160] sm:$0xff]
    %v1170 = vld [vmem:[#allocation5 + $0x168] sm:$0xff]
    %v1171 = vld [vmem:[#allocation5 + $0x170] sm:$0xff]
    %v1172 = vld [vmem:[#allocation5 + $0x178] sm:$0xff]
    %v1173 = vld [vmem:[#allocation5 + $0x180] sm:$0xff]
    %v1174 = vld [vmem:[#allocation5 + $0x188] sm:$0xff]
    %v1175 = vld [vmem:[#allocation5 + $0x190] sm:$0xff]
    %v1176 = vld [vmem:[#allocation5 + $0x198] sm:$0xff]
    %v1177 = vld [vmem:[#allocation5 + $0x1a0] sm:$0xff]
    %v1178 = vld [vmem:[#allocation5 + $0x1a8] sm:$0xff]
    %v1179 = vld [vmem:[#allocation5 + $0x1b0] sm:$0xff]
    %v1180 = vld [vmem:[#allocation5 + $0x1b8] sm:$0xff]
    %v1181 = vld [vmem:[#allocation5 + $0x1c0] sm:$0xff]
    %v1182 = vld [vmem:[#allocation5 + $0x1c8] sm:$0xff]
    %v1183 = vld [vmem:[#allocation5 + $0x1d0] sm:$0xff]
    %v1184 = vld [vmem:[#allocation5 + $0x1d8] sm:$0xff]
    %v1185 = vld [vmem:[#allocation5 + $0x1e0] sm:$0xff]
    %v1186 = vld [vmem:[#allocation5 + $0x1e8] sm:$0xff]
    %v1187 = vld [vmem:[#allocation5 + $0x1f0] sm:$0xff]
    %v1188 = vld [vmem:[#allocation5 + $0x1f8] sm:$0xff]
    %v1189 = vld [vmem:[#allocation5 + $0x200] sm:$0xff]
    %v1190 = vld [vmem:[#allocation5 + $0x208] sm:$0xff]
    %v1191 = vld [vmem:[#allocation5 + $0x210] sm:$0xff]
    %v1192 = vld [vmem:[#allocation5 + $0x218] sm:$0xff]
    %v1193 = vld [vmem:[#allocation5 + $0x220] sm:$0xff]
    %v1194 = vld [vmem:[#allocation5 + $0x228] sm:$0xff]
    %v1195 = vld [vmem:[#allocation5 + $0x230] sm:$0xff]
    %v1196 = vld [vmem:[#allocation5 + $0x238] sm:$0xff]
    %v1197 = vld [vmem:[#allocation5 + $0x240] sm:$0xff]
    %v1198 = vld [vmem:[#allocation5 + $0x248] sm:$0xff]
    %v1199 = vld [vmem:[#allocation5 + $0x250] sm:$0xff]
    %v1200 = vld [vmem:[#allocation5 + $0x258] sm:$0xff]
    %v1201 = vld [vmem:[#allocation5 + $0x260] sm:$0xff]
    %v1202 = vld [vmem:[#allocation5 + $0x268] sm:$0xff]
    %v1203 = vld [vmem:[#allocation5 + $0x270] sm:$0xff]
    %v1204 = vld [vmem:[#allocation5 + $0x278] sm:$0xff]
    %v1205 = vld [vmem:[#allocation5 + $0x280] sm:$0xff]
    %v1206 = vld [vmem:[#allocation5 + $0x288] sm:$0xff]
    %v1207 = vld [vmem:[#allocation5 + $0x290] sm:$0xff]
    %v1208 = vld [vmem:[#allocation5 + $0x298] sm:$0xff]
    %v1209 = vld [vmem:[#allocation5 + $0x2a0] sm:$0xff]
    %v1210 = vld [vmem:[#allocation5 + $0x2a8] sm:$0xff]
    %v1211 = vld [vmem:[#allocation5 + $0x2b0] sm:$0xff]
    %v1212 = vld [vmem:[#allocation5 + $0x2b8] sm:$0xff]
    %v1213 = vld [vmem:[#allocation5 + $0x2c0] sm:$0xff]
    %v1214 = vld [vmem:[#allocation5 + $0x2c8] sm:$0xff]
    %v1215 = vld [vmem:[#allocation5 + $0x2d0] sm:$0xff]
    %v1216 = vld [vmem:[#allocation5 + $0x2d8] sm:$0xff]
    %v1217 = vld [vmem:[#allocation5 + $0x2e0] sm:$0xff]
    %v1218 = vld [vmem:[#allocation5 + $0x2e8] sm:$0xff]
    %v1219 = vld [vmem:[#allocation5 + $0x2f0] sm:$0xff]
    %v1220 = vld [vmem:[#allocation5 + $0x2f8] sm:$0xff]
    %v1221 = vld [vmem:[#allocation5 + $0x300] sm:$0xff]
    %v1222 = vld [vmem:[#allocation5 + $0x308] sm:$0xff]
    %v1223 = vld [vmem:[#allocation5 + $0x310] sm:$0xff]
    %v1224 = vld [vmem:[#allocation5 + $0x318] sm:$0xff]
    %v1225 = vld [vmem:[#allocation5 + $0x320] sm:$0xff]
    %v1226 = vld [vmem:[#allocation5 + $0x328] sm:$0xff]
    %v1227 = vld [vmem:[#allocation5 + $0x330] sm:$0xff]
    %v1228 = vld [vmem:[#allocation5 + $0x338] sm:$0xff]
    %v1229 = vld [vmem:[#allocation5 + $0x340] sm:$0xff]
    %v1230 = vld [vmem:[#allocation5 + $0x348] sm:$0xff]
    %v1231 = vld [vmem:[#allocation5 + $0x350] sm:$0xff]
    %v1232 = vld [vmem:[#allocation5 + $0x358] sm:$0xff]
    %v1233 = vld [vmem:[#allocation5 + $0x360] sm:$0xff]
    %v1234 = vld [vmem:[#allocation5 + $0x368] sm:$0xff]
    %v1235 = vld [vmem:[#allocation5 + $0x370] sm:$0xff]
    %v1236 = vld [vmem:[#allocation5 + $0x378] sm:$0xff]
    %v1237 = vld [vmem:[#allocation5 + $0x380] sm:$0xff]
    %v1238 = vld [vmem:[#allocation5 + $0x388] sm:$0xff]
    %v1239 = vld [vmem:[#allocation5 + $0x390] sm:$0xff]
    %v1240 = vld [vmem:[#allocation5 + $0x398] sm:$0xff]
    %v1241 = vld [vmem:[#allocation5 + $0x3a0] sm:$0xff]
    %v1242 = vld [vmem:[#allocation5 + $0x3a8] sm:$0xff]
    %v1243 = vld [vmem:[#allocation5 + $0x3b0] sm:$0xff]
    %v1244 = vld [vmem:[#allocation5 + $0x3b8] sm:$0xff]
    %v1245 = vld [vmem:[#allocation5 + $0x3c0] sm:$0xff]
    %v1246 = vld [vmem:[#allocation5 + $0x3c8] sm:$0xff]
    %v1247 = vld [vmem:[#allocation5 + $0x3d0] sm:$0xff]
    %v1248 = vld [vmem:[#allocation5 + $0x3d8] sm:$0xff]
    %v1249 = vld [vmem:[#allocation5 + $0x3e0] sm:$0xff]
    %v1250 = vld [vmem:[#allocation5 + $0x3e8] sm:$0xff]
    %v1251 = vld [vmem:[#allocation5 + $0x3f0] sm:$0xff]
    %v1252 = vld [vmem:[#allocation5 + $0x3f8] sm:$0xff]
    %v1253 = vld [vmem:[#allocation7] sm:$0xf]
    %v1255 = vperm.slane %v1253, 0
    %v1256 = vperm.slane %v1253, 1
    %v1257 = vperm.slane %v1253, 2
    %v1258 = vperm.slane %v1253, 3
    %v1391 = vunpack.c.l.b16 %v1125
    %v1392 = vunpack.c.h.b16 %v1125
    %v1393 = vunpack.c.l.b16 %v1126
    %v1394 = vunpack.c.h.b16 %v1126
    %v1395 = vunpack.c.l.b16 %v1127
    %v1396 = vunpack.c.h.b16 %v1127
    %v1397 = vunpack.c.l.b16 %v1128
    %v1398 = vunpack.c.h.b16 %v1128
    %v1399 = vunpack.c.l.b16 %v1129
    %v1400 = vunpack.c.h.b16 %v1129
    %v1401 = vunpack.c.l.b16 %v1130
    %v1402 = vunpack.c.h.b16 %v1130
    %v1403 = vunpack.c.l.b16 %v1131
    %v1404 = vunpack.c.h.b16 %v1131
    %v1405 = vunpack.c.l.b16 %v1132
    %v1406 = vunpack.c.h.b16 %v1132
    %v1407 = vunpack.c.l.b16 %v1133
    %v1408 = vunpack.c.h.b16 %v1133
    %v1409 = vunpack.c.l.b16 %v1134
    %v1410 = vunpack.c.h.b16 %v1134
    %v1411 = vunpack.c.l.b16 %v1135
    %v1412 = vunpack.c.h.b16 %v1135
    %v1413 = vunpack.c.l.b16 %v1136
    %v1414 = vunpack.c.h.b16 %v1136
    %v1415 = vunpack.c.l.b16 %v1137
    %v1416 = vunpack.c.h.b16 %v1137
    %v1417 = vunpack.c.l.b16 %v1138
    %v1418 = vunpack.c.h.b16 %v1138
    %v1419 = vunpack.c.l.b16 %v1139
    %v1420 = vunpack.c.h.b16 %v1139
    %v1421 = vunpack.c.l.b16 %v1140
    %v1422 = vunpack.c.h.b16 %v1140
    %v1423 = vunpack.c.l.b16 %v1141
    %v1424 = vunpack.c.h.b16 %v1141
    %v1425 = vunpack.c.l.b16 %v1142
    %v1426 = vunpack.c.h.b16 %v1142
    %v1427 = vunpack.c.l.b16 %v1143
    %v1428 = vunpack.c.h.b16 %v1143
    %v1429 = vunpack.c.l.b16 %v1144
    %v1430 = vunpack.c.h.b16 %v1144
    %v1431 = vunpack.c.l.b16 %v1145
    %v1432 = vunpack.c.h.b16 %v1145
    %v1433 = vunpack.c.l.b16 %v1146
    %v1434 = vunpack.c.h.b16 %v1146
    %v1435 = vunpack.c.l.b16 %v1147
    %v1436 = vunpack.c.h.b16 %v1147
    %v1437 = vunpack.c.l.b16 %v1148
    %v1438 = vunpack.c.h.b16 %v1148
    %v1439 = vunpack.c.l.b16 %v1149
    %v1440 = vunpack.c.h.b16 %v1149
    %v1441 = vunpack.c.l.b16 %v1150
    %v1442 = vunpack.c.h.b16 %v1150
    %v1443 = vunpack.c.l.b16 %v1151
    %v1444 = vunpack.c.h.b16 %v1151
    %v1445 = vunpack.c.l.b16 %v1152
    %v1446 = vunpack.c.h.b16 %v1152
    %v1447 = vunpack.c.l.b16 %v1153
    %v1448 = vunpack.c.h.b16 %v1153
    %v1449 = vunpack.c.l.b16 %v1154
    %v1450 = vunpack.c.h.b16 %v1154
    %v1451 = vunpack.c.l.b16 %v1155
    %v1452 = vunpack.c.h.b16 %v1155
    %v1453 = vunpack.c.l.b16 %v1156
    %v1454 = vunpack.c.h.b16 %v1156
    %v1455 = vunpack.c.l.b16 %v1157
    %v1456 = vunpack.c.h.b16 %v1157
    %v1457 = vunpack.c.l.b16 %v1158
    %v1458 = vunpack.c.h.b16 %v1158
    %v1459 = vunpack.c.l.b16 %v1159
    %v1460 = vunpack.c.h.b16 %v1159
    %v1461 = vunpack.c.l.b16 %v1160
    %v1462 = vunpack.c.h.b16 %v1160
    %v1463 = vunpack.c.l.b16 %v1161
    %v1464 = vunpack.c.h.b16 %v1161
    %v1465 = vunpack.c.l.b16 %v1162
    %v1466 = vunpack.c.h.b16 %v1162
    %v1467 = vunpack.c.l.b16 %v1163
    %v1468 = vunpack.c.h.b16 %v1163
    %v1469 = vunpack.c.l.b16 %v1164
    %v1470 = vunpack.c.h.b16 %v1164
    %v1471 = vunpack.c.l.b16 %v1165
    %v1472 = vunpack.c.h.b16 %v1165
    %v1473 = vunpack.c.l.b16 %v1166
    %v1474 = vunpack.c.h.b16 %v1166
    %v1475 = vunpack.c.l.b16 %v1167
    %v1476 = vunpack.c.h.b16 %v1167
    %v1477 = vunpack.c.l.b16 %v1168
    %v1478 = vunpack.c.h.b16 %v1168
    %v1479 = vunpack.c.l.b16 %v1169
    %v1480 = vunpack.c.h.b16 %v1169
    %v1481 = vunpack.c.l.b16 %v1170
    %v1482 = vunpack.c.h.b16 %v1170
    %v1483 = vunpack.c.l.b16 %v1171
    %v1484 = vunpack.c.h.b16 %v1171
    %v1485 = vunpack.c.l.b16 %v1172
    %v1486 = vunpack.c.h.b16 %v1172
    %v1487 = vunpack.c.l.b16 %v1173
    %v1488 = vunpack.c.h.b16 %v1173
    %v1489 = vunpack.c.l.b16 %v1174
    %v1490 = vunpack.c.h.b16 %v1174
    %v1491 = vunpack.c.l.b16 %v1175
    %v1492 = vunpack.c.h.b16 %v1175
    %v1493 = vunpack.c.l.b16 %v1176
    %v1494 = vunpack.c.h.b16 %v1176
    %v1495 = vunpack.c.l.b16 %v1177
    %v1496 = vunpack.c.h.b16 %v1177
    %v1497 = vunpack.c.l.b16 %v1178
    %v1498 = vunpack.c.h.b16 %v1178
    %v1499 = vunpack.c.l.b16 %v1179
    %v1500 = vunpack.c.h.b16 %v1179
    %v1501 = vunpack.c.l.b16 %v1180
    %v1502 = vunpack.c.h.b16 %v1180
    %v1503 = vunpack.c.l.b16 %v1181
    %v1504 = vunpack.c.h.b16 %v1181
    %v1505 = vunpack.c.l.b16 %v1182
    %v1506 = vunpack.c.h.b16 %v1182
    %v1507 = vunpack.c.l.b16 %v1183
    %v1508 = vunpack.c.h.b16 %v1183
    %v1509 = vunpack.c.l.b16 %v1184
    %v1510 = vunpack.c.h.b16 %v1184
    %v1511 = vunpack.c.l.b16 %v1185
    %v1512 = vunpack.c.h.b16 %v1185
    %v1513 = vunpack.c.l.b16 %v1186
    %v1514 = vunpack.c.h.b16 %v1186
    %v1515 = vunpack.c.l.b16 %v1187
    %v1516 = vunpack.c.h.b16 %v1187
    %v1517 = vunpack.c.l.b16 %v1188
    %v1518 = vunpack.c.h.b16 %v1188
    %v1519 = vunpack.c.l.b16 %v1189
    %v1520 = vunpack.c.h.b16 %v1189
    %v1521 = vunpack.c.l.b16 %v1190
    %v1522 = vunpack.c.h.b16 %v1190
    %v1523 = vunpack.c.l.b16 %v1191
    %v1524 = vunpack.c.h.b16 %v1191
    %v1525 = vunpack.c.l.b16 %v1192
    %v1526 = vunpack.c.h.b16 %v1192
    %v1527 = vunpack.c.l.b16 %v1193
    %v1528 = vunpack.c.h.b16 %v1193
    %v1529 = vunpack.c.l.b16 %v1194
    %v1530 = vunpack.c.h.b16 %v1194
    %v1531 = vunpack.c.l.b16 %v1195
    %v1532 = vunpack.c.h.b16 %v1195
    %v1533 = vunpack.c.l.b16 %v1196
    %v1534 = vunpack.c.h.b16 %v1196
    %v1535 = vunpack.c.l.b16 %v1197
    %v1536 = vunpack.c.h.b16 %v1197
    %v1537 = vunpack.c.l.b16 %v1198
    %v1538 = vunpack.c.h.b16 %v1198
    %v1539 = vunpack.c.l.b16 %v1199
    %v1540 = vunpack.c.h.b16 %v1199
    %v1541 = vunpack.c.l.b16 %v1200
    %v1542 = vunpack.c.h.b16 %v1200
    %v1543 = vunpack.c.l.b16 %v1201
    %v1544 = vunpack.c.h.b16 %v1201
    %v1545 = vunpack.c.l.b16 %v1202
    %v1546 = vunpack.c.h.b16 %v1202
    %v1547 = vunpack.c.l.b16 %v1203
    %v1548 = vunpack.c.h.b16 %v1203
    %v1549 = vunpack.c.l.b16 %v1204
    %v1550 = vunpack.c.h.b16 %v1204
    %v1551 = vunpack.c.l.b16 %v1205
    %v1552 = vunpack.c.h.b16 %v1205
    %v1553 = vunpack.c.l.b16 %v1206
    %v1554 = vunpack.c.h.b16 %v1206
    %v1555 = vunpack.c.l.b16 %v1207
    %v1556 = vunpack.c.h.b16 %v1207
    %v1557 = vunpack.c.l.b16 %v1208
    %v1558 = vunpack.c.h.b16 %v1208
    %v1559 = vunpack.c.l.b16 %v1209
    %v1560 = vunpack.c.h.b16 %v1209
    %v1561 = vunpack.c.l.b16 %v1210
    %v1562 = vunpack.c.h.b16 %v1210
    %v1563 = vunpack.c.l.b16 %v1211
    %v1564 = vunpack.c.h.b16 %v1211
    %v1565 = vunpack.c.l.b16 %v1212
    %v1566 = vunpack.c.h.b16 %v1212
    %v1567 = vunpack.c.l.b16 %v1213
    %v1568 = vunpack.c.h.b16 %v1213
    %v1569 = vunpack.c.l.b16 %v1214
    %v1570 = vunpack.c.h.b16 %v1214
    %v1571 = vunpack.c.l.b16 %v1215
    %v1572 = vunpack.c.h.b16 %v1215
    %v1573 = vunpack.c.l.b16 %v1216
    %v1574 = vunpack.c.h.b16 %v1216
    %v1575 = vunpack.c.l.b16 %v1217
    %v1576 = vunpack.c.h.b16 %v1217
    %v1577 = vunpack.c.l.b16 %v1218
    %v1578 = vunpack.c.h.b16 %v1218
    %v1579 = vunpack.c.l.b16 %v1219
    %v1580 = vunpack.c.h.b16 %v1219
    %v1581 = vunpack.c.l.b16 %v1220
    %v1582 = vunpack.c.h.b16 %v1220
    %v1583 = vunpack.c.l.b16 %v1221
    %v1584 = vunpack.c.h.b16 %v1221
    %v1585 = vunpack.c.l.b16 %v1222
    %v1586 = vunpack.c.h.b16 %v1222
    %v1587 = vunpack.c.l.b16 %v1223
    %v1588 = vunpack.c.h.b16 %v1223
    %v1589 = vunpack.c.l.b16 %v1224
    %v1590 = vunpack.c.h.b16 %v1224
    %v1591 = vunpack.c.l.b16 %v1225
    %v1592 = vunpack.c.h.b16 %v1225
    %v1593 = vunpack.c.l.b16 %v1226
    %v1594 = vunpack.c.h.b16 %v1226
    %v1595 = vunpack.c.l.b16 %v1227
    %v1596 = vunpack.c.h.b16 %v1227
    %v1597 = vunpack.c.l.b16 %v1228
    %v1598 = vunpack.c.h.b16 %v1228
    %v1599 = vunpack.c.l.b16 %v1229
    %v1600 = vunpack.c.h.b16 %v1229
    %v1601 = vunpack.c.l.b16 %v1230
    %v1602 = vunpack.c.h.b16 %v1230
    %v1603 = vunpack.c.l.b16 %v1231
    %v1604 = vunpack.c.h.b16 %v1231
    %v1605 = vunpack.c.l.b16 %v1232
    %v1606 = vunpack.c.h.b16 %v1232
    %v1607 = vunpack.c.l.b16 %v1233
    %v1608 = vunpack.c.h.b16 %v1233
    %v1609 = vunpack.c.l.b16 %v1234
    %v1610 = vunpack.c.h.b16 %v1234
    %v1611 = vunpack.c.l.b16 %v1235
    %v1612 = vunpack.c.h.b16 %v1235
    %v1613 = vunpack.c.l.b16 %v1236
    %v1614 = vunpack.c.h.b16 %v1236
    %v1615 = vunpack.c.l.b16 %v1237
    %v1616 = vunpack.c.h.b16 %v1237
    %v1617 = vunpack.c.l.b16 %v1238
    %v1618 = vunpack.c.h.b16 %v1238
    %v1619 = vunpack.c.l.b16 %v1239
    %v1620 = vunpack.c.h.b16 %v1239
    %v1621 = vunpack.c.l.b16 %v1240
    %v1622 = vunpack.c.h.b16 %v1240
    %v1623 = vunpack.c.l.b16 %v1241
    %v1624 = vunpack.c.h.b16 %v1241
    %v1625 = vunpack.c.l.b16 %v1242
    %v1626 = vunpack.c.h.b16 %v1242
    %v1627 = vunpack.c.l.b16 %v1243
    %v1628 = vunpack.c.h.b16 %v1243
    %v1629 = vunpack.c.l.b16 %v1244
    %v1630 = vunpack.c.h.b16 %v1244
    %v1631 = vunpack.c.l.b16 %v1245
    %v1632 = vunpack.c.h.b16 %v1245
    %v1633 = vunpack.c.l.b16 %v1246
    %v1634 = vunpack.c.h.b16 %v1246
    %v1635 = vunpack.c.l.b16 %v1247
    %v1636 = vunpack.c.h.b16 %v1247
    %v1637 = vunpack.c.l.b16 %v1248
    %v1638 = vunpack.c.h.b16 %v1248
    %v1639 = vunpack.c.l.b16 %v1249
    %v1640 = vunpack.c.h.b16 %v1249
    %v1641 = vunpack.c.l.b16 %v1250
    %v1642 = vunpack.c.h.b16 %v1250
    %v1643 = vunpack.c.l.b16 %v1251
    %v1644 = vunpack.c.h.b16 %v1251
    %v1645 = vunpack.c.l.b16 %v1252
    %v1646 = vunpack.c.h.b16 %v1252
    %v1647 = vpack.c.b16 %v1395, %v1391
    %v1648 = vpack.c.b16 %v1396, %v1392
    %v1649 = vpack.c.b16 %v1397, %v1393
    %v1650 = vpack.c.b16 %v1398, %v1394
    %v1651 = vpack.c.b16 %v1403, %v1399
    %v1652 = vpack.c.b16 %v1404, %v1400
    %v1653 = vpack.c.b16 %v1405, %v1401
    %v1654 = vpack.c.b16 %v1406, %v1402
    %v1655 = vpack.c.b16 %v1411, %v1407
    %v1656 = vpack.c.b16 %v1412, %v1408
    %v1657 = vpack.c.b16 %v1413, %v1409
    %v1658 = vpack.c.b16 %v1414, %v1410
    %v1659 = vpack.c.b16 %v1419, %v1415
    %v1660 = vpack.c.b16 %v1420, %v1416
    %v1661 = vpack.c.b16 %v1421, %v1417
    %v1662 = vpack.c.b16 %v1422, %v1418
    %v1663 = vpack.c.b16 %v1427, %v1423
    %v1664 = vpack.c.b16 %v1428, %v1424
    %v1665 = vpack.c.b16 %v1429, %v1425
    %v1666 = vpack.c.b16 %v1430, %v1426
    %v1667 = vpack.c.b16 %v1435, %v1431
    %v1668 = vpack.c.b16 %v1436, %v1432
    %v1669 = vpack.c.b16 %v1437, %v1433
    %v1670 = vpack.c.b16 %v1438, %v1434
    %v1671 = vpack.c.b16 %v1443, %v1439
    %v1672 = vpack.c.b16 %v1444, %v1440
    %v1673 = vpack.c.b16 %v1445, %v1441
    %v1674 = vpack.c.b16 %v1446, %v1442
    %v1675 = vpack.c.b16 %v1451, %v1447
    %v1676 = vpack.c.b16 %v1452, %v1448
    %v1677 = vpack.c.b16 %v1453, %v1449
    %v1678 = vpack.c.b16 %v1454, %v1450
    %v1679 = vpack.c.b16 %v1459, %v1455
    %v1680 = vpack.c.b16 %v1460, %v1456
    %v1681 = vpack.c.b16 %v1461, %v1457
    %v1682 = vpack.c.b16 %v1462, %v1458
    %v1683 = vpack.c.b16 %v1467, %v1463
    %v1684 = vpack.c.b16 %v1468, %v1464
    %v1685 = vpack.c.b16 %v1469, %v1465
    %v1686 = vpack.c.b16 %v1470, %v1466
    %v1687 = vpack.c.b16 %v1475, %v1471
    %v1688 = vpack.c.b16 %v1476, %v1472
    %v1689 = vpack.c.b16 %v1477, %v1473
    %v1690 = vpack.c.b16 %v1478, %v1474
    %v1691 = vpack.c.b16 %v1483, %v1479
    %v1692 = vpack.c.b16 %v1484, %v1480
    %v1693 = vpack.c.b16 %v1485, %v1481
    %v1694 = vpack.c.b16 %v1486, %v1482
    %v1695 = vpack.c.b16 %v1491, %v1487
    %v1696 = vpack.c.b16 %v1492, %v1488
    %v1697 = vpack.c.b16 %v1493, %v1489
    %v1698 = vpack.c.b16 %v1494, %v1490
    %v1699 = vpack.c.b16 %v1499, %v1495
    %v1700 = vpack.c.b16 %v1500, %v1496
    %v1701 = vpack.c.b16 %v1501, %v1497
    %v1702 = vpack.c.b16 %v1502, %v1498
    %v1703 = vpack.c.b16 %v1507, %v1503
    %v1704 = vpack.c.b16 %v1508, %v1504
    %v1705 = vpack.c.b16 %v1509, %v1505
    %v1706 = vpack.c.b16 %v1510, %v1506
    %v1707 = vpack.c.b16 %v1515, %v1511
    %v1708 = vpack.c.b16 %v1516, %v1512
    %v1709 = vpack.c.b16 %v1517, %v1513
    %v1710 = vpack.c.b16 %v1518, %v1514
    %v1711 = vpack.c.b16 %v1523, %v1519
    %v1712 = vpack.c.b16 %v1524, %v1520
    %v1713 = vpack.c.b16 %v1525, %v1521
    %v1714 = vpack.c.b16 %v1526, %v1522
    %v1715 = vpack.c.b16 %v1531, %v1527
    %v1716 = vpack.c.b16 %v1532, %v1528
    %v1717 = vpack.c.b16 %v1533, %v1529
    %v1718 = vpack.c.b16 %v1534, %v1530
    %v1719 = vpack.c.b16 %v1539, %v1535
    %v1720 = vpack.c.b16 %v1540, %v1536
    %v1721 = vpack.c.b16 %v1541, %v1537
    %v1722 = vpack.c.b16 %v1542, %v1538
    %v1723 = vpack.c.b16 %v1547, %v1543
    %v1724 = vpack.c.b16 %v1548, %v1544
    %v1725 = vpack.c.b16 %v1549, %v1545
    %v1726 = vpack.c.b16 %v1550, %v1546
    %v1727 = vpack.c.b16 %v1555, %v1551
    %v1728 = vpack.c.b16 %v1556, %v1552
    %v1729 = vpack.c.b16 %v1557, %v1553
    %v1730 = vpack.c.b16 %v1558, %v1554
    %v1731 = vpack.c.b16 %v1563, %v1559
    %v1732 = vpack.c.b16 %v1564, %v1560
    %v1733 = vpack.c.b16 %v1565, %v1561
    %v1734 = vpack.c.b16 %v1566, %v1562
    %v1735 = vpack.c.b16 %v1571, %v1567
    %v1736 = vpack.c.b16 %v1572, %v1568
    %v1737 = vpack.c.b16 %v1573, %v1569
    %v1738 = vpack.c.b16 %v1574, %v1570
    %v1739 = vpack.c.b16 %v1579, %v1575
    %v1740 = vpack.c.b16 %v1580, %v1576
    %v1741 = vpack.c.b16 %v1581, %v1577
    %v1742 = vpack.c.b16 %v1582, %v1578
    %v1743 = vpack.c.b16 %v1587, %v1583
    %v1744 = vpack.c.b16 %v1588, %v1584
    %v1745 = vpack.c.b16 %v1589, %v1585
    %v1746 = vpack.c.b16 %v1590, %v1586
    %v1747 = vpack.c.b16 %v1595, %v1591
    %v1748 = vpack.c.b16 %v1596, %v1592
    %v1749 = vpack.c.b16 %v1597, %v1593
    %v1750 = vpack.c.b16 %v1598, %v1594
    %v1751 = vpack.c.b16 %v1603, %v1599
    %v1752 = vpack.c.b16 %v1604, %v1600
    %v1753 = vpack.c.b16 %v1605, %v1601
    %v1754 = vpack.c.b16 %v1606, %v1602
    %v1755 = vpack.c.b16 %v1611, %v1607
    %v1756 = vpack.c.b16 %v1612, %v1608
    %v1757 = vpack.c.b16 %v1613, %v1609
    %v1758 = vpack.c.b16 %v1614, %v1610
    %v1759 = vpack.c.b16 %v1619, %v1615
    %v1760 = vpack.c.b16 %v1620, %v1616
    %v1761 = vpack.c.b16 %v1621, %v1617
    %v1762 = vpack.c.b16 %v1622, %v1618
    %v1763 = vpack.c.b16 %v1627, %v1623
    %v1764 = vpack.c.b16 %v1628, %v1624
    %v1765 = vpack.c.b16 %v1629, %v1625
    %v1766 = vpack.c.b16 %v1630, %v1626
    %v1767 = vpack.c.b16 %v1635, %v1631
    %v1768 = vpack.c.b16 %v1636, %v1632
    %v1769 = vpack.c.b16 %v1637, %v1633
    %v1770 = vpack.c.b16 %v1638, %v1634
    %v1771 = vpack.c.b16 %v1643, %v1639
    %v1772 = vpack.c.b16 %v1644, %v1640
    %v1773 = vpack.c.b16 %v1645, %v1641
    %v1774 = vpack.c.b16 %v1646, %v1642
    %1903 = vmatpush.bf16.msra.mxu0 %v1675
    %1904 = vmatpush.bf16.msra.mxu0 %v1671
    %1905 = vmatpush.bf16.msra.mxu0 %v1667
    %1906 = vmatpush.bf16.msra.mxu0 %v1663
    %1907 = vmatpush.bf16.msra.mxu0 %v1659
    %1908 = vmatpush.bf16.msra.mxu0 %v1655
    %1909 = vmatpush.bf16.msra.mxu0 %v1651
    %1910 = vmatpush.bf16.msra.mxu0 %v1647
    %1911 = vmatmul.bf16.gmra.mxu0 %v1061
    %v1912 = vpop.f32.mrf.mxu0
    %v1913 = vadd.f32 %v1255, %v1912
    %v1914 = vpop.f32.mrf.mxu0
    %v1915 = vadd.f32 %v1255, %v1914
    %1916 = vmatmul.bf16.gmra.mxu0 %v1065
    %v1917 = vpop.f32.mrf.mxu0
    %v1918 = vadd.f32 %v1255, %v1917
    %v1919 = vpop.f32.mrf.mxu0
    %v1920 = vadd.f32 %v1255, %v1919
    %1921 = vmatmul.bf16.gmra.mxu0 %v1069
    %v1922 = vpop.f32.mrf.mxu0
    %v1923 = vadd.f32 %v1255, %v1922
    %v1924 = vpop.f32.mrf.mxu0
    %v1925 = vadd.f32 %v1255, %v1924
    %1926 = vmatmul.bf16.gmra.mxu0 %v1073
    %v1927 = vpop.f32.mrf.mxu0
    %v1928 = vadd.f32 %v1255, %v1927
    %v1929 = vpop.f32.mrf.mxu0
    %v1930 = vadd.f32 %v1255, %v1929
    %1931 = vmatmul.bf16.gmra.mxu0 %v1077
    %v1932 = vpop.f32.mrf.mxu0
    %v1933 = vadd.f32 %v1255, %v1932
    %v1934 = vpop.f32.mrf.mxu0
    %v1935 = vadd.f32 %v1255, %v1934
    %1936 = vmatmul.bf16.gmra.mxu0 %v1081
    %v1937 = vpop.f32.mrf.mxu0
    %v1938 = vadd.f32 %v1255, %v1937
    %v1939 = vpop.f32.mrf.mxu0
    %v1940 = vadd.f32 %v1255, %v1939
    %1941 = vmatmul.bf16.gmra.mxu0 %v1085
    %v1942 = vpop.f32.mrf.mxu0
    %v1943 = vadd.f32 %v1255, %v1942
    %v1944 = vpop.f32.mrf.mxu0
    %v1945 = vadd.f32 %v1255, %v1944
    %1946 = vmatmul.bf16.gmra.mxu0 %v1089
    %v1947 = vpop.f32.mrf.mxu0
    %v1948 = vadd.f32 %v1255, %v1947
    %v1949 = vpop.f32.mrf.mxu0
    %v1950 = vadd.f32 %v1255, %v1949
    %1951 = vmatmul.bf16.gmra.mxu0 %v1093
    %v1952 = vpop.f32.mrf.mxu0
    %v1953 = vadd.f32 %v1255, %v1952
    %v1954 = vpop.f32.mrf.mxu0
    %v1955 = vadd.f32 %v1255, %v1954
    %1956 = vmatmul.bf16.gmra.mxu0 %v1097
    %v1957 = vpop.f32.mrf.mxu0
    %v1958 = vadd.f32 %v1255, %v1957
    %v1959 = vpop.f32.mrf.mxu0
    %v1960 = vadd.f32 %v1255, %v1959
    %1961 = vmatmul.bf16.gmra.mxu0 %v1101
    %v1962 = vpop.f32.mrf.mxu0
    %v1963 = vadd.f32 %v1255, %v1962
    %v1964 = vpop.f32.mrf.mxu0
    %v1965 = vadd.f32 %v1255, %v1964
    %1966 = vmatmul.bf16.gmra.mxu0 %v1105
    %v1967 = vpop.f32.mrf.mxu0
    %v1968 = vadd.f32 %v1255, %v1967
    %v1969 = vpop.f32.mrf.mxu0
    %v1970 = vadd.f32 %v1255, %v1969
    %1971 = vmatmul.bf16.gmra.mxu0 %v1109
    %v1972 = vpop.f32.mrf.mxu0
    %v1973 = vadd.f32 %v1255, %v1972
    %v1974 = vpop.f32.mrf.mxu0
    %v1975 = vadd.f32 %v1255, %v1974
    %1976 = vmatmul.bf16.gmra.mxu0 %v1113
    %v1977 = vpop.f32.mrf.mxu0
    %v1978 = vadd.f32 %v1255, %v1977
    %v1979 = vpop.f32.mrf.mxu0
    %v1980 = vadd.f32 %v1255, %v1979
    %1981 = vmatmul.bf16.gmra.mxu0 %v1117
    %v1982 = vpop.f32.mrf.mxu0
    %v1983 = vadd.f32 %v1255, %v1982
    %v1984 = vpop.f32.mrf.mxu0
    %v1985 = vadd.f32 %v1255, %v1984
    %1986 = vmatmul.bf16.gmra.mxu0 %v1121
    %v1987 = vpop.f32.mrf.mxu0
    %v1988 = vadd.f32 %v1255, %v1987
    %v1989 = vpop.f32.mrf.mxu0
    %v1990 = vadd.f32 %v1255, %v1989
    %1991 = vdwg.mxu0
    %1992 = vmatpush.bf16.msra.mxu0 %v1707
    %1993 = vmatpush.bf16.msra.mxu0 %v1703
    %1994 = vmatpush.bf16.msra.mxu0 %v1699
    %1995 = vmatpush.bf16.msra.mxu0 %v1695
    %1996 = vmatpush.bf16.msra.mxu0 %v1691
    %1997 = vmatpush.bf16.msra.mxu0 %v1687
    %1998 = vmatpush.bf16.msra.mxu0 %v1683
    %1999 = vmatpush.bf16.msra.mxu0 %v1679
    %2000 = vmatmul.bf16.gmra.mxu0 %v1062
    %v2001 = vpop.f32.mrf.mxu0
    %v2002 = vadd.f32 %v1913, %v2001
    %v2003 = vpop.f32.mrf.mxu0
    %v2004 = vadd.f32 %v1915, %v2003
    %2005 = vmatmul.bf16.gmra.mxu0 %v1066
    %v2006 = vpop.f32.mrf.mxu0
    %v2007 = vadd.f32 %v1918, %v2006
    %v2008 = vpop.f32.mrf.mxu0
    %v2009 = vadd.f32 %v1920, %v2008
    %2010 = vmatmul.bf16.gmra.mxu0 %v1070
    %v2011 = vpop.f32.mrf.mxu0
    %v2012 = vadd.f32 %v1923, %v2011
    %v2013 = vpop.f32.mrf.mxu0
    %v2014 = vadd.f32 %v1925, %v2013
    %2015 = vmatmul.bf16.gmra.mxu0 %v1074
    %v2016 = vpop.f32.mrf.mxu0
    %v2017 = vadd.f32 %v1928, %v2016
    %v2018 = vpop.f32.mrf.mxu0
    %v2019 = vadd.f32 %v1930, %v2018
    %2020 = vmatmul.bf16.gmra.mxu0 %v1078
    %v2021 = vpop.f32.mrf.mxu0
    %v2022 = vadd.f32 %v1933, %v2021
    %v2023 = vpop.f32.mrf.mxu0
    %v2024 = vadd.f32 %v1935, %v2023
    %2025 = vmatmul.bf16.gmra.mxu0 %v1082
    %v2026 = vpop.f32.mrf.mxu0
    %v2027 = vadd.f32 %v1938, %v2026
    %v2028 = vpop.f32.mrf.mxu0
    %v2029 = vadd.f32 %v1940, %v2028
    %2030 = vmatmul.bf16.gmra.mxu0 %v1086
    %v2031 = vpop.f32.mrf.mxu0
    %v2032 = vadd.f32 %v1943, %v2031
    %v2033 = vpop.f32.mrf.mxu0
    %v2034 = vadd.f32 %v1945, %v2033
    %2035 = vmatmul.bf16.gmra.mxu0 %v1090
    %v2036 = vpop.f32.mrf.mxu0
    %v2037 = vadd.f32 %v1948, %v2036
    %v2038 = vpop.f32.mrf.mxu0
    %v2039 = vadd.f32 %v1950, %v2038
    %2040 = vmatmul.bf16.gmra.mxu0 %v1094
    %v2041 = vpop.f32.mrf.mxu0
    %v2042 = vadd.f32 %v1953, %v2041
    %v2043 = vpop.f32.mrf.mxu0
    %v2044 = vadd.f32 %v1955, %v2043
    %2045 = vmatmul.bf16.gmra.mxu0 %v1098
    %v2046 = vpop.f32.mrf.mxu0
    %v2047 = vadd.f32 %v1958, %v2046
    %v2048 = vpop.f32.mrf.mxu0
    %v2049 = vadd.f32 %v1960, %v2048
    %2050 = vmatmul.bf16.gmra.mxu0 %v1102
    %v2051 = vpop.f32.mrf.mxu0
    %v2052 = vadd.f32 %v1963, %v2051
    %v2053 = vpop.f32.mrf.mxu0
    %v2054 = vadd.f32 %v1965, %v2053
    %2055 = vmatmul.bf16.gmra.mxu0 %v1106
    %v2056 = vpop.f32.mrf.mxu0
    %v2057 = vadd.f32 %v1968, %v2056
    %v2058 = vpop.f32.mrf.mxu0
    %v2059 = vadd.f32 %v1970, %v2058
    %2060 = vmatmul.bf16.gmra.mxu0 %v1110
    %v2061 = vpop.f32.mrf.mxu0
    %v2062 = vadd.f32 %v1973, %v2061
    %v2063 = vpop.f32.mrf.mxu0
    %v2064 = vadd.f32 %v1975, %v2063
    %2065 = vmatmul.bf16.gmra.mxu0 %v1114
    %v2066 = vpop.f32.mrf.mxu0
    %v2067 = vadd.f32 %v1978, %v2066
    %v2068 = vpop.f32.mrf.mxu0
    %v2069 = vadd.f32 %v1980, %v2068
    %2070 = vmatmul.bf16.gmra.mxu0 %v1118
    %v2071 = vpop.f32.mrf.mxu0
    %v2072 = vadd.f32 %v1983, %v2071
    %v2073 = vpop.f32.mrf.mxu0
    %v2074 = vadd.f32 %v1985, %v2073
    %2075 = vmatmul.bf16.gmra.mxu0 %v1122
    %v2076 = vpop.f32.mrf.mxu0
    %v2077 = vadd.f32 %v1988, %v2076
    %v2078 = vpop.f32.mrf.mxu0
    %v2079 = vadd.f32 %v1990, %v2078
    %2080 = vdwg.mxu0
    %2081 = vmatpush.bf16.msra.mxu0 %v1739
    %2082 = vmatpush.bf16.msra.mxu0 %v1735
    %2083 = vmatpush.bf16.msra.mxu0 %v1731
    %2084 = vmatpush.bf16.msra.mxu0 %v1727
    %2085 = vmatpush.bf16.msra.mxu0 %v1723
    %2086 = vmatpush.bf16.msra.mxu0 %v1719
    %2087 = vmatpush.bf16.msra.mxu0 %v1715
    %2088 = vmatpush.bf16.msra.mxu0 %v1711
    %2089 = vmatmul.bf16.gmra.mxu0 %v1063
    %v2090 = vpop.f32.mrf.mxu0
    %v2091 = vadd.f32 %v2002, %v2090
    %v2092 = vpop.f32.mrf.mxu0
    %v2093 = vadd.f32 %v2004, %v2092
    %2094 = vmatmul.bf16.gmra.mxu0 %v1067
    %v2095 = vpop.f32.mrf.mxu0
    %v2096 = vadd.f32 %v2007, %v2095
    %v2097 = vpop.f32.mrf.mxu0
    %v2098 = vadd.f32 %v2009, %v2097
    %2099 = vmatmul.bf16.gmra.mxu0 %v1071
    %v2100 = vpop.f32.mrf.mxu0
    %v2101 = vadd.f32 %v2012, %v2100
    %v2102 = vpop.f32.mrf.mxu0
    %v2103 = vadd.f32 %v2014, %v2102
    %2104 = vmatmul.bf16.gmra.mxu0 %v1075
    %v2105 = vpop.f32.mrf.mxu0
    %v2106 = vadd.f32 %v2017, %v2105
    %v2107 = vpop.f32.mrf.mxu0
    %v2108 = vadd.f32 %v2019, %v2107
    %2109 = vmatmul.bf16.gmra.mxu0 %v1079
    %v2110 = vpop.f32.mrf.mxu0
    %v2111 = vadd.f32 %v2022, %v2110
    %v2112 = vpop.f32.mrf.mxu0
    %v2113 = vadd.f32 %v2024, %v2112
    %2114 = vmatmul.bf16.gmra.mxu0 %v1083
    %v2115 = vpop.f32.mrf.mxu0
    %v2116 = vadd.f32 %v2027, %v2115
    %v2117 = vpop.f32.mrf.mxu0
    %v2118 = vadd.f32 %v2029, %v2117
    %2119 = vmatmul.bf16.gmra.mxu0 %v1087
    %v2120 = vpop.f32.mrf.mxu0
    %v2121 = vadd.f32 %v2032, %v2120
    %v2122 = vpop.f32.mrf.mxu0
    %v2123 = vadd.f32 %v2034, %v2122
    %2124 = vmatmul.bf16.gmra.mxu0 %v1091
    %v2125 = vpop.f32.mrf.mxu0
    %v2126 = vadd.f32 %v2037, %v2125
    %v2127 = vpop.f32.mrf.mxu0
    %v2128 = vadd.f32 %v2039, %v2127
    %2129 = vmatmul.bf16.gmra.mxu0 %v1095
    %v2130 = vpop.f32.mrf.mxu0
    %v2131 = vadd.f32 %v2042, %v2130
    %v2132 = vpop.f32.mrf.mxu0
    %v2133 = vadd.f32 %v2044, %v2132
    %2134 = vmatmul.bf16.gmra.mxu0 %v1099
    %v2135 = vpop.f32.mrf.mxu0
    %v2136 = vadd.f32 %v2047, %v2135
    %v2137 = vpop.f32.mrf.mxu0
    %v2138 = vadd.f32 %v2049, %v2137
    %2139 = vmatmul.bf16.gmra.mxu0 %v1103
    %v2140 = vpop.f32.mrf.mxu0
    %v2141 = vadd.f32 %v2052, %v2140
    %v2142 = vpop.f32.mrf.mxu0
    %v2143 = vadd.f32 %v2054, %v2142
    %2144 = vmatmul.bf16.gmra.mxu0 %v1107
    %v2145 = vpop.f32.mrf.mxu0
    %v2146 = vadd.f32 %v2057, %v2145
    %v2147 = vpop.f32.mrf.mxu0
    %v2148 = vadd.f32 %v2059, %v2147
    %2149 = vmatmul.bf16.gmra.mxu0 %v1111
    %v2150 = vpop.f32.mrf.mxu0
    %v2151 = vadd.f32 %v2062, %v2150
    %v2152 = vpop.f32.mrf.mxu0
    %v2153 = vadd.f32 %v2064, %v2152
    %2154 = vmatmul.bf16.gmra.mxu0 %v1115
    %v2155 = vpop.f32.mrf.mxu0
    %v2156 = vadd.f32 %v2067, %v2155
    %v2157 = vpop.f32.mrf.mxu0
    %v2158 = vadd.f32 %v2069, %v2157
    %2159 = vmatmul.bf16.gmra.mxu0 %v1119
    %v2160 = vpop.f32.mrf.mxu0
    %v2161 = vadd.f32 %v2072, %v2160
    %v2162 = vpop.f32.mrf.mxu0
    %v2163 = vadd.f32 %v2074, %v2162
    %2164 = vmatmul.bf16.gmra.mxu0 %v1123
    %v2165 = vpop.f32.mrf.mxu0
    %v2166 = vadd.f32 %v2077, %v2165
    %v2167 = vpop.f32.mrf.mxu0
    %v2168 = vadd.f32 %v2079, %v2167
    %2169 = vdwg.mxu0
    %2170 = vmatpush.bf16.msra.mxu0 %v1771
    %2171 = vmatpush.bf16.msra.mxu0 %v1767
    %2172 = vmatpush.bf16.msra.mxu0 %v1763
    %2173 = vmatpush.bf16.msra.mxu0 %v1759
    %2174 = vmatpush.bf16.msra.mxu0 %v1755
    %2175 = vmatpush.bf16.msra.mxu0 %v1751
    %2176 = vmatpush.bf16.msra.mxu0 %v1747
    %2177 = vmatpush.bf16.msra.mxu0 %v1743
    %2178 = vmatmul.bf16.gmra.mxu0 %v1064
    %v2179 = vpop.f32.mrf.mxu0
    %v2180 = vadd.f32 %v2091, %v2179
    %v2181 = vpop.f32.mrf.mxu0
    %v2182 = vadd.f32 %v2093, %v2181
    %2183 = vmatmul.bf16.gmra.mxu0 %v1068
    %v2184 = vpop.f32.mrf.mxu0
    %v2185 = vadd.f32 %v2096, %v2184
    %v2186 = vpop.f32.mrf.mxu0
    %v2187 = vadd.f32 %v2098, %v2186
    %2188 = vmatmul.bf16.gmra.mxu0 %v1072
    %v2189 = vpop.f32.mrf.mxu0
    %v2190 = vadd.f32 %v2101, %v2189
    %v2191 = vpop.f32.mrf.mxu0
    %v2192 = vadd.f32 %v2103, %v2191
    %2193 = vmatmul.bf16.gmra.mxu0 %v1076
    %v2194 = vpop.f32.mrf.mxu0
    %v2195 = vadd.f32 %v2106, %v2194
    %v2196 = vpop.f32.mrf.mxu0
    %v2197 = vadd.f32 %v2108, %v2196
    %2198 = vmatmul.bf16.gmra.mxu0 %v1080
    %v2199 = vpop.f32.mrf.mxu0
    %v2200 = vadd.f32 %v2111, %v2199
    %v2201 = vpop.f32.mrf.mxu0
    %v2202 = vadd.f32 %v2113, %v2201
    %2203 = vmatmul.bf16.gmra.mxu0 %v1084
    %v2204 = vpop.f32.mrf.mxu0
    %v2205 = vadd.f32 %v2116, %v2204
    %v2206 = vpop.f32.mrf.mxu0
    %v2207 = vadd.f32 %v2118, %v2206
    %2208 = vmatmul.bf16.gmra.mxu0 %v1088
    %v2209 = vpop.f32.mrf.mxu0
    %v2210 = vadd.f32 %v2121, %v2209
    %v2211 = vpop.f32.mrf.mxu0
    %v2212 = vadd.f32 %v2123, %v2211
    %2213 = vmatmul.bf16.gmra.mxu0 %v1092
    %v2214 = vpop.f32.mrf.mxu0
    %v2215 = vadd.f32 %v2126, %v2214
    %v2216 = vpop.f32.mrf.mxu0
    %v2217 = vadd.f32 %v2128, %v2216
    %2218 = vmatmul.bf16.gmra.mxu0 %v1096
    %v2219 = vpop.f32.mrf.mxu0
    %v2220 = vadd.f32 %v2131, %v2219
    %v2221 = vpop.f32.mrf.mxu0
    %v2222 = vadd.f32 %v2133, %v2221
    %2223 = vmatmul.bf16.gmra.mxu0 %v1100
    %v2224 = vpop.f32.mrf.mxu0
    %v2225 = vadd.f32 %v2136, %v2224
    %v2226 = vpop.f32.mrf.mxu0
    %v2227 = vadd.f32 %v2138, %v2226
    %2228 = vmatmul.bf16.gmra.mxu0 %v1104
    %v2229 = vpop.f32.mrf.mxu0
    %v2230 = vadd.f32 %v2141, %v2229
    %v2231 = vpop.f32.mrf.mxu0
    %v2232 = vadd.f32 %v2143, %v2231
    %2233 = vmatmul.bf16.gmra.mxu0 %v1108
    %v2234 = vpop.f32.mrf.mxu0
    %v2235 = vadd.f32 %v2146, %v2234
    %v2236 = vpop.f32.mrf.mxu0
    %v2237 = vadd.f32 %v2148, %v2236
    %2238 = vmatmul.bf16.gmra.mxu0 %v1112
    %v2239 = vpop.f32.mrf.mxu0
    %v2240 = vadd.f32 %v2151, %v2239
    %v2241 = vpop.f32.mrf.mxu0
    %v2242 = vadd.f32 %v2153, %v2241
    %2243 = vmatmul.bf16.gmra.mxu0 %v1116
    %v2244 = vpop.f32.mrf.mxu0
    %v2245 = vadd.f32 %v2156, %v2244
    %v2246 = vpop.f32.mrf.mxu0
    %v2247 = vadd.f32 %v2158, %v2246
    %2248 = vmatmul.bf16.gmra.mxu0 %v1120
    %v2249 = vpop.f32.mrf.mxu0
    %v2250 = vadd.f32 %v2161, %v2249
    %v2251 = vpop.f32.mrf.mxu0
    %v2252 = vadd.f32 %v2163, %v2251
    %2253 = vmatmul.bf16.gmra.mxu0 %v1124
    %v2254 = vpop.f32.mrf.mxu0
    %v2255 = vadd.f32 %v2166, %v2254
    %v2256 = vpop.f32.mrf.mxu0
    %v2257 = vadd.f32 %v2168, %v2256
    %2258 = vdwg.mxu0
    %2259 = vmatpush.bf16.msra.mxu0 %v1676
    %2260 = vmatpush.bf16.msra.mxu0 %v1672
    %2261 = vmatpush.bf16.msra.mxu0 %v1668
    %2262 = vmatpush.bf16.msra.mxu0 %v1664
    %2263 = vmatpush.bf16.msra.mxu0 %v1660
    %2264 = vmatpush.bf16.msra.mxu0 %v1656
    %2265 = vmatpush.bf16.msra.mxu0 %v1652
    %2266 = vmatpush.bf16.msra.mxu0 %v1648
    %2267 = vmatmul.bf16.gmra.mxu0 %v1061
    %v2268 = vpop.f32.mrf.mxu0
    %v2269 = vadd.f32 %v1256, %v2268
    %v2270 = vpop.f32.mrf.mxu0
    %v2271 = vadd.f32 %v1256, %v2270
    %2272 = vmatmul.bf16.gmra.mxu0 %v1065
    %v2273 = vpop.f32.mrf.mxu0
    %v2274 = vadd.f32 %v1256, %v2273
    %v2275 = vpop.f32.mrf.mxu0
    %v2276 = vadd.f32 %v1256, %v2275
    %2277 = vmatmul.bf16.gmra.mxu0 %v1069
    %v2278 = vpop.f32.mrf.mxu0
    %v2279 = vadd.f32 %v1256, %v2278
    %v2280 = vpop.f32.mrf.mxu0
    %v2281 = vadd.f32 %v1256, %v2280
    %2282 = vmatmul.bf16.gmra.mxu0 %v1073
    %v2283 = vpop.f32.mrf.mxu0
    %v2284 = vadd.f32 %v1256, %v2283
    %v2285 = vpop.f32.mrf.mxu0
    %v2286 = vadd.f32 %v1256, %v2285
    %2287 = vmatmul.bf16.gmra.mxu0 %v1077
    %v2288 = vpop.f32.mrf.mxu0
    %v2289 = vadd.f32 %v1256, %v2288
    %v2290 = vpop.f32.mrf.mxu0
    %v2291 = vadd.f32 %v1256, %v2290
    %2292 = vmatmul.bf16.gmra.mxu0 %v1081
    %v2293 = vpop.f32.mrf.mxu0
    %v2294 = vadd.f32 %v1256, %v2293
    %v2295 = vpop.f32.mrf.mxu0
    %v2296 = vadd.f32 %v1256, %v2295
    %2297 = vmatmul.bf16.gmra.mxu0 %v1085
    %v2298 = vpop.f32.mrf.mxu0
    %v2299 = vadd.f32 %v1256, %v2298
    %v2300 = vpop.f32.mrf.mxu0
    %v2301 = vadd.f32 %v1256, %v2300
    %2302 = vmatmul.bf16.gmra.mxu0 %v1089
    %v2303 = vpop.f32.mrf.mxu0
    %v2304 = vadd.f32 %v1256, %v2303
    %v2305 = vpop.f32.mrf.mxu0
    %v2306 = vadd.f32 %v1256, %v2305
    %2307 = vmatmul.bf16.gmra.mxu0 %v1093
    %v2308 = vpop.f32.mrf.mxu0
    %v2309 = vadd.f32 %v1256, %v2308
    %v2310 = vpop.f32.mrf.mxu0
    %v2311 = vadd.f32 %v1256, %v2310
    %2312 = vmatmul.bf16.gmra.mxu0 %v1097
    %v2313 = vpop.f32.mrf.mxu0
    %v2314 = vadd.f32 %v1256, %v2313
    %v2315 = vpop.f32.mrf.mxu0
    %v2316 = vadd.f32 %v1256, %v2315
    %2317 = vmatmul.bf16.gmra.mxu0 %v1101
    %v2318 = vpop.f32.mrf.mxu0
    %v2319 = vadd.f32 %v1256, %v2318
    %v2320 = vpop.f32.mrf.mxu0
    %v2321 = vadd.f32 %v1256, %v2320
    %2322 = vmatmul.bf16.gmra.mxu0 %v1105
    %v2323 = vpop.f32.mrf.mxu0
    %v2324 = vadd.f32 %v1256, %v2323
    %v2325 = vpop.f32.mrf.mxu0
    %v2326 = vadd.f32 %v1256, %v2325
    %2327 = vmatmul.bf16.gmra.mxu0 %v1109
    %v2328 = vpop.f32.mrf.mxu0
    %v2329 = vadd.f32 %v1256, %v2328
    %v2330 = vpop.f32.mrf.mxu0
    %v2331 = vadd.f32 %v1256, %v2330
    %2332 = vmatmul.bf16.gmra.mxu0 %v1113
    %v2333 = vpop.f32.mrf.mxu0
    %v2334 = vadd.f32 %v1256, %v2333
    %v2335 = vpop.f32.mrf.mxu0
    %v2336 = vadd.f32 %v1256, %v2335
    %2337 = vmatmul.bf16.gmra.mxu0 %v1117
    %v2338 = vpop.f32.mrf.mxu0
    %v2339 = vadd.f32 %v1256, %v2338
    %v2340 = vpop.f32.mrf.mxu0
    %v2341 = vadd.f32 %v1256, %v2340
    %2342 = vmatmul.bf16.gmra.mxu0 %v1121
    %v2343 = vpop.f32.mrf.mxu0
    %v2344 = vadd.f32 %v1256, %v2343
    %v2345 = vpop.f32.mrf.mxu0
    %v2346 = vadd.f32 %v1256, %v2345
    %2347 = vdwg.mxu0
    %2348 = vmatpush.bf16.msra.mxu0 %v1708
    %2349 = vmatpush.bf16.msra.mxu0 %v1704
    %2350 = vmatpush.bf16.msra.mxu0 %v1700
    %2351 = vmatpush.bf16.msra.mxu0 %v1696
    %2352 = vmatpush.bf16.msra.mxu0 %v1692
    %2353 = vmatpush.bf16.msra.mxu0 %v1688
    %2354 = vmatpush.bf16.msra.mxu0 %v1684
    %2355 = vmatpush.bf16.msra.mxu0 %v1680
    %2356 = vmatmul.bf16.gmra.mxu0 %v1062
    %v2357 = vpop.f32.mrf.mxu0
    %v2358 = vadd.f32 %v2269, %v2357
    %v2359 = vpop.f32.mrf.mxu0
    %v2360 = vadd.f32 %v2271, %v2359
    %2361 = vmatmul.bf16.gmra.mxu0 %v1066
    %v2362 = vpop.f32.mrf.mxu0
    %v2363 = vadd.f32 %v2274, %v2362
    %v2364 = vpop.f32.mrf.mxu0
    %v2365 = vadd.f32 %v2276, %v2364
    %2366 = vmatmul.bf16.gmra.mxu0 %v1070
    %v2367 = vpop.f32.mrf.mxu0
    %v2368 = vadd.f32 %v2279, %v2367
    %v2369 = vpop.f32.mrf.mxu0
    %v2370 = vadd.f32 %v2281, %v2369
    %2371 = vmatmul.bf16.gmra.mxu0 %v1074
    %v2372 = vpop.f32.mrf.mxu0
    %v2373 = vadd.f32 %v2284, %v2372
    %v2374 = vpop.f32.mrf.mxu0
    %v2375 = vadd.f32 %v2286, %v2374
    %2376 = vmatmul.bf16.gmra.mxu0 %v1078
    %v2377 = vpop.f32.mrf.mxu0
    %v2378 = vadd.f32 %v2289, %v2377
    %v2379 = vpop.f32.mrf.mxu0
    %v2380 = vadd.f32 %v2291, %v2379
    %2381 = vmatmul.bf16.gmra.mxu0 %v1082
    %v2382 = vpop.f32.mrf.mxu0
    %v2383 = vadd.f32 %v2294, %v2382
    %v2384 = vpop.f32.mrf.mxu0
    %v2385 = vadd.f32 %v2296, %v2384
    %2386 = vmatmul.bf16.gmra.mxu0 %v1086
    %v2387 = vpop.f32.mrf.mxu0
    %v2388 = vadd.f32 %v2299, %v2387
    %v2389 = vpop.f32.mrf.mxu0
    %v2390 = vadd.f32 %v2301, %v2389
    %2391 = vmatmul.bf16.gmra.mxu0 %v1090
    %v2392 = vpop.f32.mrf.mxu0
    %v2393 = vadd.f32 %v2304, %v2392
    %v2394 = vpop.f32.mrf.mxu0
    %v2395 = vadd.f32 %v2306, %v2394
    %2396 = vmatmul.bf16.gmra.mxu0 %v1094
    %v2397 = vpop.f32.mrf.mxu0
    %v2398 = vadd.f32 %v2309, %v2397
    %v2399 = vpop.f32.mrf.mxu0
    %v2400 = vadd.f32 %v2311, %v2399
    %2401 = vmatmul.bf16.gmra.mxu0 %v1098
    %v2402 = vpop.f32.mrf.mxu0
    %v2403 = vadd.f32 %v2314, %v2402
    %v2404 = vpop.f32.mrf.mxu0
    %v2405 = vadd.f32 %v2316, %v2404
    %2406 = vmatmul.bf16.gmra.mxu0 %v1102
    %v2407 = vpop.f32.mrf.mxu0
    %v2408 = vadd.f32 %v2319, %v2407
    %v2409 = vpop.f32.mrf.mxu0
    %v2410 = vadd.f32 %v2321, %v2409
    %2411 = vmatmul.bf16.gmra.mxu0 %v1106
    %v2412 = vpop.f32.mrf.mxu0
    %v2413 = vadd.f32 %v2324, %v2412
    %v2414 = vpop.f32.mrf.mxu0
    %v2415 = vadd.f32 %v2326, %v2414
    %2416 = vmatmul.bf16.gmra.mxu0 %v1110
    %v2417 = vpop.f32.mrf.mxu0
    %v2418 = vadd.f32 %v2329, %v2417
    %v2419 = vpop.f32.mrf.mxu0
    %v2420 = vadd.f32 %v2331, %v2419
    %2421 = vmatmul.bf16.gmra.mxu0 %v1114
    %v2422 = vpop.f32.mrf.mxu0
    %v2423 = vadd.f32 %v2334, %v2422
    %v2424 = vpop.f32.mrf.mxu0
    %v2425 = vadd.f32 %v2336, %v2424
    %2426 = vmatmul.bf16.gmra.mxu0 %v1118
    %v2427 = vpop.f32.mrf.mxu0
    %v2428 = vadd.f32 %v2339, %v2427
    %v2429 = vpop.f32.mrf.mxu0
    %v2430 = vadd.f32 %v2341, %v2429
    %2431 = vmatmul.bf16.gmra.mxu0 %v1122
    %v2432 = vpop.f32.mrf.mxu0
    %v2433 = vadd.f32 %v2344, %v2432
    %v2434 = vpop.f32.mrf.mxu0
    %v2435 = vadd.f32 %v2346, %v2434
    %2436 = vdwg.mxu0
    %2437 = vmatpush.bf16.msra.mxu0 %v1740
    %2438 = vmatpush.bf16.msra.mxu0 %v1736
    %2439 = vmatpush.bf16.msra.mxu0 %v1732
    %2440 = vmatpush.bf16.msra.mxu0 %v1728
    %2441 = vmatpush.bf16.msra.mxu0 %v1724
    %2442 = vmatpush.bf16.msra.mxu0 %v1720
    %2443 = vmatpush.bf16.msra.mxu0 %v1716
    %2444 = vmatpush.bf16.msra.mxu0 %v1712
    %2445 = vmatmul.bf16.gmra.mxu0 %v1063
    %v2446 = vpop.f32.mrf.mxu0
    %v2447 = vadd.f32 %v2358, %v2446
    %v2448 = vpop.f32.mrf.mxu0
    %v2449 = vadd.f32 %v2360, %v2448
    %2450 = vmatmul.bf16.gmra.mxu0 %v1067
    %v2451 = vpop.f32.mrf.mxu0
    %v2452 = vadd.f32 %v2363, %v2451
    %v2453 = vpop.f32.mrf.mxu0
    %v2454 = vadd.f32 %v2365, %v2453
    %2455 = vmatmul.bf16.gmra.mxu0 %v1071
    %v2456 = vpop.f32.mrf.mxu0
    %v2457 = vadd.f32 %v2368, %v2456
    %v2458 = vpop.f32.mrf.mxu0
    %v2459 = vadd.f32 %v2370, %v2458
    %2460 = vmatmul.bf16.gmra.mxu0 %v1075
    %v2461 = vpop.f32.mrf.mxu0
    %v2462 = vadd.f32 %v2373, %v2461
    %v2463 = vpop.f32.mrf.mxu0
    %v2464 = vadd.f32 %v2375, %v2463
    %2465 = vmatmul.bf16.gmra.mxu0 %v1079
    %v2466 = vpop.f32.mrf.mxu0
    %v2467 = vadd.f32 %v2378, %v2466
    %v2468 = vpop.f32.mrf.mxu0
    %v2469 = vadd.f32 %v2380, %v2468
    %2470 = vmatmul.bf16.gmra.mxu0 %v1083
    %v2471 = vpop.f32.mrf.mxu0
    %v2472 = vadd.f32 %v2383, %v2471
    %v2473 = vpop.f32.mrf.mxu0
    %v2474 = vadd.f32 %v2385, %v2473
    %2475 = vmatmul.bf16.gmra.mxu0 %v1087
    %v2476 = vpop.f32.mrf.mxu0
    %v2477 = vadd.f32 %v2388, %v2476
    %v2478 = vpop.f32.mrf.mxu0
    %v2479 = vadd.f32 %v2390, %v2478
    %2480 = vmatmul.bf16.gmra.mxu0 %v1091
    %v2481 = vpop.f32.mrf.mxu0
    %v2482 = vadd.f32 %v2393, %v2481
    %v2483 = vpop.f32.mrf.mxu0
    %v2484 = vadd.f32 %v2395, %v2483
    %2485 = vmatmul.bf16.gmra.mxu0 %v1095
    %v2486 = vpop.f32.mrf.mxu0
    %v2487 = vadd.f32 %v2398, %v2486
    %v2488 = vpop.f32.mrf.mxu0
    %v2489 = vadd.f32 %v2400, %v2488
    %2490 = vmatmul.bf16.gmra.mxu0 %v1099
    %v2491 = vpop.f32.mrf.mxu0
    %v2492 = vadd.f32 %v2403, %v2491
    %v2493 = vpop.f32.mrf.mxu0
    %v2494 = vadd.f32 %v2405, %v2493
    %2495 = vmatmul.bf16.gmra.mxu0 %v1103
    %v2496 = vpop.f32.mrf.mxu0
    %v2497 = vadd.f32 %v2408, %v2496
    %v2498 = vpop.f32.mrf.mxu0
    %v2499 = vadd.f32 %v2410, %v2498
    %2500 = vmatmul.bf16.gmra.mxu0 %v1107
    %v2501 = vpop.f32.mrf.mxu0
    %v2502 = vadd.f32 %v2413, %v2501
    %v2503 = vpop.f32.mrf.mxu0
    %v2504 = vadd.f32 %v2415, %v2503
    %2505 = vmatmul.bf16.gmra.mxu0 %v1111
    %v2506 = vpop.f32.mrf.mxu0
    %v2507 = vadd.f32 %v2418, %v2506
    %v2508 = vpop.f32.mrf.mxu0
    %v2509 = vadd.f32 %v2420, %v2508
    %2510 = vmatmul.bf16.gmra.mxu0 %v1115
    %v2511 = vpop.f32.mrf.mxu0
    %v2512 = vadd.f32 %v2423, %v2511
    %v2513 = vpop.f32.mrf.mxu0
    %v2514 = vadd.f32 %v2425, %v2513
    %2515 = vmatmul.bf16.gmra.mxu0 %v1119
    %v2516 = vpop.f32.mrf.mxu0
    %v2517 = vadd.f32 %v2428, %v2516
    %v2518 = vpop.f32.mrf.mxu0
    %v2519 = vadd.f32 %v2430, %v2518
    %2520 = vmatmul.bf16.gmra.mxu0 %v1123
    %v2521 = vpop.f32.mrf.mxu0
    %v2522 = vadd.f32 %v2433, %v2521
    %v2523 = vpop.f32.mrf.mxu0
    %v2524 = vadd.f32 %v2435, %v2523
    %2525 = vdwg.mxu0
    %2526 = vmatpush.bf16.msra.mxu0 %v1772
    %2527 = vmatpush.bf16.msra.mxu0 %v1768
    %2528 = vmatpush.bf16.msra.mxu0 %v1764
    %2529 = vmatpush.bf16.msra.mxu0 %v1760
    %2530 = vmatpush.bf16.msra.mxu0 %v1756
    %2531 = vmatpush.bf16.msra.mxu0 %v1752
    %2532 = vmatpush.bf16.msra.mxu0 %v1748
    %2533 = vmatpush.bf16.msra.mxu0 %v1744
    %2534 = vmatmul.bf16.gmra.mxu0 %v1064
    %v2535 = vpop.f32.mrf.mxu0
    %v2536 = vadd.f32 %v2447, %v2535
    %v2537 = vpop.f32.mrf.mxu0
    %v2538 = vadd.f32 %v2449, %v2537
    %2539 = vmatmul.bf16.gmra.mxu0 %v1068
    %v2540 = vpop.f32.mrf.mxu0
    %v2541 = vadd.f32 %v2452, %v2540
    %v2542 = vpop.f32.mrf.mxu0
    %v2543 = vadd.f32 %v2454, %v2542
    %2544 = vmatmul.bf16.gmra.mxu0 %v1072
    %v2545 = vpop.f32.mrf.mxu0
    %v2546 = vadd.f32 %v2457, %v2545
    %v2547 = vpop.f32.mrf.mxu0
    %v2548 = vadd.f32 %v2459, %v2547
    %2549 = vmatmul.bf16.gmra.mxu0 %v1076
    %v2550 = vpop.f32.mrf.mxu0
    %v2551 = vadd.f32 %v2462, %v2550
    %v2552 = vpop.f32.mrf.mxu0
    %v2553 = vadd.f32 %v2464, %v2552
    %2554 = vmatmul.bf16.gmra.mxu0 %v1080
    %v2555 = vpop.f32.mrf.mxu0
    %v2556 = vadd.f32 %v2467, %v2555
    %v2557 = vpop.f32.mrf.mxu0
    %v2558 = vadd.f32 %v2469, %v2557
    %2559 = vmatmul.bf16.gmra.mxu0 %v1084
    %v2560 = vpop.f32.mrf.mxu0
    %v2561 = vadd.f32 %v2472, %v2560
    %v2562 = vpop.f32.mrf.mxu0
    %v2563 = vadd.f32 %v2474, %v2562
    %2564 = vmatmul.bf16.gmra.mxu0 %v1088
    %v2565 = vpop.f32.mrf.mxu0
    %v2566 = vadd.f32 %v2477, %v2565
    %v2567 = vpop.f32.mrf.mxu0
    %v2568 = vadd.f32 %v2479, %v2567
    %2569 = vmatmul.bf16.gmra.mxu0 %v1092
    %v2570 = vpop.f32.mrf.mxu0
    %v2571 = vadd.f32 %v2482, %v2570
    %v2572 = vpop.f32.mrf.mxu0
    %v2573 = vadd.f32 %v2484, %v2572
    %2574 = vmatmul.bf16.gmra.mxu0 %v1096
    %v2575 = vpop.f32.mrf.mxu0
    %v2576 = vadd.f32 %v2487, %v2575
    %v2577 = vpop.f32.mrf.mxu0
    %v2578 = vadd.f32 %v2489, %v2577
    %2579 = vmatmul.bf16.gmra.mxu0 %v1100
    %v2580 = vpop.f32.mrf.mxu0
    %v2581 = vadd.f32 %v2492, %v2580
    %v2582 = vpop.f32.mrf.mxu0
    %v2583 = vadd.f32 %v2494, %v2582
    %2584 = vmatmul.bf16.gmra.mxu0 %v1104
    %v2585 = vpop.f32.mrf.mxu0
    %v2586 = vadd.f32 %v2497, %v2585
    %v2587 = vpop.f32.mrf.mxu0
    %v2588 = vadd.f32 %v2499, %v2587
    %2589 = vmatmul.bf16.gmra.mxu0 %v1108
    %v2590 = vpop.f32.mrf.mxu0
    %v2591 = vadd.f32 %v2502, %v2590
    %v2592 = vpop.f32.mrf.mxu0
    %v2593 = vadd.f32 %v2504, %v2592
    %2594 = vmatmul.bf16.gmra.mxu0 %v1112
    %v2595 = vpop.f32.mrf.mxu0
    %v2596 = vadd.f32 %v2507, %v2595
    %v2597 = vpop.f32.mrf.mxu0
    %v2598 = vadd.f32 %v2509, %v2597
    %2599 = vmatmul.bf16.gmra.mxu0 %v1116
    %v2600 = vpop.f32.mrf.mxu0
    %v2601 = vadd.f32 %v2512, %v2600
    %v2602 = vpop.f32.mrf.mxu0
    %v2603 = vadd.f32 %v2514, %v2602
    %2604 = vmatmul.bf16.gmra.mxu0 %v1120
    %v2605 = vpop.f32.mrf.mxu0
    %v2606 = vadd.f32 %v2517, %v2605
    %v2607 = vpop.f32.mrf.mxu0
    %v2608 = vadd.f32 %v2519, %v2607
    %2609 = vmatmul.bf16.gmra.mxu0 %v1124
    %v2610 = vpop.f32.mrf.mxu0
    %v2611 = vadd.f32 %v2522, %v2610
    %v2612 = vpop.f32.mrf.mxu0
    %v2613 = vadd.f32 %v2524, %v2612
    %2614 = vdwg.mxu0
    %2615 = vmatpush.bf16.msra.mxu0 %v1677
    %2616 = vmatpush.bf16.msra.mxu0 %v1673
    %2617 = vmatpush.bf16.msra.mxu0 %v1669
    %2618 = vmatpush.bf16.msra.mxu0 %v1665
    %2619 = vmatpush.bf16.msra.mxu0 %v1661
    %2620 = vmatpush.bf16.msra.mxu0 %v1657
    %2621 = vmatpush.bf16.msra.mxu0 %v1653
    %2622 = vmatpush.bf16.msra.mxu0 %v1649
    %2623 = vmatmul.bf16.gmra.mxu0 %v1061
    %v2624 = vpop.f32.mrf.mxu0
    %v2625 = vadd.f32 %v1257, %v2624
    %v2626 = vpop.f32.mrf.mxu0
    %v2627 = vadd.f32 %v1257, %v2626
    %2628 = vmatmul.bf16.gmra.mxu0 %v1065
    %v2629 = vpop.f32.mrf.mxu0
    %v2630 = vadd.f32 %v1257, %v2629
    %v2631 = vpop.f32.mrf.mxu0
    %v2632 = vadd.f32 %v1257, %v2631
    %2633 = vmatmul.bf16.gmra.mxu0 %v1069
    %v2634 = vpop.f32.mrf.mxu0
    %v2635 = vadd.f32 %v1257, %v2634
    %v2636 = vpop.f32.mrf.mxu0
    %v2637 = vadd.f32 %v1257, %v2636
    %2638 = vmatmul.bf16.gmra.mxu0 %v1073
    %v2639 = vpop.f32.mrf.mxu0
    %v2640 = vadd.f32 %v1257, %v2639
    %v2641 = vpop.f32.mrf.mxu0
    %v2642 = vadd.f32 %v1257, %v2641
    %2643 = vmatmul.bf16.gmra.mxu0 %v1077
    %v2644 = vpop.f32.mrf.mxu0
    %v2645 = vadd.f32 %v1257, %v2644
    %v2646 = vpop.f32.mrf.mxu0
    %v2647 = vadd.f32 %v1257, %v2646
    %2648 = vmatmul.bf16.gmra.mxu0 %v1081
    %v2649 = vpop.f32.mrf.mxu0
    %v2650 = vadd.f32 %v1257, %v2649
    %v2651 = vpop.f32.mrf.mxu0
    %v2652 = vadd.f32 %v1257, %v2651
    %2653 = vmatmul.bf16.gmra.mxu0 %v1085
    %v2654 = vpop.f32.mrf.mxu0
    %v2655 = vadd.f32 %v1257, %v2654
    %v2656 = vpop.f32.mrf.mxu0
    %v2657 = vadd.f32 %v1257, %v2656
    %2658 = vmatmul.bf16.gmra.mxu0 %v1089
    %v2659 = vpop.f32.mrf.mxu0
    %v2660 = vadd.f32 %v1257, %v2659
    %v2661 = vpop.f32.mrf.mxu0
    %v2662 = vadd.f32 %v1257, %v2661
    %2663 = vmatmul.bf16.gmra.mxu0 %v1093
    %v2664 = vpop.f32.mrf.mxu0
    %v2665 = vadd.f32 %v1257, %v2664
    %v2666 = vpop.f32.mrf.mxu0
    %v2667 = vadd.f32 %v1257, %v2666
    %2668 = vmatmul.bf16.gmra.mxu0 %v1097
    %v2669 = vpop.f32.mrf.mxu0
    %v2670 = vadd.f32 %v1257, %v2669
    %v2671 = vpop.f32.mrf.mxu0
    %v2672 = vadd.f32 %v1257, %v2671
    %2673 = vmatmul.bf16.gmra.mxu0 %v1101
    %v2674 = vpop.f32.mrf.mxu0
    %v2675 = vadd.f32 %v1257, %v2674
    %v2676 = vpop.f32.mrf.mxu0
    %v2677 = vadd.f32 %v1257, %v2676
    %2678 = vmatmul.bf16.gmra.mxu0 %v1105
    %v2679 = vpop.f32.mrf.mxu0
    %v2680 = vadd.f32 %v1257, %v2679
    %v2681 = vpop.f32.mrf.mxu0
    %v2682 = vadd.f32 %v1257, %v2681
    %2683 = vmatmul.bf16.gmra.mxu0 %v1109
    %v2684 = vpop.f32.mrf.mxu0
    %v2685 = vadd.f32 %v1257, %v2684
    %v2686 = vpop.f32.mrf.mxu0
    %v2687 = vadd.f32 %v1257, %v2686
    %2688 = vmatmul.bf16.gmra.mxu0 %v1113
    %v2689 = vpop.f32.mrf.mxu0
    %v2690 = vadd.f32 %v1257, %v2689
    %v2691 = vpop.f32.mrf.mxu0
    %v2692 = vadd.f32 %v1257, %v2691
    %2693 = vmatmul.bf16.gmra.mxu0 %v1117
    %v2694 = vpop.f32.mrf.mxu0
    %v2695 = vadd.f32 %v1257, %v2694
    %v2696 = vpop.f32.mrf.mxu0
    %v2697 = vadd.f32 %v1257, %v2696
    %2698 = vmatmul.bf16.gmra.mxu0 %v1121
    %v2699 = vpop.f32.mrf.mxu0
    %v2700 = vadd.f32 %v1257, %v2699
    %v2701 = vpop.f32.mrf.mxu0
    %v2702 = vadd.f32 %v1257, %v2701
    %2703 = vdwg.mxu0
    %2704 = vmatpush.bf16.msra.mxu0 %v1709
    %2705 = vmatpush.bf16.msra.mxu0 %v1705
    %2706 = vmatpush.bf16.msra.mxu0 %v1701
    %2707 = vmatpush.bf16.msra.mxu0 %v1697
    %2708 = vmatpush.bf16.msra.mxu0 %v1693
    %2709 = vmatpush.bf16.msra.mxu0 %v1689
    %2710 = vmatpush.bf16.msra.mxu0 %v1685
    %2711 = vmatpush.bf16.msra.mxu0 %v1681
    %2712 = vmatmul.bf16.gmra.mxu0 %v1062
    %v2713 = vpop.f32.mrf.mxu0
    %v2714 = vadd.f32 %v2625, %v2713
    %v2715 = vpop.f32.mrf.mxu0
    %v2716 = vadd.f32 %v2627, %v2715
    %2717 = vmatmul.bf16.gmra.mxu0 %v1066
    %v2718 = vpop.f32.mrf.mxu0
    %v2719 = vadd.f32 %v2630, %v2718
    %v2720 = vpop.f32.mrf.mxu0
    %v2721 = vadd.f32 %v2632, %v2720
    %2722 = vmatmul.bf16.gmra.mxu0 %v1070
    %v2723 = vpop.f32.mrf.mxu0
    %v2724 = vadd.f32 %v2635, %v2723
    %v2725 = vpop.f32.mrf.mxu0
    %v2726 = vadd.f32 %v2637, %v2725
    %2727 = vmatmul.bf16.gmra.mxu0 %v1074
    %v2728 = vpop.f32.mrf.mxu0
    %v2729 = vadd.f32 %v2640, %v2728
    %v2730 = vpop.f32.mrf.mxu0
    %v2731 = vadd.f32 %v2642, %v2730
    %2732 = vmatmul.bf16.gmra.mxu0 %v1078
    %v2733 = vpop.f32.mrf.mxu0
    %v2734 = vadd.f32 %v2645, %v2733
    %v2735 = vpop.f32.mrf.mxu0
    %v2736 = vadd.f32 %v2647, %v2735
    %2737 = vmatmul.bf16.gmra.mxu0 %v1082
    %v2738 = vpop.f32.mrf.mxu0
    %v2739 = vadd.f32 %v2650, %v2738
    %v2740 = vpop.f32.mrf.mxu0
    %v2741 = vadd.f32 %v2652, %v2740
    %2742 = vmatmul.bf16.gmra.mxu0 %v1086
    %v2743 = vpop.f32.mrf.mxu0
    %v2744 = vadd.f32 %v2655, %v2743
    %v2745 = vpop.f32.mrf.mxu0
    %v2746 = vadd.f32 %v2657, %v2745
    %2747 = vmatmul.bf16.gmra.mxu0 %v1090
    %v2748 = vpop.f32.mrf.mxu0
    %v2749 = vadd.f32 %v2660, %v2748
    %v2750 = vpop.f32.mrf.mxu0
    %v2751 = vadd.f32 %v2662, %v2750
    %2752 = vmatmul.bf16.gmra.mxu0 %v1094
    %v2753 = vpop.f32.mrf.mxu0
    %v2754 = vadd.f32 %v2665, %v2753
    %v2755 = vpop.f32.mrf.mxu0
    %v2756 = vadd.f32 %v2667, %v2755
    %2757 = vmatmul.bf16.gmra.mxu0 %v1098
    %v2758 = vpop.f32.mrf.mxu0
    %v2759 = vadd.f32 %v2670, %v2758
    %v2760 = vpop.f32.mrf.mxu0
    %v2761 = vadd.f32 %v2672, %v2760
    %2762 = vmatmul.bf16.gmra.mxu0 %v1102
    %v2763 = vpop.f32.mrf.mxu0
    %v2764 = vadd.f32 %v2675, %v2763
    %v2765 = vpop.f32.mrf.mxu0
    %v2766 = vadd.f32 %v2677, %v2765
    %2767 = vmatmul.bf16.gmra.mxu0 %v1106
    %v2768 = vpop.f32.mrf.mxu0
    %v2769 = vadd.f32 %v2680, %v2768
    %v2770 = vpop.f32.mrf.mxu0
    %v2771 = vadd.f32 %v2682, %v2770
    %2772 = vmatmul.bf16.gmra.mxu0 %v1110
    %v2773 = vpop.f32.mrf.mxu0
    %v2774 = vadd.f32 %v2685, %v2773
    %v2775 = vpop.f32.mrf.mxu0
    %v2776 = vadd.f32 %v2687, %v2775
    %2777 = vmatmul.bf16.gmra.mxu0 %v1114
    %v2778 = vpop.f32.mrf.mxu0
    %v2779 = vadd.f32 %v2690, %v2778
    %v2780 = vpop.f32.mrf.mxu0
    %v2781 = vadd.f32 %v2692, %v2780
    %2782 = vmatmul.bf16.gmra.mxu0 %v1118
    %v2783 = vpop.f32.mrf.mxu0
    %v2784 = vadd.f32 %v2695, %v2783
    %v2785 = vpop.f32.mrf.mxu0
    %v2786 = vadd.f32 %v2697, %v2785
    %2787 = vmatmul.bf16.gmra.mxu0 %v1122
    %v2788 = vpop.f32.mrf.mxu0
    %v2789 = vadd.f32 %v2700, %v2788
    %v2790 = vpop.f32.mrf.mxu0
    %v2791 = vadd.f32 %v2702, %v2790
    %2792 = vdwg.mxu0
    %2793 = vmatpush.bf16.msra.mxu0 %v1741
    %2794 = vmatpush.bf16.msra.mxu0 %v1737
    %2795 = vmatpush.bf16.msra.mxu0 %v1733
    %2796 = vmatpush.bf16.msra.mxu0 %v1729
    %2797 = vmatpush.bf16.msra.mxu0 %v1725
    %2798 = vmatpush.bf16.msra.mxu0 %v1721
    %2799 = vmatpush.bf16.msra.mxu0 %v1717
    %2800 = vmatpush.bf16.msra.mxu0 %v1713
    %2801 = vmatmul.bf16.gmra.mxu0 %v1063
    %v2802 = vpop.f32.mrf.mxu0
    %v2803 = vadd.f32 %v2714, %v2802
    %v2804 = vpop.f32.mrf.mxu0
    %v2805 = vadd.f32 %v2716, %v2804
    %2806 = vmatmul.bf16.gmra.mxu0 %v1067
    %v2807 = vpop.f32.mrf.mxu0
    %v2808 = vadd.f32 %v2719, %v2807
    %v2809 = vpop.f32.mrf.mxu0
    %v2810 = vadd.f32 %v2721, %v2809
    %2811 = vmatmul.bf16.gmra.mxu0 %v1071
    %v2812 = vpop.f32.mrf.mxu0
    %v2813 = vadd.f32 %v2724, %v2812
    %v2814 = vpop.f32.mrf.mxu0
    %v2815 = vadd.f32 %v2726, %v2814
    %2816 = vmatmul.bf16.gmra.mxu0 %v1075
    %v2817 = vpop.f32.mrf.mxu0
    %v2818 = vadd.f32 %v2729, %v2817
    %v2819 = vpop.f32.mrf.mxu0
    %v2820 = vadd.f32 %v2731, %v2819
    %2821 = vmatmul.bf16.gmra.mxu0 %v1079
    %v2822 = vpop.f32.mrf.mxu0
    %v2823 = vadd.f32 %v2734, %v2822
    %v2824 = vpop.f32.mrf.mxu0
    %v2825 = vadd.f32 %v2736, %v2824
    %2826 = vmatmul.bf16.gmra.mxu0 %v1083
    %v2827 = vpop.f32.mrf.mxu0
    %v2828 = vadd.f32 %v2739, %v2827
    %v2829 = vpop.f32.mrf.mxu0
    %v2830 = vadd.f32 %v2741, %v2829
    %2831 = vmatmul.bf16.gmra.mxu0 %v1087
    %v2832 = vpop.f32.mrf.mxu0
    %v2833 = vadd.f32 %v2744, %v2832
    %v2834 = vpop.f32.mrf.mxu0
    %v2835 = vadd.f32 %v2746, %v2834
    %2836 = vmatmul.bf16.gmra.mxu0 %v1091
    %v2837 = vpop.f32.mrf.mxu0
    %v2838 = vadd.f32 %v2749, %v2837
    %v2839 = vpop.f32.mrf.mxu0
    %v2840 = vadd.f32 %v2751, %v2839
    %2841 = vmatmul.bf16.gmra.mxu0 %v1095
    %v2842 = vpop.f32.mrf.mxu0
    %v2843 = vadd.f32 %v2754, %v2842
    %v2844 = vpop.f32.mrf.mxu0
    %v2845 = vadd.f32 %v2756, %v2844
    %2846 = vmatmul.bf16.gmra.mxu0 %v1099
    %v2847 = vpop.f32.mrf.mxu0
    %v2848 = vadd.f32 %v2759, %v2847
    %v2849 = vpop.f32.mrf.mxu0
    %v2850 = vadd.f32 %v2761, %v2849
    %2851 = vmatmul.bf16.gmra.mxu0 %v1103
    %v2852 = vpop.f32.mrf.mxu0
    %v2853 = vadd.f32 %v2764, %v2852
    %v2854 = vpop.f32.mrf.mxu0
    %v2855 = vadd.f32 %v2766, %v2854
    %2856 = vmatmul.bf16.gmra.mxu0 %v1107
    %v2857 = vpop.f32.mrf.mxu0
    %v2858 = vadd.f32 %v2769, %v2857
    %v2859 = vpop.f32.mrf.mxu0
    %v2860 = vadd.f32 %v2771, %v2859
    %2861 = vmatmul.bf16.gmra.mxu0 %v1111
    %v2862 = vpop.f32.mrf.mxu0
    %v2863 = vadd.f32 %v2774, %v2862
    %v2864 = vpop.f32.mrf.mxu0
    %v2865 = vadd.f32 %v2776, %v2864
    %2866 = vmatmul.bf16.gmra.mxu0 %v1115
    %v2867 = vpop.f32.mrf.mxu0
    %v2868 = vadd.f32 %v2779, %v2867
    %v2869 = vpop.f32.mrf.mxu0
    %v2870 = vadd.f32 %v2781, %v2869
    %2871 = vmatmul.bf16.gmra.mxu0 %v1119
    %v2872 = vpop.f32.mrf.mxu0
    %v2873 = vadd.f32 %v2784, %v2872
    %v2874 = vpop.f32.mrf.mxu0
    %v2875 = vadd.f32 %v2786, %v2874
    %2876 = vmatmul.bf16.gmra.mxu0 %v1123
    %v2877 = vpop.f32.mrf.mxu0
    %v2878 = vadd.f32 %v2789, %v2877
    %v2879 = vpop.f32.mrf.mxu0
    %v2880 = vadd.f32 %v2791, %v2879
    %2881 = vdwg.mxu0
    %2882 = vmatpush.bf16.msra.mxu0 %v1773
    %2883 = vmatpush.bf16.msra.mxu0 %v1769
    %2884 = vmatpush.bf16.msra.mxu0 %v1765
    %2885 = vmatpush.bf16.msra.mxu0 %v1761
    %2886 = vmatpush.bf16.msra.mxu0 %v1757
    %2887 = vmatpush.bf16.msra.mxu0 %v1753
    %2888 = vmatpush.bf16.msra.mxu0 %v1749
    %2889 = vmatpush.bf16.msra.mxu0 %v1745
    %2890 = vmatmul.bf16.gmra.mxu0 %v1064
    %v2891 = vpop.f32.mrf.mxu0
    %v2892 = vadd.f32 %v2803, %v2891
    %v2893 = vpop.f32.mrf.mxu0
    %v2894 = vadd.f32 %v2805, %v2893
    %2895 = vmatmul.bf16.gmra.mxu0 %v1068
    %v2896 = vpop.f32.mrf.mxu0
    %v2897 = vadd.f32 %v2808, %v2896
    %v2898 = vpop.f32.mrf.mxu0
    %v2899 = vadd.f32 %v2810, %v2898
    %2900 = vmatmul.bf16.gmra.mxu0 %v1072
    %v2901 = vpop.f32.mrf.mxu0
    %v2902 = vadd.f32 %v2813, %v2901
    %v2903 = vpop.f32.mrf.mxu0
    %v2904 = vadd.f32 %v2815, %v2903
    %2905 = vmatmul.bf16.gmra.mxu0 %v1076
    %v2906 = vpop.f32.mrf.mxu0
    %v2907 = vadd.f32 %v2818, %v2906
    %v2908 = vpop.f32.mrf.mxu0
    %v2909 = vadd.f32 %v2820, %v2908
    %2910 = vmatmul.bf16.gmra.mxu0 %v1080
    %v2911 = vpop.f32.mrf.mxu0
    %v2912 = vadd.f32 %v2823, %v2911
    %v2913 = vpop.f32.mrf.mxu0
    %v2914 = vadd.f32 %v2825, %v2913
    %2915 = vmatmul.bf16.gmra.mxu0 %v1084
    %v2916 = vpop.f32.mrf.mxu0
    %v2917 = vadd.f32 %v2828, %v2916
    %v2918 = vpop.f32.mrf.mxu0
    %v2919 = vadd.f32 %v2830, %v2918
    %2920 = vmatmul.bf16.gmra.mxu0 %v1088
    %v2921 = vpop.f32.mrf.mxu0
    %v2922 = vadd.f32 %v2833, %v2921
    %v2923 = vpop.f32.mrf.mxu0
    %v2924 = vadd.f32 %v2835, %v2923
    %2925 = vmatmul.bf16.gmra.mxu0 %v1092
    %v2926 = vpop.f32.mrf.mxu0
    %v2927 = vadd.f32 %v2838, %v2926
    %v2928 = vpop.f32.mrf.mxu0
    %v2929 = vadd.f32 %v2840, %v2928
    %2930 = vmatmul.bf16.gmra.mxu0 %v1096
    %v2931 = vpop.f32.mrf.mxu0
    %v2932 = vadd.f32 %v2843, %v2931
    %v2933 = vpop.f32.mrf.mxu0
    %v2934 = vadd.f32 %v2845, %v2933
    %2935 = vmatmul.bf16.gmra.mxu0 %v1100
    %v2936 = vpop.f32.mrf.mxu0
    %v2937 = vadd.f32 %v2848, %v2936
    %v2938 = vpop.f32.mrf.mxu0
    %v2939 = vadd.f32 %v2850, %v2938
    %2940 = vmatmul.bf16.gmra.mxu0 %v1104
    %v2941 = vpop.f32.mrf.mxu0
    %v2942 = vadd.f32 %v2853, %v2941
    %v2943 = vpop.f32.mrf.mxu0
    %v2944 = vadd.f32 %v2855, %v2943
    %2945 = vmatmul.bf16.gmra.mxu0 %v1108
    %v2946 = vpop.f32.mrf.mxu0
    %v2947 = vadd.f32 %v2858, %v2946
    %v2948 = vpop.f32.mrf.mxu0
    %v2949 = vadd.f32 %v2860, %v2948
    %2950 = vmatmul.bf16.gmra.mxu0 %v1112
    %v2951 = vpop.f32.mrf.mxu0
    %v2952 = vadd.f32 %v2863, %v2951
    %v2953 = vpop.f32.mrf.mxu0
    %v2954 = vadd.f32 %v2865, %v2953
    %2955 = vmatmul.bf16.gmra.mxu0 %v1116
    %v2956 = vpop.f32.mrf.mxu0
    %v2957 = vadd.f32 %v2868, %v2956
    %v2958 = vpop.f32.mrf.mxu0
    %v2959 = vadd.f32 %v2870, %v2958
    %2960 = vmatmul.bf16.gmra.mxu0 %v1120
    %v2961 = vpop.f32.mrf.mxu0
    %v2962 = vadd.f32 %v2873, %v2961
    %v2963 = vpop.f32.mrf.mxu0
    %v2964 = vadd.f32 %v2875, %v2963
    %2965 = vmatmul.bf16.gmra.mxu0 %v1124
    %v2966 = vpop.f32.mrf.mxu0
    %v2967 = vadd.f32 %v2878, %v2966
    %v2968 = vpop.f32.mrf.mxu0
    %v2969 = vadd.f32 %v2880, %v2968
    %2970 = vdwg.mxu0
    %2971 = vmatpush.bf16.msra.mxu0 %v1678
    %2972 = vmatpush.bf16.msra.mxu0 %v1674
    %2973 = vmatpush.bf16.msra.mxu0 %v1670
    %2974 = vmatpush.bf16.msra.mxu0 %v1666
    %2975 = vmatpush.bf16.msra.mxu0 %v1662
    %2976 = vmatpush.bf16.msra.mxu0 %v1658
    %2977 = vmatpush.bf16.msra.mxu0 %v1654
    %2978 = vmatpush.bf16.msra.mxu0 %v1650
    %2979 = vmatmul.bf16.gmra.mxu0 %v1061
    %v2980 = vpop.f32.mrf.mxu0
    %v2981 = vadd.f32 %v1258, %v2980
    %v2982 = vpop.f32.mrf.mxu0
    %v2983 = vadd.f32 %v1258, %v2982
    %2984 = vmatmul.bf16.gmra.mxu0 %v1065
    %v2985 = vpop.f32.mrf.mxu0
    %v2986 = vadd.f32 %v1258, %v2985
    %v2987 = vpop.f32.mrf.mxu0
    %v2988 = vadd.f32 %v1258, %v2987
    %2989 = vmatmul.bf16.gmra.mxu0 %v1069
    %v2990 = vpop.f32.mrf.mxu0
    %v2991 = vadd.f32 %v1258, %v2990
    %v2992 = vpop.f32.mrf.mxu0
    %v2993 = vadd.f32 %v1258, %v2992
    %2994 = vmatmul.bf16.gmra.mxu0 %v1073
    %v2995 = vpop.f32.mrf.mxu0
    %v2996 = vadd.f32 %v1258, %v2995
    %v2997 = vpop.f32.mrf.mxu0
    %v2998 = vadd.f32 %v1258, %v2997
    %2999 = vmatmul.bf16.gmra.mxu0 %v1077
    %v3000 = vpop.f32.mrf.mxu0
    %v3001 = vadd.f32 %v1258, %v3000
    %v3002 = vpop.f32.mrf.mxu0
    %v3003 = vadd.f32 %v1258, %v3002
    %3004 = vmatmul.bf16.gmra.mxu0 %v1081
    %v3005 = vpop.f32.mrf.mxu0
    %v3006 = vadd.f32 %v1258, %v3005
    %v3007 = vpop.f32.mrf.mxu0
    %v3008 = vadd.f32 %v1258, %v3007
    %3009 = vmatmul.bf16.gmra.mxu0 %v1085
    %v3010 = vpop.f32.mrf.mxu0
    %v3011 = vadd.f32 %v1258, %v3010
    %v3012 = vpop.f32.mrf.mxu0
    %v3013 = vadd.f32 %v1258, %v3012
    %3014 = vmatmul.bf16.gmra.mxu0 %v1089
    %v3015 = vpop.f32.mrf.mxu0
    %v3016 = vadd.f32 %v1258, %v3015
    %v3017 = vpop.f32.mrf.mxu0
    %v3018 = vadd.f32 %v1258, %v3017
    %3019 = vmatmul.bf16.gmra.mxu0 %v1093
    %v3020 = vpop.f32.mrf.mxu0
    %v3021 = vadd.f32 %v1258, %v3020
    %v3022 = vpop.f32.mrf.mxu0
    %v3023 = vadd.f32 %v1258, %v3022
    %3024 = vmatmul.bf16.gmra.mxu0 %v1097
    %v3025 = vpop.f32.mrf.mxu0
    %v3026 = vadd.f32 %v1258, %v3025
    %v3027 = vpop.f32.mrf.mxu0
    %v3028 = vadd.f32 %v1258, %v3027
    %3029 = vmatmul.bf16.gmra.mxu0 %v1101
    %v3030 = vpop.f32.mrf.mxu0
    %v3031 = vadd.f32 %v1258, %v3030
    %v3032 = vpop.f32.mrf.mxu0
    %v3033 = vadd.f32 %v1258, %v3032
    %3034 = vmatmul.bf16.gmra.mxu0 %v1105
    %v3035 = vpop.f32.mrf.mxu0
    %v3036 = vadd.f32 %v1258, %v3035
    %v3037 = vpop.f32.mrf.mxu0
    %v3038 = vadd.f32 %v1258, %v3037
    %3039 = vmatmul.bf16.gmra.mxu0 %v1109
    %v3040 = vpop.f32.mrf.mxu0
    %v3041 = vadd.f32 %v1258, %v3040
    %v3042 = vpop.f32.mrf.mxu0
    %v3043 = vadd.f32 %v1258, %v3042
    %3044 = vmatmul.bf16.gmra.mxu0 %v1113
    %v3045 = vpop.f32.mrf.mxu0
    %v3046 = vadd.f32 %v1258, %v3045
    %v3047 = vpop.f32.mrf.mxu0
    %v3048 = vadd.f32 %v1258, %v3047
    %3049 = vmatmul.bf16.gmra.mxu0 %v1117
    %v3050 = vpop.f32.mrf.mxu0
    %v3051 = vadd.f32 %v1258, %v3050
    %v3052 = vpop.f32.mrf.mxu0
    %v3053 = vadd.f32 %v1258, %v3052
    %3054 = vmatmul.bf16.gmra.mxu0 %v1121
    %v3055 = vpop.f32.mrf.mxu0
    %v3056 = vadd.f32 %v1258, %v3055
    %v3057 = vpop.f32.mrf.mxu0
    %v3058 = vadd.f32 %v1258, %v3057
    %3059 = vdwg.mxu0
    %3060 = vmatpush.bf16.msra.mxu0 %v1710
    %3061 = vmatpush.bf16.msra.mxu0 %v1706
    %3062 = vmatpush.bf16.msra.mxu0 %v1702
    %3063 = vmatpush.bf16.msra.mxu0 %v1698
    %3064 = vmatpush.bf16.msra.mxu0 %v1694
    %3065 = vmatpush.bf16.msra.mxu0 %v1690
    %3066 = vmatpush.bf16.msra.mxu0 %v1686
    %3067 = vmatpush.bf16.msra.mxu0 %v1682
    %3068 = vmatmul.bf16.gmra.mxu0 %v1062
    %v3069 = vpop.f32.mrf.mxu0
    %v3070 = vadd.f32 %v2981, %v3069
    %v3071 = vpop.f32.mrf.mxu0
    %v3072 = vadd.f32 %v2983, %v3071
    %3073 = vmatmul.bf16.gmra.mxu0 %v1066
    %v3074 = vpop.f32.mrf.mxu0
    %v3075 = vadd.f32 %v2986, %v3074
    %v3076 = vpop.f32.mrf.mxu0
    %v3077 = vadd.f32 %v2988, %v3076
    %3078 = vmatmul.bf16.gmra.mxu0 %v1070
    %v3079 = vpop.f32.mrf.mxu0
    %v3080 = vadd.f32 %v2991, %v3079
    %v3081 = vpop.f32.mrf.mxu0
    %v3082 = vadd.f32 %v2993, %v3081
    %3083 = vmatmul.bf16.gmra.mxu0 %v1074
    %v3084 = vpop.f32.mrf.mxu0
    %v3085 = vadd.f32 %v2996, %v3084
    %v3086 = vpop.f32.mrf.mxu0
    %v3087 = vadd.f32 %v2998, %v3086
    %3088 = vmatmul.bf16.gmra.mxu0 %v1078
    %v3089 = vpop.f32.mrf.mxu0
    %v3090 = vadd.f32 %v3001, %v3089
    %v3091 = vpop.f32.mrf.mxu0
    %v3092 = vadd.f32 %v3003, %v3091
    %3093 = vmatmul.bf16.gmra.mxu0 %v1082
    %v3094 = vpop.f32.mrf.mxu0
    %v3095 = vadd.f32 %v3006, %v3094
    %v3096 = vpop.f32.mrf.mxu0
    %v3097 = vadd.f32 %v3008, %v3096
    %3098 = vmatmul.bf16.gmra.mxu0 %v1086
    %v3099 = vpop.f32.mrf.mxu0
    %v3100 = vadd.f32 %v3011, %v3099
    %v3101 = vpop.f32.mrf.mxu0
    %v3102 = vadd.f32 %v3013, %v3101
    %3103 = vmatmul.bf16.gmra.mxu0 %v1090
    %v3104 = vpop.f32.mrf.mxu0
    %v3105 = vadd.f32 %v3016, %v3104
    %v3106 = vpop.f32.mrf.mxu0
    %v3107 = vadd.f32 %v3018, %v3106
    %3108 = vmatmul.bf16.gmra.mxu0 %v1094
    %v3109 = vpop.f32.mrf.mxu0
    %v3110 = vadd.f32 %v3021, %v3109
    %v3111 = vpop.f32.mrf.mxu0
    %v3112 = vadd.f32 %v3023, %v3111
    %3113 = vmatmul.bf16.gmra.mxu0 %v1098
    %v3114 = vpop.f32.mrf.mxu0
    %v3115 = vadd.f32 %v3026, %v3114
    %v3116 = vpop.f32.mrf.mxu0
    %v3117 = vadd.f32 %v3028, %v3116
    %3118 = vmatmul.bf16.gmra.mxu0 %v1102
    %v3119 = vpop.f32.mrf.mxu0
    %v3120 = vadd.f32 %v3031, %v3119
    %v3121 = vpop.f32.mrf.mxu0
    %v3122 = vadd.f32 %v3033, %v3121
    %3123 = vmatmul.bf16.gmra.mxu0 %v1106
    %v3124 = vpop.f32.mrf.mxu0
    %v3125 = vadd.f32 %v3036, %v3124
    %v3126 = vpop.f32.mrf.mxu0
    %v3127 = vadd.f32 %v3038, %v3126
    %3128 = vmatmul.bf16.gmra.mxu0 %v1110
    %v3129 = vpop.f32.mrf.mxu0
    %v3130 = vadd.f32 %v3041, %v3129
    %v3131 = vpop.f32.mrf.mxu0
    %v3132 = vadd.f32 %v3043, %v3131
    %3133 = vmatmul.bf16.gmra.mxu0 %v1114
    %v3134 = vpop.f32.mrf.mxu0
    %v3135 = vadd.f32 %v3046, %v3134
    %v3136 = vpop.f32.mrf.mxu0
    %v3137 = vadd.f32 %v3048, %v3136
    %3138 = vmatmul.bf16.gmra.mxu0 %v1118
    %v3139 = vpop.f32.mrf.mxu0
    %v3140 = vadd.f32 %v3051, %v3139
    %v3141 = vpop.f32.mrf.mxu0
    %v3142 = vadd.f32 %v3053, %v3141
    %3143 = vmatmul.bf16.gmra.mxu0 %v1122
    %v3144 = vpop.f32.mrf.mxu0
    %v3145 = vadd.f32 %v3056, %v3144
    %v3146 = vpop.f32.mrf.mxu0
    %v3147 = vadd.f32 %v3058, %v3146
    %3148 = vdwg.mxu0
    %3149 = vmatpush.bf16.msra.mxu0 %v1742
    %3150 = vmatpush.bf16.msra.mxu0 %v1738
    %3151 = vmatpush.bf16.msra.mxu0 %v1734
    %3152 = vmatpush.bf16.msra.mxu0 %v1730
    %3153 = vmatpush.bf16.msra.mxu0 %v1726
    %3154 = vmatpush.bf16.msra.mxu0 %v1722
    %3155 = vmatpush.bf16.msra.mxu0 %v1718
    %3156 = vmatpush.bf16.msra.mxu0 %v1714
    %3157 = vmatmul.bf16.gmra.mxu0 %v1063
    %v3158 = vpop.f32.mrf.mxu0
    %v3159 = vadd.f32 %v3070, %v3158
    %v3160 = vpop.f32.mrf.mxu0
    %v3161 = vadd.f32 %v3072, %v3160
    %3162 = vmatmul.bf16.gmra.mxu0 %v1067
    %v3163 = vpop.f32.mrf.mxu0
    %v3164 = vadd.f32 %v3075, %v3163
    %v3165 = vpop.f32.mrf.mxu0
    %v3166 = vadd.f32 %v3077, %v3165
    %3167 = vmatmul.bf16.gmra.mxu0 %v1071
    %v3168 = vpop.f32.mrf.mxu0
    %v3169 = vadd.f32 %v3080, %v3168
    %v3170 = vpop.f32.mrf.mxu0
    %v3171 = vadd.f32 %v3082, %v3170
    %3172 = vmatmul.bf16.gmra.mxu0 %v1075
    %v3173 = vpop.f32.mrf.mxu0
    %v3174 = vadd.f32 %v3085, %v3173
    %v3175 = vpop.f32.mrf.mxu0
    %v3176 = vadd.f32 %v3087, %v3175
    %3177 = vmatmul.bf16.gmra.mxu0 %v1079
    %v3178 = vpop.f32.mrf.mxu0
    %v3179 = vadd.f32 %v3090, %v3178
    %v3180 = vpop.f32.mrf.mxu0
    %v3181 = vadd.f32 %v3092, %v3180
    %3182 = vmatmul.bf16.gmra.mxu0 %v1083
    %v3183 = vpop.f32.mrf.mxu0
    %v3184 = vadd.f32 %v3095, %v3183
    %v3185 = vpop.f32.mrf.mxu0
    %v3186 = vadd.f32 %v3097, %v3185
    %3187 = vmatmul.bf16.gmra.mxu0 %v1087
    %v3188 = vpop.f32.mrf.mxu0
    %v3189 = vadd.f32 %v3100, %v3188
    %v3190 = vpop.f32.mrf.mxu0
    %v3191 = vadd.f32 %v3102, %v3190
    %3192 = vmatmul.bf16.gmra.mxu0 %v1091
    %v3193 = vpop.f32.mrf.mxu0
    %v3194 = vadd.f32 %v3105, %v3193
    %v3195 = vpop.f32.mrf.mxu0
    %v3196 = vadd.f32 %v3107, %v3195
    %3197 = vmatmul.bf16.gmra.mxu0 %v1095
    %v3198 = vpop.f32.mrf.mxu0
    %v3199 = vadd.f32 %v3110, %v3198
    %v3200 = vpop.f32.mrf.mxu0
    %v3201 = vadd.f32 %v3112, %v3200
    %3202 = vmatmul.bf16.gmra.mxu0 %v1099
    %v3203 = vpop.f32.mrf.mxu0
    %v3204 = vadd.f32 %v3115, %v3203
    %v3205 = vpop.f32.mrf.mxu0
    %v3206 = vadd.f32 %v3117, %v3205
    %3207 = vmatmul.bf16.gmra.mxu0 %v1103
    %v3208 = vpop.f32.mrf.mxu0
    %v3209 = vadd.f32 %v3120, %v3208
    %v3210 = vpop.f32.mrf.mxu0
    %v3211 = vadd.f32 %v3122, %v3210
    %3212 = vmatmul.bf16.gmra.mxu0 %v1107
    %v3213 = vpop.f32.mrf.mxu0
    %v3214 = vadd.f32 %v3125, %v3213
    %v3215 = vpop.f32.mrf.mxu0
    %v3216 = vadd.f32 %v3127, %v3215
    %3217 = vmatmul.bf16.gmra.mxu0 %v1111
    %v3218 = vpop.f32.mrf.mxu0
    %v3219 = vadd.f32 %v3130, %v3218
    %v3220 = vpop.f32.mrf.mxu0
    %v3221 = vadd.f32 %v3132, %v3220
    %3222 = vmatmul.bf16.gmra.mxu0 %v1115
    %v3223 = vpop.f32.mrf.mxu0
    %v3224 = vadd.f32 %v3135, %v3223
    %v3225 = vpop.f32.mrf.mxu0
    %v3226 = vadd.f32 %v3137, %v3225
    %3227 = vmatmul.bf16.gmra.mxu0 %v1119
    %v3228 = vpop.f32.mrf.mxu0
    %v3229 = vadd.f32 %v3140, %v3228
    %v3230 = vpop.f32.mrf.mxu0
    %v3231 = vadd.f32 %v3142, %v3230
    %3232 = vmatmul.bf16.gmra.mxu0 %v1123
    %v3233 = vpop.f32.mrf.mxu0
    %v3234 = vadd.f32 %v3145, %v3233
    %v3235 = vpop.f32.mrf.mxu0
    %v3236 = vadd.f32 %v3147, %v3235
    %3237 = vdwg.mxu0
    %3238 = vmatpush.bf16.msra.mxu0 %v1774
    %3239 = vmatpush.bf16.msra.mxu0 %v1770
    %3240 = vmatpush.bf16.msra.mxu0 %v1766
    %3241 = vmatpush.bf16.msra.mxu0 %v1762
    %3242 = vmatpush.bf16.msra.mxu0 %v1758
    %3243 = vmatpush.bf16.msra.mxu0 %v1754
    %3244 = vmatpush.bf16.msra.mxu0 %v1750
    %3245 = vmatpush.bf16.msra.mxu0 %v1746
    %3246 = vmatmul.bf16.gmra.mxu0 %v1064
    %v3247 = vpop.f32.mrf.mxu0
    %v3248 = vadd.f32 %v3159, %v3247
    %v3249 = vpop.f32.mrf.mxu0
    %v3250 = vadd.f32 %v3161, %v3249
    %3251 = vmatmul.bf16.gmra.mxu0 %v1068
    %v3252 = vpop.f32.mrf.mxu0
    %v3253 = vadd.f32 %v3164, %v3252
    %v3254 = vpop.f32.mrf.mxu0
    %v3255 = vadd.f32 %v3166, %v3254
    %3256 = vmatmul.bf16.gmra.mxu0 %v1072
    %v3257 = vpop.f32.mrf.mxu0
    %v3258 = vadd.f32 %v3169, %v3257
    %v3259 = vpop.f32.mrf.mxu0
    %v3260 = vadd.f32 %v3171, %v3259
    %3261 = vmatmul.bf16.gmra.mxu0 %v1076
    %v3262 = vpop.f32.mrf.mxu0
    %v3263 = vadd.f32 %v3174, %v3262
    %v3264 = vpop.f32.mrf.mxu0
    %v3265 = vadd.f32 %v3176, %v3264
    %3266 = vmatmul.bf16.gmra.mxu0 %v1080
    %v3267 = vpop.f32.mrf.mxu0
    %v3268 = vadd.f32 %v3179, %v3267
    %v3269 = vpop.f32.mrf.mxu0
    %v3270 = vadd.f32 %v3181, %v3269
    %3271 = vmatmul.bf16.gmra.mxu0 %v1084
    %v3272 = vpop.f32.mrf.mxu0
    %v3273 = vadd.f32 %v3184, %v3272
    %v3274 = vpop.f32.mrf.mxu0
    %v3275 = vadd.f32 %v3186, %v3274
    %3276 = vmatmul.bf16.gmra.mxu0 %v1088
    %v3277 = vpop.f32.mrf.mxu0
    %v3278 = vadd.f32 %v3189, %v3277
    %v3279 = vpop.f32.mrf.mxu0
    %v3280 = vadd.f32 %v3191, %v3279
    %3281 = vmatmul.bf16.gmra.mxu0 %v1092
    %v3282 = vpop.f32.mrf.mxu0
    %v3283 = vadd.f32 %v3194, %v3282
    %v3284 = vpop.f32.mrf.mxu0
    %v3285 = vadd.f32 %v3196, %v3284
    %3286 = vmatmul.bf16.gmra.mxu0 %v1096
    %v3287 = vpop.f32.mrf.mxu0
    %v3288 = vadd.f32 %v3199, %v3287
    %v3289 = vpop.f32.mrf.mxu0
    %v3290 = vadd.f32 %v3201, %v3289
    %3291 = vmatmul.bf16.gmra.mxu0 %v1100
    %v3292 = vpop.f32.mrf.mxu0
    %v3293 = vadd.f32 %v3204, %v3292
    %v3294 = vpop.f32.mrf.mxu0
    %v3295 = vadd.f32 %v3206, %v3294
    %3296 = vmatmul.bf16.gmra.mxu0 %v1104
    %v3297 = vpop.f32.mrf.mxu0
    %v3298 = vadd.f32 %v3209, %v3297
    %v3299 = vpop.f32.mrf.mxu0
    %v3300 = vadd.f32 %v3211, %v3299
    %3301 = vmatmul.bf16.gmra.mxu0 %v1108
    %v3302 = vpop.f32.mrf.mxu0
    %v3303 = vadd.f32 %v3214, %v3302
    %v3304 = vpop.f32.mrf.mxu0
    %v3305 = vadd.f32 %v3216, %v3304
    %3306 = vmatmul.bf16.gmra.mxu0 %v1112
    %v3307 = vpop.f32.mrf.mxu0
    %v3308 = vadd.f32 %v3219, %v3307
    %v3309 = vpop.f32.mrf.mxu0
    %v3310 = vadd.f32 %v3221, %v3309
    %3311 = vmatmul.bf16.gmra.mxu0 %v1116
    %v3312 = vpop.f32.mrf.mxu0
    %v3313 = vadd.f32 %v3224, %v3312
    %v3314 = vpop.f32.mrf.mxu0
    %v3315 = vadd.f32 %v3226, %v3314
    %3316 = vmatmul.bf16.gmra.mxu0 %v1120
    %v3317 = vpop.f32.mrf.mxu0
    %v3318 = vadd.f32 %v3229, %v3317
    %v3319 = vpop.f32.mrf.mxu0
    %v3320 = vadd.f32 %v3231, %v3319
    %3321 = vmatmul.bf16.gmra.mxu0 %v1124
    %v3322 = vpop.f32.mrf.mxu0
    %v3323 = vadd.f32 %v3234, %v3322
    %v3324 = vpop.f32.mrf.mxu0
    %v3325 = vadd.f32 %v3236, %v3324
    %3326 = vdwg.mxu0
    %v3327 = vmax.f32 %v2180, 0.0
    %v3328 = vmax.f32 %v2536, 0.0
    %v3329 = vmax.f32 %v2892, 0.0
    %v3330 = vmax.f32 %v3248, 0.0
    %v3331 = vmax.f32 %v2182, 0.0
    %v3332 = vmax.f32 %v2538, 0.0
    %v3333 = vmax.f32 %v2894, 0.0
    %v3334 = vmax.f32 %v3250, 0.0
    %v3335 = vmax.f32 %v2185, 0.0
    %v3336 = vmax.f32 %v2541, 0.0
    %v3337 = vmax.f32 %v2897, 0.0
    %v3338 = vmax.f32 %v3253, 0.0
    %v3339 = vmax.f32 %v2187, 0.0
    %v3340 = vmax.f32 %v2543, 0.0
    %v3341 = vmax.f32 %v2899, 0.0
    %v3342 = vmax.f32 %v3255, 0.0
    %v3343 = vmax.f32 %v2190, 0.0
    %v3344 = vmax.f32 %v2546, 0.0
    %v3345 = vmax.f32 %v2902, 0.0
    %v3346 = vmax.f32 %v3258, 0.0
    %v3347 = vmax.f32 %v2192, 0.0
    %v3348 = vmax.f32 %v2548, 0.0
    %v3349 = vmax.f32 %v2904, 0.0
    %v3350 = vmax.f32 %v3260, 0.0
    %v3351 = vmax.f32 %v2195, 0.0
    %v3352 = vmax.f32 %v2551, 0.0
    %v3353 = vmax.f32 %v2907, 0.0
    %v3354 = vmax.f32 %v3263, 0.0
    %v3355 = vmax.f32 %v2197, 0.0
    %v3356 = vmax.f32 %v2553, 0.0
    %v3357 = vmax.f32 %v2909, 0.0
    %v3358 = vmax.f32 %v3265, 0.0
    %v3359 = vmax.f32 %v2200, 0.0
    %v3360 = vmax.f32 %v2556, 0.0
    %v3361 = vmax.f32 %v2912, 0.0
    %v3362 = vmax.f32 %v3268, 0.0
    %v3363 = vmax.f32 %v2202, 0.0
    %v3364 = vmax.f32 %v2558, 0.0
    %v3365 = vmax.f32 %v2914, 0.0
    %v3366 = vmax.f32 %v3270, 0.0
    %v3367 = vmax.f32 %v2205, 0.0
    %v3368 = vmax.f32 %v2561, 0.0
    %v3369 = vmax.f32 %v2917, 0.0
    %v3370 = vmax.f32 %v3273, 0.0
    %v3371 = vmax.f32 %v2207, 0.0
    %v3372 = vmax.f32 %v2563, 0.0
    %v3373 = vmax.f32 %v2919, 0.0
    %v3374 = vmax.f32 %v3275, 0.0
    %v3375 = vmax.f32 %v2210, 0.0
    %v3376 = vmax.f32 %v2566, 0.0
    %v3377 = vmax.f32 %v2922, 0.0
    %v3378 = vmax.f32 %v3278, 0.0
    %v3379 = vmax.f32 %v2212, 0.0
    %v3380 = vmax.f32 %v2568, 0.0
    %v3381 = vmax.f32 %v2924, 0.0
    %v3382 = vmax.f32 %v3280, 0.0
    %v3383 = vmax.f32 %v2215, 0.0
    %v3384 = vmax.f32 %v2571, 0.0
    %v3385 = vmax.f32 %v2927, 0.0
    %v3386 = vmax.f32 %v3283, 0.0
    %v3387 = vmax.f32 %v2217, 0.0
    %v3388 = vmax.f32 %v2573, 0.0
    %v3389 = vmax.f32 %v2929, 0.0
    %v3390 = vmax.f32 %v3285, 0.0
    %v3391 = vmax.f32 %v2220, 0.0
    %v3392 = vmax.f32 %v2576, 0.0
    %v3393 = vmax.f32 %v2932, 0.0
    %v3394 = vmax.f32 %v3288, 0.0
    %v3395 = vmax.f32 %v2222, 0.0
    %v3396 = vmax.f32 %v2578, 0.0
    %v3397 = vmax.f32 %v2934, 0.0
    %v3398 = vmax.f32 %v3290, 0.0
    %v3399 = vmax.f32 %v2225, 0.0
    %v3400 = vmax.f32 %v2581, 0.0
    %v3401 = vmax.f32 %v2937, 0.0
    %v3402 = vmax.f32 %v3293, 0.0
    %v3403 = vmax.f32 %v2227, 0.0
    %v3404 = vmax.f32 %v2583, 0.0
    %v3405 = vmax.f32 %v2939, 0.0
    %v3406 = vmax.f32 %v3295, 0.0
    %v3407 = vmax.f32 %v2230, 0.0
    %v3408 = vmax.f32 %v2586, 0.0
    %v3409 = vmax.f32 %v2942, 0.0
    %v3410 = vmax.f32 %v3298, 0.0
    %v3411 = vmax.f32 %v2232, 0.0
    %v3412 = vmax.f32 %v2588, 0.0
    %v3413 = vmax.f32 %v2944, 0.0
    %v3414 = vmax.f32 %v3300, 0.0
    %v3415 = vmax.f32 %v2235, 0.0
    %v3416 = vmax.f32 %v2591, 0.0
    %v3417 = vmax.f32 %v2947, 0.0
    %v3418 = vmax.f32 %v3303, 0.0
    %v3419 = vmax.f32 %v2237, 0.0
    %v3420 = vmax.f32 %v2593, 0.0
    %v3421 = vmax.f32 %v2949, 0.0
    %v3422 = vmax.f32 %v3305, 0.0
    %v3423 = vmax.f32 %v2240, 0.0
    %v3424 = vmax.f32 %v2596, 0.0
    %v3425 = vmax.f32 %v2952, 0.0
    %v3426 = vmax.f32 %v3308, 0.0
    %v3427 = vmax.f32 %v2242, 0.0
    %v3428 = vmax.f32 %v2598, 0.0
    %v3429 = vmax.f32 %v2954, 0.0
    %v3430 = vmax.f32 %v3310, 0.0
    %v3431 = vmax.f32 %v2245, 0.0
    %v3432 = vmax.f32 %v2601, 0.0
    %v3433 = vmax.f32 %v2957, 0.0
    %v3434 = vmax.f32 %v3313, 0.0
    %v3435 = vmax.f32 %v2247, 0.0
    %v3436 = vmax.f32 %v2603, 0.0
    %v3437 = vmax.f32 %v2959, 0.0
    %v3438 = vmax.f32 %v3315, 0.0
    %v3439 = vmax.f32 %v2250, 0.0
    %v3440 = vmax.f32 %v2606, 0.0
    %v3441 = vmax.f32 %v2962, 0.0
    %v3442 = vmax.f32 %v3318, 0.0
    %v3443 = vmax.f32 %v2252, 0.0
    %v3444 = vmax.f32 %v2608, 0.0
    %v3445 = vmax.f32 %v2964, 0.0
    %v3446 = vmax.f32 %v3320, 0.0
    %v3447 = vmax.f32 %v2255, 0.0
    %v3448 = vmax.f32 %v2611, 0.0
    %v3449 = vmax.f32 %v2967, 0.0
    %v3450 = vmax.f32 %v3323, 0.0
    %v3451 = vmax.f32 %v2257, 0.0
    %v3452 = vmax.f32 %v2613, 0.0
    %v3453 = vmax.f32 %v2969, 0.0
    %v3454 = vmax.f32 %v3325, 0.0
    %v3455 = vpack.c.bf16 %v3331, %v3327
    %v3456 = vpack.c.bf16 %v3332, %v3328
    %v3457 = vpack.c.bf16 %v3333, %v3329
    %v3458 = vpack.c.bf16 %v3334, %v3330
    %v3459 = vpack.c.bf16 %v3339, %v3335
    %v3460 = vpack.c.bf16 %v3340, %v3336
    %v3461 = vpack.c.bf16 %v3341, %v3337
    %v3462 = vpack.c.bf16 %v3342, %v3338
    %v3463 = vpack.c.bf16 %v3347, %v3343
    %v3464 = vpack.c.bf16 %v3348, %v3344
    %v3465 = vpack.c.bf16 %v3349, %v3345
    %v3466 = vpack.c.bf16 %v3350, %v3346
    %v3467 = vpack.c.bf16 %v3355, %v3351
    %v3468 = vpack.c.bf16 %v3356, %v3352
    %v3469 = vpack.c.bf16 %v3357, %v3353
    %v3470 = vpack.c.bf16 %v3358, %v3354
    %v3471 = vpack.c.bf16 %v3363, %v3359
    %v3472 = vpack.c.bf16 %v3364, %v3360
    %v3473 = vpack.c.bf16 %v3365, %v3361
    %v3474 = vpack.c.bf16 %v3366, %v3362
    %v3475 = vpack.c.bf16 %v3371, %v3367
    %v3476 = vpack.c.bf16 %v3372, %v3368
    %v3477 = vpack.c.bf16 %v3373, %v3369
    %v3478 = vpack.c.bf16 %v3374, %v3370
    %v3479 = vpack.c.bf16 %v3379, %v3375
    %v3480 = vpack.c.bf16 %v3380, %v3376
    %v3481 = vpack.c.bf16 %v3381, %v3377
    %v3482 = vpack.c.bf16 %v3382, %v3378
    %v3483 = vpack.c.bf16 %v3387, %v3383
    %v3484 = vpack.c.bf16 %v3388, %v3384
    %v3485 = vpack.c.bf16 %v3389, %v3385
    %v3486 = vpack.c.bf16 %v3390, %v3386
    %v3487 = vpack.c.bf16 %v3395, %v3391
    %v3488 = vpack.c.bf16 %v3396, %v3392
    %v3489 = vpack.c.bf16 %v3397, %v3393
    %v3490 = vpack.c.bf16 %v3398, %v3394
    %v3491 = vpack.c.bf16 %v3403, %v3399
    %v3492 = vpack.c.bf16 %v3404, %v3400
    %v3493 = vpack.c.bf16 %v3405, %v3401
    %v3494 = vpack.c.bf16 %v3406, %v3402
    %v3495 = vpack.c.bf16 %v3411, %v3407
    %v3496 = vpack.c.bf16 %v3412, %v3408
    %v3497 = vpack.c.bf16 %v3413, %v3409
    %v3498 = vpack.c.bf16 %v3414, %v3410
    %v3499 = vpack.c.bf16 %v3419, %v3415
    %v3500 = vpack.c.bf16 %v3420, %v3416
    %v3501 = vpack.c.bf16 %v3421, %v3417
    %v3502 = vpack.c.bf16 %v3422, %v3418
    %v3503 = vpack.c.bf16 %v3427, %v3423
    %v3504 = vpack.c.bf16 %v3428, %v3424
    %v3505 = vpack.c.bf16 %v3429, %v3425
    %v3506 = vpack.c.bf16 %v3430, %v3426
    %v3507 = vpack.c.bf16 %v3435, %v3431
    %v3508 = vpack.c.bf16 %v3436, %v3432
    %v3509 = vpack.c.bf16 %v3437, %v3433
    %v3510 = vpack.c.bf16 %v3438, %v3434
    %v3511 = vpack.c.bf16 %v3443, %v3439
    %v3512 = vpack.c.bf16 %v3444, %v3440
    %v3513 = vpack.c.bf16 %v3445, %v3441
    %v3514 = vpack.c.bf16 %v3446, %v3442
    %v3515 = vpack.c.bf16 %v3451, %v3447
    %v3516 = vpack.c.bf16 %v3452, %v3448
    %v3517 = vpack.c.bf16 %v3453, %v3449
    %v3518 = vpack.c.bf16 %v3454, %v3450
    %v3519 = vld [vmem:[%s5] sm:$0xf]
    %v3520 = vld [vmem:[%s5 + $0x4] sm:$0xf]
    %v3521 = vld [vmem:[%s5 + $0x8] sm:$0xf]
    %v3522 = vld [vmem:[%s5 + $0xc] sm:$0xf]
    %v3523 = vld [vmem:[%s5 + $0x10] sm:$0xf]
    %v3524 = vld [vmem:[%s5 + $0x14] sm:$0xf]
    %v3525 = vld [vmem:[%s5 + $0x18] sm:$0xf]
    %v3526 = vld [vmem:[%s5 + $0x1c] sm:$0xf]
    %v3527 = vld [vmem:[%s5 + $0x20] sm:$0xf]
    %v3528 = vld [vmem:[%s5 + $0x24] sm:$0xf]
    %v3529 = vld [vmem:[%s5 + $0x28] sm:$0xf]
    %v3530 = vld [vmem:[%s5 + $0x2c] sm:$0xf]
    %v3531 = vld [vmem:[%s5 + $0x30] sm:$0xf]
    %v3532 = vld [vmem:[%s5 + $0x34] sm:$0xf]
    %v3533 = vld [vmem:[%s5 + $0x38] sm:$0xf]
    %v3534 = vld [vmem:[%s5 + $0x3c] sm:$0xf]
    %v3535 = vld [vmem:[%s5 + $0x40] sm:$0xf]
    %v3536 = vld [vmem:[%s5 + $0x44] sm:$0xf]
    %v3537 = vld [vmem:[%s5 + $0x48] sm:$0xf]
    %v3538 = vld [vmem:[%s5 + $0x4c] sm:$0xf]
    %v3539 = vld [vmem:[%s5 + $0x50] sm:$0xf]
    %v3540 = vld [vmem:[%s5 + $0x54] sm:$0xf]
    %v3541 = vld [vmem:[%s5 + $0x58] sm:$0xf]
    %v3542 = vld [vmem:[%s5 + $0x5c] sm:$0xf]
    %v3543 = vld [vmem:[%s5 + $0x60] sm:$0xf]
    %v3544 = vld [vmem:[%s5 + $0x64] sm:$0xf]
    %v3545 = vld [vmem:[%s5 + $0x68] sm:$0xf]
    %v3546 = vld [vmem:[%s5 + $0x6c] sm:$0xf]
    %v3547 = vld [vmem:[%s5 + $0x70] sm:$0xf]
    %v3548 = vld [vmem:[%s5 + $0x74] sm:$0xf]
    %v3549 = vld [vmem:[%s5 + $0x78] sm:$0xf]
    %v3550 = vld [vmem:[%s5 + $0x7c] sm:$0xf]
    %v3551 = vld [vmem:[%s5 + $0x80] sm:$0xf]
    %v3552 = vld [vmem:[%s5 + $0x84] sm:$0xf]
    %v3553 = vld [vmem:[%s5 + $0x88] sm:$0xf]
    %v3554 = vld [vmem:[%s5 + $0x8c] sm:$0xf]
    %v3555 = vld [vmem:[%s5 + $0x90] sm:$0xf]
    %v3556 = vld [vmem:[%s5 + $0x94] sm:$0xf]
    %v3557 = vld [vmem:[%s5 + $0x98] sm:$0xf]
    %v3558 = vld [vmem:[%s5 + $0x9c] sm:$0xf]
    %v3559 = vld [vmem:[%s5 + $0xa0] sm:$0xf]
    %v3560 = vld [vmem:[%s5 + $0xa4] sm:$0xf]
    %v3561 = vld [vmem:[%s5 + $0xa8] sm:$0xf]
    %v3562 = vld [vmem:[%s5 + $0xac] sm:$0xf]
    %v3563 = vld [vmem:[%s5 + $0xb0] sm:$0xf]
    %v3564 = vld [vmem:[%s5 + $0xb4] sm:$0xf]
    %v3565 = vld [vmem:[%s5 + $0xb8] sm:$0xf]
    %v3566 = vld [vmem:[%s5 + $0xbc] sm:$0xf]
    %v3567 = vld [vmem:[%s5 + $0xc0] sm:$0xf]
    %v3568 = vld [vmem:[%s5 + $0xc4] sm:$0xf]
    %v3569 = vld [vmem:[%s5 + $0xc8] sm:$0xf]
    %v3570 = vld [vmem:[%s5 + $0xcc] sm:$0xf]
    %v3571 = vld [vmem:[%s5 + $0xd0] sm:$0xf]
    %v3572 = vld [vmem:[%s5 + $0xd4] sm:$0xf]
    %v3573 = vld [vmem:[%s5 + $0xd8] sm:$0xf]
    %v3574 = vld [vmem:[%s5 + $0xdc] sm:$0xf]
    %v3575 = vld [vmem:[%s5 + $0xe0] sm:$0xf]
    %v3576 = vld [vmem:[%s5 + $0xe4] sm:$0xf]
    %v3577 = vld [vmem:[%s5 + $0xe8] sm:$0xf]
    %v3578 = vld [vmem:[%s5 + $0xec] sm:$0xf]
    %v3579 = vld [vmem:[%s5 + $0xf0] sm:$0xf]
    %v3580 = vld [vmem:[%s5 + $0xf4] sm:$0xf]
    %v3581 = vld [vmem:[%s5 + $0xf8] sm:$0xf]
    %v3582 = vld [vmem:[%s5 + $0xfc] sm:$0xf]
    %v3583 = vld [vmem:[%s6] sm:$0x1]
    %v3585 = vperm.slane %v3583, 0
    %v3651 = vunpack.c.l.b16 %v3519
    %v3652 = vunpack.c.l.b16 %v3520
    %v3653 = vunpack.c.l.b16 %v3521
    %v3654 = vunpack.c.l.b16 %v3522
    %v3655 = vunpack.c.l.b16 %v3523
    %v3656 = vunpack.c.l.b16 %v3524
    %v3657 = vunpack.c.l.b16 %v3525
    %v3658 = vunpack.c.l.b16 %v3526
    %v3659 = vunpack.c.l.b16 %v3527
    %v3660 = vunpack.c.l.b16 %v3528
    %v3661 = vunpack.c.l.b16 %v3529
    %v3662 = vunpack.c.l.b16 %v3530
    %v3663 = vunpack.c.l.b16 %v3531
    %v3664 = vunpack.c.l.b16 %v3532
    %v3665 = vunpack.c.l.b16 %v3533
    %v3666 = vunpack.c.l.b16 %v3534
    %v3667 = vunpack.c.l.b16 %v3535
    %v3668 = vunpack.c.l.b16 %v3536
    %v3669 = vunpack.c.l.b16 %v3537
    %v3670 = vunpack.c.l.b16 %v3538
    %v3671 = vunpack.c.l.b16 %v3539
    %v3672 = vunpack.c.l.b16 %v3540
    %v3673 = vunpack.c.l.b16 %v3541
    %v3674 = vunpack.c.l.b16 %v3542
    %v3675 = vunpack.c.l.b16 %v3543
    %v3676 = vunpack.c.l.b16 %v3544
    %v3677 = vunpack.c.l.b16 %v3545
    %v3678 = vunpack.c.l.b16 %v3546
    %v3679 = vunpack.c.l.b16 %v3547
    %v3680 = vunpack.c.l.b16 %v3548
    %v3681 = vunpack.c.l.b16 %v3549
    %v3682 = vunpack.c.l.b16 %v3550
    %v3683 = vunpack.c.l.b16 %v3551
    %v3684 = vunpack.c.l.b16 %v3552
    %v3685 = vunpack.c.l.b16 %v3553
    %v3686 = vunpack.c.l.b16 %v3554
    %v3687 = vunpack.c.l.b16 %v3555
    %v3688 = vunpack.c.l.b16 %v3556
    %v3689 = vunpack.c.l.b16 %v3557
    %v3690 = vunpack.c.l.b16 %v3558
    %v3691 = vunpack.c.l.b16 %v3559
    %v3692 = vunpack.c.l.b16 %v3560
    %v3693 = vunpack.c.l.b16 %v3561
    %v3694 = vunpack.c.l.b16 %v3562
    %v3695 = vunpack.c.l.b16 %v3563
    %v3696 = vunpack.c.l.b16 %v3564
    %v3697 = vunpack.c.l.b16 %v3565
    %v3698 = vunpack.c.l.b16 %v3566
    %v3699 = vunpack.c.l.b16 %v3567
    %v3700 = vunpack.c.l.b16 %v3568
    %v3701 = vunpack.c.l.b16 %v3569
    %v3702 = vunpack.c.l.b16 %v3570
    %v3703 = vunpack.c.l.b16 %v3571
    %v3704 = vunpack.c.l.b16 %v3572
    %v3705 = vunpack.c.l.b16 %v3573
    %v3706 = vunpack.c.l.b16 %v3574
    %v3707 = vunpack.c.l.b16 %v3575
    %v3708 = vunpack.c.l.b16 %v3576
    %v3709 = vunpack.c.l.b16 %v3577
    %v3710 = vunpack.c.l.b16 %v3578
    %v3711 = vunpack.c.l.b16 %v3579
    %v3712 = vunpack.c.l.b16 %v3580
    %v3713 = vunpack.c.l.b16 %v3581
    %v3714 = vunpack.c.l.b16 %v3582
    %v3715 = vpack.c.b16 %v3652, %v3651
    %v3716 = vpack.c.b16 %v3654, %v3653
    %v3717 = vpack.c.b16 %v3656, %v3655
    %v3718 = vpack.c.b16 %v3658, %v3657
    %v3719 = vpack.c.b16 %v3660, %v3659
    %v3720 = vpack.c.b16 %v3662, %v3661
    %v3721 = vpack.c.b16 %v3664, %v3663
    %v3722 = vpack.c.b16 %v3666, %v3665
    %v3723 = vpack.c.b16 %v3668, %v3667
    %v3724 = vpack.c.b16 %v3670, %v3669
    %v3725 = vpack.c.b16 %v3672, %v3671
    %v3726 = vpack.c.b16 %v3674, %v3673
    %v3727 = vpack.c.b16 %v3676, %v3675
    %v3728 = vpack.c.b16 %v3678, %v3677
    %v3729 = vpack.c.b16 %v3680, %v3679
    %v3730 = vpack.c.b16 %v3682, %v3681
    %v3731 = vpack.c.b16 %v3684, %v3683
    %v3732 = vpack.c.b16 %v3686, %v3685
    %v3733 = vpack.c.b16 %v3688, %v3687
    %v3734 = vpack.c.b16 %v3690, %v3689
    %v3735 = vpack.c.b16 %v3692, %v3691
    %v3736 = vpack.c.b16 %v3694, %v3693
    %v3737 = vpack.c.b16 %v3696, %v3695
    %v3738 = vpack.c.b16 %v3698, %v3697
    %v3739 = vpack.c.b16 %v3700, %v3699
    %v3740 = vpack.c.b16 %v3702, %v3701
    %v3741 = vpack.c.b16 %v3704, %v3703
    %v3742 = vpack.c.b16 %v3706, %v3705
    %v3743 = vpack.c.b16 %v3708, %v3707
    %v3744 = vpack.c.b16 %v3710, %v3709
    %v3745 = vpack.c.b16 %v3712, %v3711
    %v3746 = vpack.c.b16 %v3714, %v3713
    %3779 = vmatpush.bf16.msra.mxu0 %v3722
    %3780 = vmatpush.bf16.msra.mxu0 %v3721
    %3781 = vmatpush.bf16.msra.mxu0 %v3720
    %3782 = vmatpush.bf16.msra.mxu0 %v3719
    %3783 = vmatpush.bf16.msra.mxu0 %v3718
    %3784 = vmatpush.bf16.msra.mxu0 %v3717
    %3785 = vmatpush.bf16.msra.mxu0 %v3716
    %3786 = vmatpush.bf16.msra.mxu0 %v3715
    %3787 = vmatmul.bf16.gmra.mxu0 %v3455
    %v3788 = vpop.f32.mrf.mxu0
    %v3789 = vadd.f32 %v3585, %v3788
    %v3790 = vpop.f32.mrf.mxu0
    %v3791 = vadd.f32 %v3585, %v3790
    %3792 = vmatmul.bf16.gmra.mxu0 %v3459
    %v3793 = vpop.f32.mrf.mxu0
    %v3794 = vadd.f32 %v3585, %v3793
    %v3795 = vpop.f32.mrf.mxu0
    %v3796 = vadd.f32 %v3585, %v3795
    %3797 = vmatmul.bf16.gmra.mxu0 %v3463
    %v3798 = vpop.f32.mrf.mxu0
    %v3799 = vadd.f32 %v3585, %v3798
    %v3800 = vpop.f32.mrf.mxu0
    %v3801 = vadd.f32 %v3585, %v3800
    %3802 = vmatmul.bf16.gmra.mxu0 %v3467
    %v3803 = vpop.f32.mrf.mxu0
    %v3804 = vadd.f32 %v3585, %v3803
    %v3805 = vpop.f32.mrf.mxu0
    %v3806 = vadd.f32 %v3585, %v3805
    %3807 = vmatmul.bf16.gmra.mxu0 %v3471
    %v3808 = vpop.f32.mrf.mxu0
    %v3809 = vadd.f32 %v3585, %v3808
    %v3810 = vpop.f32.mrf.mxu0
    %v3811 = vadd.f32 %v3585, %v3810
    %3812 = vmatmul.bf16.gmra.mxu0 %v3475
    %v3813 = vpop.f32.mrf.mxu0
    %v3814 = vadd.f32 %v3585, %v3813
    %v3815 = vpop.f32.mrf.mxu0
    %v3816 = vadd.f32 %v3585, %v3815
    %3817 = vmatmul.bf16.gmra.mxu0 %v3479
    %v3818 = vpop.f32.mrf.mxu0
    %v3819 = vadd.f32 %v3585, %v3818
    %v3820 = vpop.f32.mrf.mxu0
    %v3821 = vadd.f32 %v3585, %v3820
    %3822 = vmatmul.bf16.gmra.mxu0 %v3483
    %v3823 = vpop.f32.mrf.mxu0
    %v3824 = vadd.f32 %v3585, %v3823
    %v3825 = vpop.f32.mrf.mxu0
    %v3826 = vadd.f32 %v3585, %v3825
    %3827 = vmatmul.bf16.gmra.mxu0 %v3487
    %v3828 = vpop.f32.mrf.mxu0
    %v3829 = vadd.f32 %v3585, %v3828
    %v3830 = vpop.f32.mrf.mxu0
    %v3831 = vadd.f32 %v3585, %v3830
    %3832 = vmatmul.bf16.gmra.mxu0 %v3491
    %v3833 = vpop.f32.mrf.mxu0
    %v3834 = vadd.f32 %v3585, %v3833
    %v3835 = vpop.f32.mrf.mxu0
    %v3836 = vadd.f32 %v3585, %v3835
    %3837 = vmatmul.bf16.gmra.mxu0 %v3495
    %v3838 = vpop.f32.mrf.mxu0
    %v3839 = vadd.f32 %v3585, %v3838
    %v3840 = vpop.f32.mrf.mxu0
    %v3841 = vadd.f32 %v3585, %v3840
    %3842 = vmatmul.bf16.gmra.mxu0 %v3499
    %v3843 = vpop.f32.mrf.mxu0
    %v3844 = vadd.f32 %v3585, %v3843
    %v3845 = vpop.f32.mrf.mxu0
    %v3846 = vadd.f32 %v3585, %v3845
    %3847 = vmatmul.bf16.gmra.mxu0 %v3503
    %v3848 = vpop.f32.mrf.mxu0
    %v3849 = vadd.f32 %v3585, %v3848
    %v3850 = vpop.f32.mrf.mxu0
    %v3851 = vadd.f32 %v3585, %v3850
    %3852 = vmatmul.bf16.gmra.mxu0 %v3507
    %v3853 = vpop.f32.mrf.mxu0
    %v3854 = vadd.f32 %v3585, %v3853
    %v3855 = vpop.f32.mrf.mxu0
    %v3856 = vadd.f32 %v3585, %v3855
    %3857 = vmatmul.bf16.gmra.mxu0 %v3511
    %v3858 = vpop.f32.mrf.mxu0
    %v3859 = vadd.f32 %v3585, %v3858
    %v3860 = vpop.f32.mrf.mxu0
    %v3861 = vadd.f32 %v3585, %v3860
    %3862 = vmatmul.bf16.gmra.mxu0 %v3515
    %v3863 = vpop.f32.mrf.mxu0
    %v3864 = vadd.f32 %v3585, %v3863
    %v3865 = vpop.f32.mrf.mxu0
    %v3866 = vadd.f32 %v3585, %v3865
    %3867 = vdwg.mxu0
    %3868 = vmatpush.bf16.msra.mxu0 %v3730
    %3869 = vmatpush.bf16.msra.mxu0 %v3729
    %3870 = vmatpush.bf16.msra.mxu0 %v3728
    %3871 = vmatpush.bf16.msra.mxu0 %v3727
    %3872 = vmatpush.bf16.msra.mxu0 %v3726
    %3873 = vmatpush.bf16.msra.mxu0 %v3725
    %3874 = vmatpush.bf16.msra.mxu0 %v3724
    %3875 = vmatpush.bf16.msra.mxu0 %v3723
    %3876 = vmatmul.bf16.gmra.mxu0 %v3456
    %v3877 = vpop.f32.mrf.mxu0
    %v3878 = vadd.f32 %v3789, %v3877
    %v3879 = vpop.f32.mrf.mxu0
    %v3880 = vadd.f32 %v3791, %v3879
    %3881 = vmatmul.bf16.gmra.mxu0 %v3460
    %v3882 = vpop.f32.mrf.mxu0
    %v3883 = vadd.f32 %v3794, %v3882
    %v3884 = vpop.f32.mrf.mxu0
    %v3885 = vadd.f32 %v3796, %v3884
    %3886 = vmatmul.bf16.gmra.mxu0 %v3464
    %v3887 = vpop.f32.mrf.mxu0
    %v3888 = vadd.f32 %v3799, %v3887
    %v3889 = vpop.f32.mrf.mxu0
    %v3890 = vadd.f32 %v3801, %v3889
    %3891 = vmatmul.bf16.gmra.mxu0 %v3468
    %v3892 = vpop.f32.mrf.mxu0
    %v3893 = vadd.f32 %v3804, %v3892
    %v3894 = vpop.f32.mrf.mxu0
    %v3895 = vadd.f32 %v3806, %v3894
    %3896 = vmatmul.bf16.gmra.mxu0 %v3472
    %v3897 = vpop.f32.mrf.mxu0
    %v3898 = vadd.f32 %v3809, %v3897
    %v3899 = vpop.f32.mrf.mxu0
    %v3900 = vadd.f32 %v3811, %v3899
    %3901 = vmatmul.bf16.gmra.mxu0 %v3476
    %v3902 = vpop.f32.mrf.mxu0
    %v3903 = vadd.f32 %v3814, %v3902
    %v3904 = vpop.f32.mrf.mxu0
    %v3905 = vadd.f32 %v3816, %v3904
    %3906 = vmatmul.bf16.gmra.mxu0 %v3480
    %v3907 = vpop.f32.mrf.mxu0
    %v3908 = vadd.f32 %v3819, %v3907
    %v3909 = vpop.f32.mrf.mxu0
    %v3910 = vadd.f32 %v3821, %v3909
    %3911 = vmatmul.bf16.gmra.mxu0 %v3484
    %v3912 = vpop.f32.mrf.mxu0
    %v3913 = vadd.f32 %v3824, %v3912
    %v3914 = vpop.f32.mrf.mxu0
    %v3915 = vadd.f32 %v3826, %v3914
    %3916 = vmatmul.bf16.gmra.mxu0 %v3488
    %v3917 = vpop.f32.mrf.mxu0
    %v3918 = vadd.f32 %v3829, %v3917
    %v3919 = vpop.f32.mrf.mxu0
    %v3920 = vadd.f32 %v3831, %v3919
    %3921 = vmatmul.bf16.gmra.mxu0 %v3492
    %v3922 = vpop.f32.mrf.mxu0
    %v3923 = vadd.f32 %v3834, %v3922
    %v3924 = vpop.f32.mrf.mxu0
    %v3925 = vadd.f32 %v3836, %v3924
    %3926 = vmatmul.bf16.gmra.mxu0 %v3496
    %v3927 = vpop.f32.mrf.mxu0
    %v3928 = vadd.f32 %v3839, %v3927
    %v3929 = vpop.f32.mrf.mxu0
    %v3930 = vadd.f32 %v3841, %v3929
    %3931 = vmatmul.bf16.gmra.mxu0 %v3500
    %v3932 = vpop.f32.mrf.mxu0
    %v3933 = vadd.f32 %v3844, %v3932
    %v3934 = vpop.f32.mrf.mxu0
    %v3935 = vadd.f32 %v3846, %v3934
    %3936 = vmatmul.bf16.gmra.mxu0 %v3504
    %v3937 = vpop.f32.mrf.mxu0
    %v3938 = vadd.f32 %v3849, %v3937
    %v3939 = vpop.f32.mrf.mxu0
    %v3940 = vadd.f32 %v3851, %v3939
    %3941 = vmatmul.bf16.gmra.mxu0 %v3508
    %v3942 = vpop.f32.mrf.mxu0
    %v3943 = vadd.f32 %v3854, %v3942
    %v3944 = vpop.f32.mrf.mxu0
    %v3945 = vadd.f32 %v3856, %v3944
    %3946 = vmatmul.bf16.gmra.mxu0 %v3512
    %v3947 = vpop.f32.mrf.mxu0
    %v3948 = vadd.f32 %v3859, %v3947
    %v3949 = vpop.f32.mrf.mxu0
    %v3950 = vadd.f32 %v3861, %v3949
    %3951 = vmatmul.bf16.gmra.mxu0 %v3516
    %v3952 = vpop.f32.mrf.mxu0
    %v3953 = vadd.f32 %v3864, %v3952
    %v3954 = vpop.f32.mrf.mxu0
    %v3955 = vadd.f32 %v3866, %v3954
    %3956 = vdwg.mxu0
    %3957 = vmatpush.bf16.msra.mxu0 %v3738
    %3958 = vmatpush.bf16.msra.mxu0 %v3737
    %3959 = vmatpush.bf16.msra.mxu0 %v3736
    %3960 = vmatpush.bf16.msra.mxu0 %v3735
    %3961 = vmatpush.bf16.msra.mxu0 %v3734
    %3962 = vmatpush.bf16.msra.mxu0 %v3733
    %3963 = vmatpush.bf16.msra.mxu0 %v3732
    %3964 = vmatpush.bf16.msra.mxu0 %v3731
    %3965 = vmatmul.bf16.gmra.mxu0 %v3457
    %v3966 = vpop.f32.mrf.mxu0
    %v3967 = vadd.f32 %v3878, %v3966
    %v3968 = vpop.f32.mrf.mxu0
    %v3969 = vadd.f32 %v3880, %v3968
    %3970 = vmatmul.bf16.gmra.mxu0 %v3461
    %v3971 = vpop.f32.mrf.mxu0
    %v3972 = vadd.f32 %v3883, %v3971
    %v3973 = vpop.f32.mrf.mxu0
    %v3974 = vadd.f32 %v3885, %v3973
    %3975 = vmatmul.bf16.gmra.mxu0 %v3465
    %v3976 = vpop.f32.mrf.mxu0
    %v3977 = vadd.f32 %v3888, %v3976
    %v3978 = vpop.f32.mrf.mxu0
    %v3979 = vadd.f32 %v3890, %v3978
    %3980 = vmatmul.bf16.gmra.mxu0 %v3469
    %v3981 = vpop.f32.mrf.mxu0
    %v3982 = vadd.f32 %v3893, %v3981
    %v3983 = vpop.f32.mrf.mxu0
    %v3984 = vadd.f32 %v3895, %v3983
    %3985 = vmatmul.bf16.gmra.mxu0 %v3473
    %v3986 = vpop.f32.mrf.mxu0
    %v3987 = vadd.f32 %v3898, %v3986
    %v3988 = vpop.f32.mrf.mxu0
    %v3989 = vadd.f32 %v3900, %v3988
    %3990 = vmatmul.bf16.gmra.mxu0 %v3477
    %v3991 = vpop.f32.mrf.mxu0
    %v3992 = vadd.f32 %v3903, %v3991
    %v3993 = vpop.f32.mrf.mxu0
    %v3994 = vadd.f32 %v3905, %v3993
    %3995 = vmatmul.bf16.gmra.mxu0 %v3481
    %v3996 = vpop.f32.mrf.mxu0
    %v3997 = vadd.f32 %v3908, %v3996
    %v3998 = vpop.f32.mrf.mxu0
    %v3999 = vadd.f32 %v3910, %v3998
    %4000 = vmatmul.bf16.gmra.mxu0 %v3485
    %v4001 = vpop.f32.mrf.mxu0
    %v4002 = vadd.f32 %v3913, %v4001
    %v4003 = vpop.f32.mrf.mxu0
    %v4004 = vadd.f32 %v3915, %v4003
    %4005 = vmatmul.bf16.gmra.mxu0 %v3489
    %v4006 = vpop.f32.mrf.mxu0
    %v4007 = vadd.f32 %v3918, %v4006
    %v4008 = vpop.f32.mrf.mxu0
    %v4009 = vadd.f32 %v3920, %v4008
    %4010 = vmatmul.bf16.gmra.mxu0 %v3493
    %v4011 = vpop.f32.mrf.mxu0
    %v4012 = vadd.f32 %v3923, %v4011
    %v4013 = vpop.f32.mrf.mxu0
    %v4014 = vadd.f32 %v3925, %v4013
    %4015 = vmatmul.bf16.gmra.mxu0 %v3497
    %v4016 = vpop.f32.mrf.mxu0
    %v4017 = vadd.f32 %v3928, %v4016
    %v4018 = vpop.f32.mrf.mxu0
    %v4019 = vadd.f32 %v3930, %v4018
    %4020 = vmatmul.bf16.gmra.mxu0 %v3501
    %v4021 = vpop.f32.mrf.mxu0
    %v4022 = vadd.f32 %v3933, %v4021
    %v4023 = vpop.f32.mrf.mxu0
    %v4024 = vadd.f32 %v3935, %v4023
    %4025 = vmatmul.bf16.gmra.mxu0 %v3505
    %v4026 = vpop.f32.mrf.mxu0
    %v4027 = vadd.f32 %v3938, %v4026
    %v4028 = vpop.f32.mrf.mxu0
    %v4029 = vadd.f32 %v3940, %v4028
    %4030 = vmatmul.bf16.gmra.mxu0 %v3509
    %v4031 = vpop.f32.mrf.mxu0
    %v4032 = vadd.f32 %v3943, %v4031
    %v4033 = vpop.f32.mrf.mxu0
    %v4034 = vadd.f32 %v3945, %v4033
    %4035 = vmatmul.bf16.gmra.mxu0 %v3513
    %v4036 = vpop.f32.mrf.mxu0
    %v4037 = vadd.f32 %v3948, %v4036
    %v4038 = vpop.f32.mrf.mxu0
    %v4039 = vadd.f32 %v3950, %v4038
    %4040 = vmatmul.bf16.gmra.mxu0 %v3517
    %v4041 = vpop.f32.mrf.mxu0
    %v4042 = vadd.f32 %v3953, %v4041
    %v4043 = vpop.f32.mrf.mxu0
    %v4044 = vadd.f32 %v3955, %v4043
    %4045 = vdwg.mxu0
    %4046 = vmatpush.bf16.msra.mxu0 %v3746
    %4047 = vmatpush.bf16.msra.mxu0 %v3745
    %4048 = vmatpush.bf16.msra.mxu0 %v3744
    %4049 = vmatpush.bf16.msra.mxu0 %v3743
    %4050 = vmatpush.bf16.msra.mxu0 %v3742
    %4051 = vmatpush.bf16.msra.mxu0 %v3741
    %4052 = vmatpush.bf16.msra.mxu0 %v3740
    %4053 = vmatpush.bf16.msra.mxu0 %v3739
    %4054 = vmatmul.bf16.gmra.mxu0 %v3458
    %v4055 = vpop.f32.mrf.mxu0
    %v4056 = vadd.f32 %v3967, %v4055
    %v4057 = vpop.f32.mrf.mxu0
    %v4058 = vadd.f32 %v3969, %v4057
    %4059 = vmatmul.bf16.gmra.mxu0 %v3462
    %v4060 = vpop.f32.mrf.mxu0
    %v4061 = vadd.f32 %v3972, %v4060
    %v4062 = vpop.f32.mrf.mxu0
    %v4063 = vadd.f32 %v3974, %v4062
    %4064 = vmatmul.bf16.gmra.mxu0 %v3466
    %v4065 = vpop.f32.mrf.mxu0
    %v4066 = vadd.f32 %v3977, %v4065
    %v4067 = vpop.f32.mrf.mxu0
    %v4068 = vadd.f32 %v3979, %v4067
    %4069 = vmatmul.bf16.gmra.mxu0 %v3470
    %v4070 = vpop.f32.mrf.mxu0
    %v4071 = vadd.f32 %v3982, %v4070
    %v4072 = vpop.f32.mrf.mxu0
    %v4073 = vadd.f32 %v3984, %v4072
    %4074 = vmatmul.bf16.gmra.mxu0 %v3474
    %v4075 = vpop.f32.mrf.mxu0
    %v4076 = vadd.f32 %v3987, %v4075
    %v4077 = vpop.f32.mrf.mxu0
    %v4078 = vadd.f32 %v3989, %v4077
    %4079 = vmatmul.bf16.gmra.mxu0 %v3478
    %v4080 = vpop.f32.mrf.mxu0
    %v4081 = vadd.f32 %v3992, %v4080
    %v4082 = vpop.f32.mrf.mxu0
    %v4083 = vadd.f32 %v3994, %v4082
    %4084 = vmatmul.bf16.gmra.mxu0 %v3482
    %v4085 = vpop.f32.mrf.mxu0
    %v4086 = vadd.f32 %v3997, %v4085
    %v4087 = vpop.f32.mrf.mxu0
    %v4088 = vadd.f32 %v3999, %v4087
    %4089 = vmatmul.bf16.gmra.mxu0 %v3486
    %v4090 = vpop.f32.mrf.mxu0
    %v4091 = vadd.f32 %v4002, %v4090
    %v4092 = vpop.f32.mrf.mxu0
    %v4093 = vadd.f32 %v4004, %v4092
    %4094 = vmatmul.bf16.gmra.mxu0 %v3490
    %v4095 = vpop.f32.mrf.mxu0
    %v4096 = vadd.f32 %v4007, %v4095
    %v4097 = vpop.f32.mrf.mxu0
    %v4098 = vadd.f32 %v4009, %v4097
    %4099 = vmatmul.bf16.gmra.mxu0 %v3494
    %v4100 = vpop.f32.mrf.mxu0
    %v4101 = vadd.f32 %v4012, %v4100
    %v4102 = vpop.f32.mrf.mxu0
    %v4103 = vadd.f32 %v4014, %v4102
    %4104 = vmatmul.bf16.gmra.mxu0 %v3498
    %v4105 = vpop.f32.mrf.mxu0
    %v4106 = vadd.f32 %v4017, %v4105
    %v4107 = vpop.f32.mrf.mxu0
    %v4108 = vadd.f32 %v4019, %v4107
    %4109 = vmatmul.bf16.gmra.mxu0 %v3502
    %v4110 = vpop.f32.mrf.mxu0
    %v4111 = vadd.f32 %v4022, %v4110
    %v4112 = vpop.f32.mrf.mxu0
    %v4113 = vadd.f32 %v4024, %v4112
    %4114 = vmatmul.bf16.gmra.mxu0 %v3506
    %v4115 = vpop.f32.mrf.mxu0
    %v4116 = vadd.f32 %v4027, %v4115
    %v4117 = vpop.f32.mrf.mxu0
    %v4118 = vadd.f32 %v4029, %v4117
    %4119 = vmatmul.bf16.gmra.mxu0 %v3510
    %v4120 = vpop.f32.mrf.mxu0
    %v4121 = vadd.f32 %v4032, %v4120
    %v4122 = vpop.f32.mrf.mxu0
    %v4123 = vadd.f32 %v4034, %v4122
    %4124 = vmatmul.bf16.gmra.mxu0 %v3514
    %v4125 = vpop.f32.mrf.mxu0
    %v4126 = vadd.f32 %v4037, %v4125
    %v4127 = vpop.f32.mrf.mxu0
    %v4128 = vadd.f32 %v4039, %v4127
    %4129 = vmatmul.bf16.gmra.mxu0 %v3518
    %v4130 = vpop.f32.mrf.mxu0
    %v4131 = vadd.f32 %v4042, %v4130
    %v4132 = vpop.f32.mrf.mxu0
    %v4133 = vadd.f32 %v4044, %v4132
    %4134 = vdwg.mxu0
    %4135 = vxpose.xlu0.b32.start [1/16] %v4056, 128
    %4136 = vxpose.xlu0.b32.cont [2/16] %v4058, 128
    %4137 = vxpose.xlu0.b32.cont [3/16] %v4061, 128
    %4138 = vxpose.xlu0.b32.cont [4/16] %v4063, 128
    %4139 = vxpose.xlu0.b32.cont [5/16] %v4066, 128
    %4140 = vxpose.xlu0.b32.cont [6/16] %v4068, 128
    %4141 = vxpose.xlu0.b32.cont [7/16] %v4071, 128
    %4142 = vxpose.xlu0.b32.cont [8/16] %v4073, 128
    %4143 = vxpose.xlu0.b32.cont [9/16] %v4076, 128
    %4144 = vxpose.xlu0.b32.cont [10/16] %v4078, 128
    %4145 = vxpose.xlu0.b32.cont [11/16] %v4081, 128
    %4146 = vxpose.xlu0.b32.cont [12/16] %v4083, 128
    %4147 = vxpose.xlu0.b32.cont [13/16] %v4086, 128
    %4148 = vxpose.xlu0.b32.cont [14/16] %v4088, 128
    %4149 = vxpose.xlu0.b32.cont [15/16] %v4091, 128
    %4150 = vxpose.xlu0.b32.end [16/16] %v4093, 128
    %v4151 = vpop.trf.xlu0
    %v4152 = vpop.trf.xlu0
    %v4153 = vpop.trf.xlu0
    %v4154 = vpop.trf.xlu0
    %v4155 = vpop.trf.xlu0
    %v4156 = vpop.trf.xlu0
    %v4157 = vpop.trf.xlu0
    %v4158 = vpop.trf.xlu0
    %v4159 = vpop.trf.xlu0
    %v4160 = vpop.trf.xlu0
    %v4161 = vpop.trf.xlu0
    %v4162 = vpop.trf.xlu0
    %v4163 = vpop.trf.xlu0
    %v4164 = vpop.trf.xlu0
    %v4165 = vpop.trf.xlu0
    %v4166 = vpop.trf.xlu0
    %4167 = vxpose.xlu0.b32.start [1/16] %v4096, 128
    %4168 = vxpose.xlu0.b32.cont [2/16] %v4098, 128
    %4169 = vxpose.xlu0.b32.cont [3/16] %v4101, 128
    %4170 = vxpose.xlu0.b32.cont [4/16] %v4103, 128
    %4171 = vxpose.xlu0.b32.cont [5/16] %v4106, 128
    %4172 = vxpose.xlu0.b32.cont [6/16] %v4108, 128
    %4173 = vxpose.xlu0.b32.cont [7/16] %v4111, 128
    %4174 = vxpose.xlu0.b32.cont [8/16] %v4113, 128
    %4175 = vxpose.xlu0.b32.cont [9/16] %v4116, 128
    %4176 = vxpose.xlu0.b32.cont [10/16] %v4118, 128
    %4177 = vxpose.xlu0.b32.cont [11/16] %v4121, 128
    %4178 = vxpose.xlu0.b32.cont [12/16] %v4123, 128
    %4179 = vxpose.xlu0.b32.cont [13/16] %v4126, 128
    %4180 = vxpose.xlu0.b32.cont [14/16] %v4128, 128
    %4181 = vxpose.xlu0.b32.cont [15/16] %v4131, 128
    %4182 = vxpose.xlu0.b32.end [16/16] %v4133, 128
    %v4183 = vpop.trf.xlu0
    %v4184 = vpop.trf.xlu0
    %v4185 = vpop.trf.xlu0
    %v4186 = vpop.trf.xlu0
    %v4187 = vpop.trf.xlu0
    %v4188 = vpop.trf.xlu0
    %v4189 = vpop.trf.xlu0
    %v4190 = vpop.trf.xlu0
    %v4191 = vpop.trf.xlu0
    %v4192 = vpop.trf.xlu0
    %v4193 = vpop.trf.xlu0
    %v4194 = vpop.trf.xlu0
    %v4195 = vpop.trf.xlu0
    %v4196 = vpop.trf.xlu0
    %v4197 = vpop.trf.xlu0
    %v4198 = vpop.trf.xlu0
    %4199 = vst [vmem:[#allocation8] sm:$0xff] %v4151
    %4200 = vst [vmem:[#allocation8 + $0x8] sm:$0xff] %v4183
    // Predicated region
    $region42: #{tpu_custom_call.1} parent=1 // pred_check
      _
    $region43: #{tpu_custom_call.1} parent=1 // pred_check_branch
      %4202 = sbr.rel (0) target = $region45
    $region44: #{tpu_custom_call.1} parent=1 // pred_region
      %4204 = vsyncadd [#allocation4], 0
      %s4206 = sshll.u32 [#allocation8], 4
      %s4207 = int_to_ptr.vmem [resolvable:$true] %s4206
      %s4208 = sshll.u32 %s7, 4
      %s4209 = int_to_ptr.hbm [resolvable:$true] %s4208
      %4211 = dma.vmem_to_hbm [thread:$0]  %s4207, 256, %s4209, [#allocation4]
    $region45: #{tpu_custom_call.1} parent=1 // pred_fallthru
      _
    // Predicated region
    $region46: #{tpu_custom_call.1} parent=1 // pred_check
      _
    $region47: #{tpu_custom_call.1} parent=1 // pred_check_branch
      %4213 = sbr.rel (0) target = $region49
    $region48: #{tpu_custom_call.1} parent=1 // pred_region
      %4215 = dma.done [#allocation4], 256
    $region49: #{tpu_custom_call.1} parent=1 // pred_fallthru
      _
    %4216 = vsyncpa [#allocation3], 1
    %4217 = vsyncpa [#allocation6], 1
    %4218 = vsyncpa [#allocation4], 1

</llo_original>
